<compile_context>
chip_gen: v5e
topology: v5e:2x2
jax: 0.10.0
libtpu: 0.0.40
codegen_flags: <defaults>
</compile_context>

<pallas_src>
import functools
import math

import jax
import jax.numpy as jnp
import numpy as np
from jax.experimental import pallas as pl
from jax.experimental.pallas import tpu as pltpu

# ---- model hyper-parameters (constants referenced in the original file) ----
BASE_CHANNELS = 8
TIME_EMBEDDING_DIM = 32
NUM_CLASSES = 10
NUM_LAYERS = 3
IMAGE_CHANNELS = 1
BN_EPS = 1e-5


# ============================ in-kernel helpers ============================

def _conv3x3_im2col(pad_ref, x_flat, n, h, w, w_ref, b_ref):
    """3x3 'same' conv as one im2col MXU matmul.

    x_flat : (n*h*w, cin) activation in flat pixel-row layout.
    pad_ref: VMEM halo scratch of shape (n, >=h+2, >=w+2, cin); zeroed + interior filled here.
    w_ref  : (9*cin, cout) packed weights (dy, dx, cin) row-major.  b_ref: (1, cout).
    Returns (n*h*w, cout) f32.
    """
    cin = x_flat.shape[-1]
    pad_ref[...] = jnp.zeros_like(pad_ref)
    pad_ref[:, 1:h + 1, 1:w + 1, :] = x_flat.reshape(n, h, w, cin)
    cols = []
    for dy in range(3):
        for dx in range(3):
            cols.append(pad_ref[:, dy:dy + h, dx:dx + w, :].reshape(n * h * w, cin))
    patches = jnp.concatenate(cols, axis=-1)                         # (n*h*w, 9*cin)
    return jnp.dot(patches, w_ref[...],
                   preferred_element_type=jnp.float32) + b_ref[...]


def _bn_train(x, g_ref, b_ref):
    """Training-mode BatchNorm over rows of x (rows = all N*H*W pixels), single-pass stats."""
    m = x.shape[0]
    s = jnp.sum(x, axis=0, keepdims=True)
    sq = jnp.sum(x * x, axis=0, keepdims=True)
    mean = s * (1.0 / m)
    var = jnp.maximum(sq * (1.0 / m) - mean * mean, 0.0)
    return (x - mean) * jax.lax.rsqrt(var + BN_EPS) * g_ref[...] + b_ref[...]


# ============================ Pallas kernels ============================

def _initial_conv_kernel(n, h, w, x_ref, w_ref, b_ref, o_ref, pad_ref):
    o_ref[...] = _conv3x3_im2col(pad_ref, x_ref[...], n, h, w, w_ref, b_ref)


def _block_kernel(upsample, n, h, w,
                  x_ref, temb_ref,
                  c1w_ref, c1b_ref, tmw_ref, tmb_ref, bn1g_ref, bn1b_ref,
                  c2w_ref, c2b_ref, bn2g_ref, bn2b_ref,
                  trw_ref, trb_ref, trg_ref, trbb_ref,
                  rs_ref, pjw_ref, pjb_ref,
                  o_ref, pad1_ref, pad2_ref):
    m = n * h * w

    # conv1 -> ReLU -> BN1
    y = _conv3x3_im2col(pad1_ref, x_ref[...], n, h, w, c1w_ref, c1b_ref)
    y = _bn_train(jnp.maximum(y, 0.0), bn1g_ref, bn1b_ref)

    # fused time-embedding MLP (Linear + ReLU) and per-image, per-channel bias add
    te = jnp.dot(temb_ref[...], tmw_ref[...],
                 preferred_element_type=jnp.float32) + tmb_ref[...]
    te = jnp.maximum(te, 0.0)                                        # (n, cout)
    c = y.shape[-1]
    y = (y.reshape(n, h * w, c) + te[:, None, :]).reshape(m, c)

    # conv2 -> ReLU -> BN2
    y = _conv3x3_im2col(pad2_ref, y, n, h, w, c2w_ref, c2b_ref)
    y = _bn_train(jnp.maximum(y, 0.0), bn2g_ref, bn2b_ref)

    if upsample:
        # TODO(synk): CBAM attention module definition not provided upstream; treated as identity.
        # bilinear 2x upsample (align_corners=False) as a precomputed row-space matmul
        y = jnp.dot(rs_ref[...], y, preferred_element_type=jnp.float32)    # (4m, cout)
        y = _conv3x3_im2col(pad2_ref, y, n, 2 * h, 2 * w, trw_ref, trb_ref)
        y = jnp.maximum(_bn_train(y, trg_ref, trbb_ref), 0.0)
    else:
        y = _conv3x3_im2col(pad2_ref, y, n, h, w, trw_ref, trb_ref)
        y = jnp.maximum(_bn_train(y, trg_ref, trbb_ref), 0.0)
        # 2x2 average pool as a precomputed row-space matmul
        y = jnp.dot(rs_ref[...], y, preferred_element_type=jnp.float32)    # (m/4, cout)

    # output projection: identity for inner blocks, the fused final 1x1 conv for the last block
    o_ref[...] = jnp.dot(y, pjw_ref[...],
                         preferred_element_type=jnp.float32) + pjb_ref[...]


# ============================ wrappers ============================

def _full_spec(a):
    nd = a.ndim
    return pl.BlockSpec(tuple(a.shape), lambda i, _nd=nd: (0,) * _nd)


def initial_conv3x3(x_flat, w, b, n, h, w_sp):
    """3x3 'same' conv on flat activations: (n*h*w_sp, cin) -> (n*h*w_sp, cout)."""
    cin = x_flat.shape[-1]
    cout = w.shape[-1]
    inputs = [x_flat, w.reshape(9 * cin, cout), b.reshape(1, cout)]
    return pl.pallas_call(
        functools.partial(_initial_conv_kernel, n, h, w_sp),
        out_shape=jax.ShapeDtypeStruct((n * h * w_sp, cout), jnp.float32),
        grid=(1,),
        in_specs=[_full_spec(a) for a in inputs],
        out_specs=pl.BlockSpec((n * h * w_sp, cout), lambda i: (0, 0)),
        scratch_shapes=[pltpu.VMEM((n, h + 2, w_sp + 2, cin), jnp.float32)],
        compiler_params=pltpu.CompilerParams(dimension_semantics=("arbitrary",)),
    )(*inputs)


def _avgpool_matrix(n, h, w):
    # rows = (n, i, j) over the pooled grid, cols = (n, y, x) over the input grid
    ho, wo = h // 2, w // 2
    p = np.zeros((n * ho * wo, n * h * w), np.float32)
    for ni in range(n):
        for i in range(ho):
            for j in range(wo):
                r = (ni * ho + i) * wo + j
                for dh in range(2):
                    for dw in range(2):
                        p[r, (ni * h + 2 * i + dh) * w + 2 * j + dw] = 0.25
    return jnp.asarray(p)


def _upsample1d(l):
    # exact PyTorch nn.Upsample(scale_factor=2, mode='bilinear', align_corners=False) weights
    a = np.zeros((2 * l, l), np.float32)
    for o in range(2 * l):
        src = max((o + 0.5) * 0.5 - 0.5, 0.0)
        i0 = min(int(math.floor(src)), l - 1)
        frac = src - i0
        i1 = min(i0 + 1, l - 1)
        a[o, i0] += 1.0 - frac
        a[o, i1] += frac
    return a


def _upsample_matrix(n, h, w):
    u1 = np.kron(_upsample1d(h), _upsample1d(w))       # rows (oh, ow), cols (y, x)
    u = np.kron(np.eye(n, dtype=np.float32), u1)       # block-diagonal over batch
    return jnp.asarray(u.astype(np.float32))


def block_apply(p, x_flat, t_emb, n, h, w, upsample, final_proj=None):
    """One fused UNet Block.  x_flat: (n*h*w, cin) -> (n*h_out*w_out, c_proj)."""
    m = n * h * w
    cin = x_flat.shape[-1]
    cout = p["conv1_b"].shape[0]

    if upsample:
        resamp = _upsample_matrix(n, h, w)             # (4m, m)
        ht, wt = 2 * h, 2 * w
        m_out = 4 * m
    else:
        resamp = _avgpool_matrix(n, h, w)              # (m/4, m)
        ht, wt = h, w
        m_out = m // 4

    if final_proj is None:
        projw = jnp.eye(cout, dtype=jnp.float32)       # identity projection (no-op)
        projb = jnp.zeros((1, cout), jnp.float32)
    else:
        fw, fb = final_proj                            # 1x1 conv: (1, 1, cout, c_final)
        projw = fw.reshape(cout, fw.shape[-1])
        projb = fb.reshape(1, fb.shape[-1])
    c_proj = projw.shape[-1]

    inputs = [
        x_flat, t_emb,
        p["conv1_w"].reshape(9 * cin, cout), p["conv1_b"].reshape(1, cout),
        p["tm_w"], p["tm_b"].reshape(1, cout),
        p["bn1_g"].reshape(1, cout), p["bn1_b"].reshape(1, cout),
        p["conv2_w"].reshape(9 * cout, cout), p["conv2_b"].reshape(1, cout),
        p["bn2_g"].reshape(1, cout), p["bn2_b"].reshape(1, cout),
        p["tr_conv_w"].reshape(9 * cout, cout), p["tr_conv_b"].reshape(1, cout),
        p["tr_bn_g"].reshape(1, cout), p["tr_bn_b"].reshape(1, cout),
        resamp, projw, projb,
    ]
    return pl.pallas_call(
        functools.partial(_block_kernel, upsample, n, h, w),
        out_shape=jax.ShapeDtypeStruct((m_out, c_proj), jnp.float32),
        grid=(1,),
        in_specs=[_full_spec(a) for a in inputs],
        out_specs=pl.BlockSpec((m_out, c_proj), lambda i: (0, 0)),
        scratch_shapes=[
            pltpu.VMEM((n, h + 2, w + 2, cin), jnp.float32),       # conv1 halo buffer
            pltpu.VMEM((n, ht + 2, wt + 2, cout), jnp.float32),    # conv2 / transform halo buffer
        ],
        compiler_params=pltpu.CompilerParams(dimension_semantics=("arbitrary",)),
    )(*inputs)


# ============================ JAX glue ============================

def sinusoidal_embedding(t, dim):
    half = dim // 2
    scale = math.log(10000.0) / (half - 1)
    freqs = jnp.exp(jnp.arange(half, dtype=jnp.float32) * -scale)
    emb = t.astype(jnp.float32)[:, None] * freqs[None, :]
    return jnp.concatenate([jnp.sin(emb), jnp.cos(emb)], axis=-1)


# ============================ parameter init ============================

def _conv_init(key, kh, kw, cin, cout):
    bound = 1.0 / math.sqrt(cin * kh * kw)
    kw_, kb_ = jax.random.split(key)
    w = jax.random.uniform(kw_, (kh, kw, cin, cout), jnp.float32, -bound, bound)
    b = jax.random.uniform(kb_, (cout,), jnp.float32, -bound, bound)
    return w, b


def _linear_init(key, din, dout):
    bound = 1.0 / math.sqrt(din)
    kw_, kb_ = jax.random.split(key)
    w = jax.random.uniform(kw_, (din, dout), jnp.float32, -bound, bound)
    b = jax.random.uniform(kb_, (dout,), jnp.float32, -bound, bound)
    return w, b


def _block_init(key, in_ch, out_ch, time_dim, upsample):
    ks = jax.random.split(key, 4)
    conv1_in = in_ch * 2 if upsample else in_ch
    c1w, c1b = _conv_init(ks[0], 3, 3, conv1_in, out_ch)
    c2w, c2b = _conv_init(ks[1], 3, 3, out_ch, out_ch)
    tmw, tmb = _linear_init(ks[2], time_dim, out_ch)
    trw, trb = _conv_init(ks[3], 3, 3, out_ch, out_ch)
    return {
        "conv1_w": c1w, "conv1_b": c1b,
        "conv2_w": c2w, "conv2_b": c2b,
        "tm_w": tmw, "tm_b": tmb,
        "bn1_g": jnp.ones((out_ch,)), "bn1_b": jnp.zeros((out_ch,)),
        "bn2_g": jnp.ones((out_ch,)), "bn2_b": jnp.zeros((out_ch,)),
        "tr_conv_w": trw, "tr_conv_b": trb,
        "tr_bn_g": jnp.ones((out_ch,)), "tr_bn_b": jnp.zeros((out_ch,)),
    }


def init_unet_params(key):
    down_channels = [BASE_CHANNELS * (2 ** i) for i in range(NUM_LAYERS)]
    up_channels = list(reversed(down_channels))
    keys = jax.random.split(key, 6 + 2 * (NUM_LAYERS - 1))
    ki = iter(keys)
    tw, tb = _linear_init(next(ki), TIME_EMBEDDING_DIM, TIME_EMBEDDING_DIM)
    class_emb = jax.random.normal(next(ki), (NUM_CLASSES, TIME_EMBEDDING_DIM), jnp.float32)
    iw, ib = _conv_init(next(ki), 3, 3, IMAGE_CHANNELS, down_channels[0])
    down = [
        _block_init(next(ki), down_channels[i], down_channels[i + 1],
                    TIME_EMBEDDING_DIM, upsample=False)
        for i in range(len(down_channels) - 1)
    ]
    up = [
        _block_init(next(ki), up_channels[i], up_channels[i + 1],
                    TIME_EMBEDDING_DIM, upsample=True)
        for i in range(len(up_channels) - 1)
    ]
    fw, fb = _conv_init(next(ki), 1, 1, up_channels[-1], IMAGE_CHANNELS)
    return {
        "time_w": tw, "time_b": tb,
        "class_emb": class_emb,
        "init_w": iw, "init_b": ib,
        "down": down, "up": up,
        "final_w": fw, "final_b": fb,
    }


# ============================ forward pass ============================

def unet_forward(params, x_nchw, t, class_label, weight):
    n, c_img, h, w = x_nchw.shape
    # NCHW (PyTorch) -> flat pixel rows (N*H*W, C): channels on the fast lane axis
    x = jnp.transpose(x_nchw.astype(jnp.float32), (0, 2, 3, 1)).reshape(n * h * w, c_img)

    # network-level time MLP + class embedding: tiny, plain JAX (below pallas_call launch cost)
    t_emb = sinusoidal_embedding(t, TIME_EMBEDDING_DIM)
    t_emb = jnp.maximum(t_emb @ params["time_w"] + params["time_b"], 0.0)
    class_emb = jnp.take(params["class_emb"], class_label, axis=0)
    t_emb = t_emb + class_emb * weight

    x = initial_conv3x3(x, params["init_w"], params["init_b"], n, h, w)

    ch, cw = h, w
    residuals = []
    for p in params["down"]:
        x = block_apply(p, x, t_emb, n, ch, cw, upsample=False)
        ch, cw = ch // 2, cw // 2
        residuals.append(x)

    # TODO(synk): MSA middle attention module definition not provided upstream; treated as identity.

    for idx, p in enumerate(params["up"]):
        r = residuals.pop()
        x = jnp.concatenate([x, r], axis=-1)          # channel concat (lane axis)
        fp = ((params["final_w"], params["final_b"])
              if idx == len(params["up"]) - 1 else None)   # fuse final 1x1 conv into last block
        x = block_apply(p, x, t_emb, n, ch, cw, upsample=True, final_proj=fp)
        ch, cw = 2 * ch, 2 * cw

    c_out = x.shape[-1]
    return jnp.transpose(x.reshape(n, h, w, c_out), (0, 3, 1, 2))   # back to NCHW


# ============================ main ============================

if __name__ == "__main__":
    key = jax.random.PRNGKey(0)
    k_param, k_x, k_t = jax.random.split(key, 3)

    params = init_unet_params(k_param)

    B, H, W = 2, 16, 16
    x = jax.random.normal(k_x, (B, IMAGE_CHANNELS, H, W), jnp.float32)     # NCHW input
    t = jax.random.uniform(k_t, (B,), jnp.float32, 0.0, 1000.0)            # timesteps
    class_label = jnp.array([1, 7], dtype=jnp.int32)
    weight = jnp.float32(0.5)

    out = unet_forward(params, x, t, class_label, weight)
    out = jax.block_until_ready(out)

    assert out.shape == (B, IMAGE_CHANNELS, H, W), out.shape
    assert jnp.all(jnp.isfinite(out))
    print("KERNEL_OK")
</pallas_src>

<mosaic_0001>
module attributes {stable_mosaic.version = 11 : i64} {
  func.func @_initial_conv_kernel(%arg0: i32, %arg1: memref<512x1xf32, #tpu.memory_space<vmem>>, %arg2: memref<9x8xf32, #tpu.memory_space<vmem>>, %arg3: memref<1x8xf32, #tpu.memory_space<vmem>>, %arg4: memref<512x8xf32, #tpu.memory_space<vmem>>, %arg5: memref<2x18x18x1xf32, #tpu.memory_space<vmem>>) attributes {dimension_semantics = [#tpu.dimension_semantics<arbitrary>], iteration_bounds = array<i64: 1>, scalar_prefetch = 0 : i64, scratch_operands = 1 : i64, tpu.core_type = #tpu.core_type<tc>, window_params = [{pipeline_mode = #tpu.pipeline_mode<synchronous>, transform_indices = @transform_0, window_bounds = array<i64: 512, 1>}, {pipeline_mode = #tpu.pipeline_mode<synchronous>, transform_indices = @transform_1, window_bounds = array<i64: 9, 8>}, {pipeline_mode = #tpu.pipeline_mode<synchronous>, transform_indices = @transform_2, window_bounds = array<i64: 1, 8>}, {pipeline_mode = #tpu.pipeline_mode<synchronous>, transform_indices = @transform_3, window_bounds = array<i64: 512, 8>}]} {
    %c0 = arith.constant 0 : index
    %c0_0 = arith.constant 0 : index
    %0 = vector.load %arg1[%c0, %c0_0] : memref<512x1xf32, #tpu.memory_space<vmem>>, vector<512x1xf32>
    %cst = arith.constant 0.000000e+00 : f32
    %1 = vector.broadcast %cst : f32 to vector<2x18x18x1xf32>
    %c0_1 = arith.constant 0 : index
    %c0_2 = arith.constant 0 : index
    %c0_3 = arith.constant 0 : index
    %c0_4 = arith.constant 0 : index
    %2 = vector.load %arg5[%c0_1, %c0_2, %c0_3, %c0_4] : memref<2x18x18x1xf32, #tpu.memory_space<vmem>>, vector<2x18x18x1xf32>
    tpu.vector_store %arg5[%c0_1, %c0_2, %c0_3, %c0_4], %1 {strides = array<i32>} : memref<2x18x18x1xf32, #tpu.memory_space<vmem>>, vector<2x18x18x1xf32>,
    %3 = vector.shape_cast %0 : vector<512x1xf32> to vector<2x16x16x1xf32>
    %c0_5 = arith.constant 0 : index
    %c1 = arith.constant 1 : index
    %c1_6 = arith.constant 1 : index
    %c0_7 = arith.constant 0 : index
    %4 = vector.load %arg5[%c0_5, %c1, %c1_6, %c0_7] : memref<2x18x18x1xf32, #tpu.memory_space<vmem>>, vector<2x16x16x1xf32>
    tpu.vector_store %arg5[%c0_5, %c1, %c1_6, %c0_7], %3 {strides = array<i32>} : memref<2x18x18x1xf32, #tpu.memory_space<vmem>>, vector<2x16x16x1xf32>,
    %c0_8 = arith.constant 0 : index
    %c0_9 = arith.constant 0 : index
    %c0_10 = arith.constant 0 : index
    %c0_11 = arith.constant 0 : index
    %5 = vector.load %arg5[%c0_8, %c0_9, %c0_10, %c0_11] : memref<2x18x18x1xf32, #tpu.memory_space<vmem>>, vector<2x16x16x1xf32>
    %6 = vector.shape_cast %5 : vector<2x16x16x1xf32> to vector<512x1xf32>
    %c0_12 = arith.constant 0 : index
    %c0_13 = arith.constant 0 : index
    %c1_14 = arith.constant 1 : index
    %c0_15 = arith.constant 0 : index
    %7 = vector.load %arg5[%c0_12, %c0_13, %c1_14, %c0_15] : memref<2x18x18x1xf32, #tpu.memory_space<vmem>>, vector<2x16x16x1xf32>
    %8 = vector.shape_cast %7 : vector<2x16x16x1xf32> to vector<512x1xf32>
    %c0_16 = arith.constant 0 : index
    %c0_17 = arith.constant 0 : index
    %c2 = arith.constant 2 : index
    %c0_18 = arith.constant 0 : index
    %9 = vector.load %arg5[%c0_16, %c0_17, %c2, %c0_18] : memref<2x18x18x1xf32, #tpu.memory_space<vmem>>, vector<2x16x16x1xf32>
    %10 = vector.shape_cast %9 : vector<2x16x16x1xf32> to vector<512x1xf32>
    %c0_19 = arith.constant 0 : index
    %c1_20 = arith.constant 1 : index
    %c0_21 = arith.constant 0 : index
    %c0_22 = arith.constant 0 : index
    %11 = vector.load %arg5[%c0_19, %c1_20, %c0_21, %c0_22] : memref<2x18x18x1xf32, #tpu.memory_space<vmem>>, vector<2x16x16x1xf32>
    %12 = vector.shape_cast %11 : vector<2x16x16x1xf32> to vector<512x1xf32>
    %c0_23 = arith.constant 0 : index
    %c1_24 = arith.constant 1 : index
    %c1_25 = arith.constant 1 : index
    %c0_26 = arith.constant 0 : index
    %13 = vector.load %arg5[%c0_23, %c1_24, %c1_25, %c0_26] : memref<2x18x18x1xf32, #tpu.memory_space<vmem>>, vector<2x16x16x1xf32>
    %14 = vector.shape_cast %13 : vector<2x16x16x1xf32> to vector<512x1xf32>
    %c0_27 = arith.constant 0 : index
    %c1_28 = arith.constant 1 : index
    %c2_29 = arith.constant 2 : index
    %c0_30 = arith.constant 0 : index
    %15 = vector.load %arg5[%c0_27, %c1_28, %c2_29, %c0_30] : memref<2x18x18x1xf32, #tpu.memory_space<vmem>>, vector<2x16x16x1xf32>
    %16 = vector.shape_cast %15 : vector<2x16x16x1xf32> to vector<512x1xf32>
    %c0_31 = arith.constant 0 : index
    %c2_32 = arith.constant 2 : index
    %c0_33 = arith.constant 0 : index
    %c0_34 = arith.constant 0 : index
    %17 = vector.load %arg5[%c0_31, %c2_32, %c0_33, %c0_34] : memref<2x18x18x1xf32, #tpu.memory_space<vmem>>, vector<2x16x16x1xf32>
    %18 = vector.shape_cast %17 : vector<2x16x16x1xf32> to vector<512x1xf32>
    %c0_35 = arith.constant 0 : index
    %c2_36 = arith.constant 2 : index
    %c1_37 = arith.constant 1 : index
    %c0_38 = arith.constant 0 : index
    %19 = vector.load %arg5[%c0_35, %c2_36, %c1_37, %c0_38] : memref<2x18x18x1xf32, #tpu.memory_space<vmem>>, vector<2x16x16x1xf32>
    %20 = vector.shape_cast %19 : vector<2x16x16x1xf32> to vector<512x1xf32>
    %c0_39 = arith.constant 0 : index
    %c2_40 = arith.constant 2 : index
    %c2_41 = arith.constant 2 : index
    %c0_42 = arith.constant 0 : index
    %21 = vector.load %arg5[%c0_39, %c2_40, %c2_41, %c0_42] : memref<2x18x18x1xf32, #tpu.memory_space<vmem>>, vector<2x16x16x1xf32>
    %22 = vector.shape_cast %21 : vector<2x16x16x1xf32> to vector<512x1xf32>
    %23 = tpu.concatenate %6, %8, %10, %12, %14, %16, %18, %20, %22 in 1 : vector<512x1xf32>, vector<512x1xf32>, vector<512x1xf32>, vector<512x1xf32>, vector<512x1xf32>, vector<512x1xf32>, vector<512x1xf32>, vector<512x1xf32>, vector<512x1xf32> -> vector<512x9xf32>
    %c0_43 = arith.constant 0 : index
    %c0_44 = arith.constant 0 : index
    %24 = vector.load %arg2[%c0_43, %c0_44] : memref<9x8xf32, #tpu.memory_space<vmem>>, vector<9x8xf32>
    %cst_45 = arith.constant dense<0.000000e+00> : vector<512x8xf32>
    %25 = tpu.matmul %23, %24, %cst_45 {dimension_numbers = #tpu.dot_dimension_numbers<[1], [0], [0], [1], [0, 0, 1, 1], [], []>} : vector<512x9xf32>, vector<9x8xf32>, vector<512x8xf32> -> vector<512x8xf32>
    %c0_46 = arith.constant 0 : index
    %c0_47 = arith.constant 0 : index
    %26 = vector.load %arg3[%c0_46, %c0_47] : memref<1x8xf32, #tpu.memory_space<vmem>>, vector<1x8xf32>
    %27 = vector.broadcast %26 : vector<1x8xf32> to vector<512x8xf32>
    %28 = arith.addf %25, %27 : vector<512x8xf32>
    %c0_48 = arith.constant 0 : index
    %c0_49 = arith.constant 0 : index
    %29 = vector.load %arg4[%c0_48, %c0_49] : memref<512x8xf32, #tpu.memory_space<vmem>>, vector<512x8xf32>
    tpu.vector_store %arg4[%c0_48, %c0_49], %28 {strides = array<i32>} : memref<512x8xf32, #tpu.memory_space<vmem>>, vector<512x8xf32>,
    return
  }
  func.func @transform_0(%arg0: i32) -> (i32, i32) {
    %c0_i32 = arith.constant 0 : i32
    %c0_i32_0 = arith.constant 0 : i32
    %c0_i32_1 = arith.constant 0 : i32
    return %c0_i32, %c0_i32_0 : i32, i32
  }
  func.func @transform_1(%arg0: i32) -> (i32, i32) {
    %c0_i32 = arith.constant 0 : i32
    %c0_i32_0 = arith.constant 0 : i32
    %c0_i32_1 = arith.constant 0 : i32
    return %c0_i32, %c0_i32_0 : i32, i32
  }
  func.func @transform_2(%arg0: i32) -> (i32, i32) {
    %c0_i32 = arith.constant 0 : i32
    %c0_i32_0 = arith.constant 0 : i32
    %c0_i32_1 = arith.constant 0 : i32
    return %c0_i32, %c0_i32_0 : i32, i32
  }
  func.func @transform_3(%arg0: i32) -> (i32, i32) {
    %c0_i32 = arith.constant 0 : i32
    %c0_i32_0 = arith.constant 0 : i32
    %c0_i32_1 = arith.constant 0 : i32
    return %c0_i32, %c0_i32_0 : i32, i32
  }
}

</mosaic_0001>

<llo_original>
// kernel: tpu_custom_call.1
$region0: #{tpu_custom_call.1}
  #allocation0 [shape = 'u32[]', space=smem, size = 0x4, offset = 0x4, fixed_abs, tag = 'smem constant byte address 0x4 - core index']
  #allocation1 [shape = 'u32[72,128]{1,0:T(1,128)}', space=vmem, size = 0x9000, scoped, tag = 'internal scratch']
  #allocation2 [shape = 'f32[2,18,18,1]{3,2,1,0:T(8,128)}', space=vmem, size = 0x6c000, scoped, tag = 'scratch operand']
  %s0 = inlined_call_operand.vmem [shape: f32[512,1], index: 0, kind: input, shape index: {}]
  %s1 = inlined_call_operand.vmem [shape: f32[9,8], index: 1, kind: input, shape index: {}]
  %s2 = inlined_call_operand.vmem [shape: f32[1,8], index: 2, kind: input, shape index: {}]
  %s3 = inlined_call_operand.vmem [shape: f32[512,8], index: 3, kind: output, shape index: {}]
  %s4 = sld [smem:[#allocation0]]
  $region22: #{tpu_custom_call.1} parent=0
    _
  %s6 = ssub.s32 1, %s4
  %s7 = scalar_select 0, %s6, %s4
  // Predicated region
  $region2: #{tpu_custom_call.1} parent=0 // pred_check
    _
  $region3: #{tpu_custom_call.1} parent=0 // pred_check_branch
    %9 = sbr.rel (0) target = $region5
  $region4: #{tpu_custom_call.1} parent=0 // pred_region
    _
  $region5: #{tpu_custom_call.1} parent=0 // pred_fallthru
    _
  // Predicated region
  $region6: #{tpu_custom_call.1} parent=0 // pred_check
    _
  $region7: #{tpu_custom_call.1} parent=0 // pred_check_branch
    %11 = sbr.rel (0) target = $region9
  $region8: #{tpu_custom_call.1} parent=0 // pred_region
    _
  $region9: #{tpu_custom_call.1} parent=0 // pred_fallthru
    _
  // Predicated region
  $region10: #{tpu_custom_call.1} parent=0 // pred_check
    _
  $region11: #{tpu_custom_call.1} parent=0 // pred_check_branch
    %13 = sbr.rel (0) target = $region13
  $region12: #{tpu_custom_call.1} parent=0 // pred_region
    _
  $region13: #{tpu_custom_call.1} parent=0 // pred_fallthru
    _
  %v14 = vld [vmem:[%s0] sm:$0xff]
  %v15 = vld [vmem:[%s0 + $0x8] sm:$0xff]
  %v16 = vld [vmem:[%s0 + $0x10] sm:$0xff]
  %v17 = vld [vmem:[%s0 + $0x18] sm:$0xff]
  %v18 = vld [vmem:[%s0 + $0x20] sm:$0xff]
  %v19 = vld [vmem:[%s0 + $0x28] sm:$0xff]
  %v20 = vld [vmem:[%s0 + $0x30] sm:$0xff]
  %v21 = vld [vmem:[%s0 + $0x38] sm:$0xff]
  %v22 = vld [vmem:[%s0 + $0x40] sm:$0xff]
  %v23 = vld [vmem:[%s0 + $0x48] sm:$0xff]
  %v24 = vld [vmem:[%s0 + $0x50] sm:$0xff]
  %v25 = vld [vmem:[%s0 + $0x58] sm:$0xff]
  %v26 = vld [vmem:[%s0 + $0x60] sm:$0xff]
  %v27 = vld [vmem:[%s0 + $0x68] sm:$0xff]
  %v28 = vld [vmem:[%s0 + $0x70] sm:$0xff]
  %v29 = vld [vmem:[%s0 + $0x78] sm:$0xff]
  %v30 = vld [vmem:[%s0 + $0x80] sm:$0xff]
  %v31 = vld [vmem:[%s0 + $0x88] sm:$0xff]
  %v32 = vld [vmem:[%s0 + $0x90] sm:$0xff]
  %v33 = vld [vmem:[%s0 + $0x98] sm:$0xff]
  %v34 = vld [vmem:[%s0 + $0xa0] sm:$0xff]
  %v35 = vld [vmem:[%s0 + $0xa8] sm:$0xff]
  %v36 = vld [vmem:[%s0 + $0xb0] sm:$0xff]
  %v37 = vld [vmem:[%s0 + $0xb8] sm:$0xff]
  %v38 = vld [vmem:[%s0 + $0xc0] sm:$0xff]
  %v39 = vld [vmem:[%s0 + $0xc8] sm:$0xff]
  %v40 = vld [vmem:[%s0 + $0xd0] sm:$0xff]
  %v41 = vld [vmem:[%s0 + $0xd8] sm:$0xff]
  %v42 = vld [vmem:[%s0 + $0xe0] sm:$0xff]
  %v43 = vld [vmem:[%s0 + $0xe8] sm:$0xff]
  %v44 = vld [vmem:[%s0 + $0xf0] sm:$0xff]
  %v45 = vld [vmem:[%s0 + $0xf8] sm:$0xff]
  %v46 = vld [vmem:[%s0 + $0x100] sm:$0xff]
  %v47 = vld [vmem:[%s0 + $0x108] sm:$0xff]
  %v48 = vld [vmem:[%s0 + $0x110] sm:$0xff]
  %v49 = vld [vmem:[%s0 + $0x118] sm:$0xff]
  %v50 = vld [vmem:[%s0 + $0x120] sm:$0xff]
  %v51 = vld [vmem:[%s0 + $0x128] sm:$0xff]
  %v52 = vld [vmem:[%s0 + $0x130] sm:$0xff]
  %v53 = vld [vmem:[%s0 + $0x138] sm:$0xff]
  %v54 = vld [vmem:[%s0 + $0x140] sm:$0xff]
  %v55 = vld [vmem:[%s0 + $0x148] sm:$0xff]
  %v56 = vld [vmem:[%s0 + $0x150] sm:$0xff]
  %v57 = vld [vmem:[%s0 + $0x158] sm:$0xff]
  %v58 = vld [vmem:[%s0 + $0x160] sm:$0xff]
  %v59 = vld [vmem:[%s0 + $0x168] sm:$0xff]
  %v60 = vld [vmem:[%s0 + $0x170] sm:$0xff]
  %v61 = vld [vmem:[%s0 + $0x178] sm:$0xff]
  %v62 = vld [vmem:[%s0 + $0x180] sm:$0xff]
  %v63 = vld [vmem:[%s0 + $0x188] sm:$0xff]
  %v64 = vld [vmem:[%s0 + $0x190] sm:$0xff]
  %v65 = vld [vmem:[%s0 + $0x198] sm:$0xff]
  %v66 = vld [vmem:[%s0 + $0x1a0] sm:$0xff]
  %v67 = vld [vmem:[%s0 + $0x1a8] sm:$0xff]
  %v68 = vld [vmem:[%s0 + $0x1b0] sm:$0xff]
  %v69 = vld [vmem:[%s0 + $0x1b8] sm:$0xff]
  %v70 = vld [vmem:[%s0 + $0x1c0] sm:$0xff]
  %v71 = vld [vmem:[%s0 + $0x1c8] sm:$0xff]
  %v72 = vld [vmem:[%s0 + $0x1d0] sm:$0xff]
  %v73 = vld [vmem:[%s0 + $0x1d8] sm:$0xff]
  %v74 = vld [vmem:[%s0 + $0x1e0] sm:$0xff]
  %v75 = vld [vmem:[%s0 + $0x1e8] sm:$0xff]
  %v76 = vld [vmem:[%s0 + $0x1f0] sm:$0xff]
  %v77 = vld [vmem:[%s0 + $0x1f8] sm:$0xff]
  %vm78 = vcmask 7168
  %79 = vst.msk [vmem:[#allocation2] sm:$0xff] %vm78, 0.0
  %80 = vst.msk [vmem:[#allocation2 + $0x8] sm:$0xff] %vm78, 0.0
  %vm81 = vcmask 1024
  %82 = vst.msk [vmem:[#allocation2 + $0x10] sm:$0x3] %vm81, 0.0
  %83 = vst.msk [vmem:[#allocation2 + $0x18] sm:$0xff] %vm78, 0.0
  %84 = vst.msk [vmem:[#allocation2 + $0x20] sm:$0xff] %vm78, 0.0
  %85 = vst.msk [vmem:[#allocation2 + $0x28] sm:$0x3] %vm81, 0.0
  %86 = vst.msk [vmem:[#allocation2 + $0x30] sm:$0xff] %vm78, 0.0
  %87 = vst.msk [vmem:[#allocation2 + $0x38] sm:$0xff] %vm78, 0.0
  %88 = vst.msk [vmem:[#allocation2 + $0x40] sm:$0x3] %vm81, 0.0
  %89 = vst.msk [vmem:[#allocation2 + $0x48] sm:$0xff] %vm78, 0.0
  %90 = vst.msk [vmem:[#allocation2 + $0x50] sm:$0xff] %vm78, 0.0
  %91 = vst.msk [vmem:[#allocation2 + $0x58] sm:$0x3] %vm81, 0.0
  %92 = vst.msk [vmem:[#allocation2 + $0x60] sm:$0xff] %vm78, 0.0
  %93 = vst.msk [vmem:[#allocation2 + $0x68] sm:$0xff] %vm78, 0.0
  %94 = vst.msk [vmem:[#allocation2 + $0x70] sm:$0x3] %vm81, 0.0
  %95 = vst.msk [vmem:[#allocation2 + $0x78] sm:$0xff] %vm78, 0.0
  %96 = vst.msk [vmem:[#allocation2 + $0x80] sm:$0xff] %vm78, 0.0
  %97 = vst.msk [vmem:[#allocation2 + $0x88] sm:$0x3] %vm81, 0.0
  %98 = vst.msk [vmem:[#allocation2 + $0x90] sm:$0xff] %vm78, 0.0
  %99 = vst.msk [vmem:[#allocation2 + $0x98] sm:$0xff] %vm78, 0.0
  %100 = vst.msk [vmem:[#allocation2 + $0xa0] sm:$0x3] %vm81, 0.0
  %101 = vst.msk [vmem:[#allocation2 + $0xa8] sm:$0xff] %vm78, 0.0
  %102 = vst.msk [vmem:[#allocation2 + $0xb0] sm:$0xff] %vm78, 0.0
  %103 = vst.msk [vmem:[#allocation2 + $0xb8] sm:$0x3] %vm81, 0.0
  %104 = vst.msk [vmem:[#allocation2 + $0xc0] sm:$0xff] %vm78, 0.0
  %105 = vst.msk [vmem:[#allocation2 + $0xc8] sm:$0xff] %vm78, 0.0
  %106 = vst.msk [vmem:[#allocation2 + $0xd0] sm:$0x3] %vm81, 0.0
  %107 = vst.msk [vmem:[#allocation2 + $0xd8] sm:$0xff] %vm78, 0.0
  %108 = vst.msk [vmem:[#allocation2 + $0xe0] sm:$0xff] %vm78, 0.0
  %109 = vst.msk [vmem:[#allocation2 + $0xe8] sm:$0x3] %vm81, 0.0
  %110 = vst.msk [vmem:[#allocation2 + $0xf0] sm:$0xff] %vm78, 0.0
  %111 = vst.msk [vmem:[#allocation2 + $0xf8] sm:$0xff] %vm78, 0.0
  %112 = vst.msk [vmem:[#allocation2 + $0x100] sm:$0x3] %vm81, 0.0
  %113 = vst.msk [vmem:[#allocation2 + $0x108] sm:$0xff] %vm78, 0.0
  %114 = vst.msk [vmem:[#allocation2 + $0x110] sm:$0xff] %vm78, 0.0
  %115 = vst.msk [vmem:[#allocation2 + $0x118] sm:$0x3] %vm81, 0.0
  %116 = vst.msk [vmem:[#allocation2 + $0x120] sm:$0xff] %vm78, 0.0
  %117 = vst.msk [vmem:[#allocation2 + $0x128] sm:$0xff] %vm78, 0.0
  %118 = vst.msk [vmem:[#allocation2 + $0x130] sm:$0x3] %vm81, 0.0
  %119 = vst.msk [vmem:[#allocation2 + $0x138] sm:$0xff] %vm78, 0.0
  %120 = vst.msk [vmem:[#allocation2 + $0x140] sm:$0xff] %vm78, 0.0
  %121 = vst.msk [vmem:[#allocation2 + $0x148] sm:$0x3] %vm81, 0.0
  %122 = vst.msk [vmem:[#allocation2 + $0x150] sm:$0xff] %vm78, 0.0
  %123 = vst.msk [vmem:[#allocation2 + $0x158] sm:$0xff] %vm78, 0.0
  %124 = vst.msk [vmem:[#allocation2 + $0x160] sm:$0x3] %vm81, 0.0
  %125 = vst.msk [vmem:[#allocation2 + $0x168] sm:$0xff] %vm78, 0.0
  %126 = vst.msk [vmem:[#allocation2 + $0x170] sm:$0xff] %vm78, 0.0
  %127 = vst.msk [vmem:[#allocation2 + $0x178] sm:$0x3] %vm81, 0.0
  %128 = vst.msk [vmem:[#allocation2 + $0x180] sm:$0xff] %vm78, 0.0
  %129 = vst.msk [vmem:[#allocation2 + $0x188] sm:$0xff] %vm78, 0.0
  %130 = vst.msk [vmem:[#allocation2 + $0x190] sm:$0x3] %vm81, 0.0
  %131 = vst.msk [vmem:[#allocation2 + $0x198] sm:$0xff] %vm78, 0.0
  %132 = vst.msk [vmem:[#allocation2 + $0x1a0] sm:$0xff] %vm78, 0.0
  %133 = vst.msk [vmem:[#allocation2 + $0x1a8] sm:$0x3] %vm81, 0.0
  %134 = vst.msk [vmem:[#allocation2 + $0x1b0] sm:$0xff] %vm78, 0.0
  %135 = vst.msk [vmem:[#allocation2 + $0x1b8] sm:$0xff] %vm78, 0.0
  %136 = vst.msk [vmem:[#allocation2 + $0x1c0] sm:$0x3] %vm81, 0.0
  %137 = vst.msk [vmem:[#allocation2 + $0x1c8] sm:$0xff] %vm78, 0.0
  %138 = vst.msk [vmem:[#allocation2 + $0x1d0] sm:$0xff] %vm78, 0.0
  %139 = vst.msk [vmem:[#allocation2 + $0x1d8] sm:$0x3] %vm81, 0.0
  %140 = vst.msk [vmem:[#allocation2 + $0x1e0] sm:$0xff] %vm78, 0.0
  %141 = vst.msk [vmem:[#allocation2 + $0x1e8] sm:$0xff] %vm78, 0.0
  %142 = vst.msk [vmem:[#allocation2 + $0x1f0] sm:$0x3] %vm81, 0.0
  %143 = vst.msk [vmem:[#allocation2 + $0x1f8] sm:$0xff] %vm78, 0.0
  %144 = vst.msk [vmem:[#allocation2 + $0x200] sm:$0xff] %vm78, 0.0
  %145 = vst.msk [vmem:[#allocation2 + $0x208] sm:$0x3] %vm81, 0.0
  %146 = vst.msk [vmem:[#allocation2 + $0x210] sm:$0xff] %vm78, 0.0
  %147 = vst.msk [vmem:[#allocation2 + $0x218] sm:$0xff] %vm78, 0.0
  %148 = vst.msk [vmem:[#allocation2 + $0x220] sm:$0x3] %vm81, 0.0
  %149 = vst.msk [vmem:[#allocation2 + $0x228] sm:$0xff] %vm78, 0.0
  %150 = vst.msk [vmem:[#allocation2 + $0x230] sm:$0xff] %vm78, 0.0
  %151 = vst.msk [vmem:[#allocation2 + $0x238] sm:$0x3] %vm81, 0.0
  %152 = vst.msk [vmem:[#allocation2 + $0x240] sm:$0xff] %vm78, 0.0
  %153 = vst.msk [vmem:[#allocation2 + $0x248] sm:$0xff] %vm78, 0.0
  %154 = vst.msk [vmem:[#allocation2 + $0x250] sm:$0x3] %vm81, 0.0
  %155 = vst.msk [vmem:[#allocation2 + $0x258] sm:$0xff] %vm78, 0.0
  %156 = vst.msk [vmem:[#allocation2 + $0x260] sm:$0xff] %vm78, 0.0
  %157 = vst.msk [vmem:[#allocation2 + $0x268] sm:$0x3] %vm81, 0.0
  %158 = vst.msk [vmem:[#allocation2 + $0x270] sm:$0xff] %vm78, 0.0
  %159 = vst.msk [vmem:[#allocation2 + $0x278] sm:$0xff] %vm78, 0.0
  %160 = vst.msk [vmem:[#allocation2 + $0x280] sm:$0x3] %vm81, 0.0
  %161 = vst.msk [vmem:[#allocation2 + $0x288] sm:$0xff] %vm78, 0.0
  %162 = vst.msk [vmem:[#allocation2 + $0x290] sm:$0xff] %vm78, 0.0
  %163 = vst.msk [vmem:[#allocation2 + $0x298] sm:$0x3] %vm81, 0.0
  %164 = vst.msk [vmem:[#allocation2 + $0x2a0] sm:$0xff] %vm78, 0.0
  %165 = vst.msk [vmem:[#allocation2 + $0x2a8] sm:$0xff] %vm78, 0.0
  %166 = vst.msk [vmem:[#allocation2 + $0x2b0] sm:$0x3] %vm81, 0.0
  %167 = vst.msk [vmem:[#allocation2 + $0x2b8] sm:$0xff] %vm78, 0.0
  %168 = vst.msk [vmem:[#allocation2 + $0x2c0] sm:$0xff] %vm78, 0.0
  %169 = vst.msk [vmem:[#allocation2 + $0x2c8] sm:$0x3] %vm81, 0.0
  %170 = vst.msk [vmem:[#allocation2 + $0x2d0] sm:$0xff] %vm78, 0.0
  %171 = vst.msk [vmem:[#allocation2 + $0x2d8] sm:$0xff] %vm78, 0.0
  %172 = vst.msk [vmem:[#allocation2 + $0x2e0] sm:$0x3] %vm81, 0.0
  %173 = vst.msk [vmem:[#allocation2 + $0x2e8] sm:$0xff] %vm78, 0.0
  %174 = vst.msk [vmem:[#allocation2 + $0x2f0] sm:$0xff] %vm78, 0.0
  %175 = vst.msk [vmem:[#allocation2 + $0x2f8] sm:$0x3] %vm81, 0.0
  %176 = vst.msk [vmem:[#allocation2 + $0x300] sm:$0xff] %vm78, 0.0
  %177 = vst.msk [vmem:[#allocation2 + $0x308] sm:$0xff] %vm78, 0.0
  %178 = vst.msk [vmem:[#allocation2 + $0x310] sm:$0x3] %vm81, 0.0
  %179 = vst.msk [vmem:[#allocation2 + $0x318] sm:$0xff] %vm78, 0.0
  %180 = vst.msk [vmem:[#allocation2 + $0x320] sm:$0xff] %vm78, 0.0
  %181 = vst.msk [vmem:[#allocation2 + $0x328] sm:$0x3] %vm81, 0.0
  %182 = vst.msk [vmem:[#allocation2 + $0x330] sm:$0xff] %vm78, 0.0
  %183 = vst.msk [vmem:[#allocation2 + $0x338] sm:$0xff] %vm78, 0.0
  %184 = vst.msk [vmem:[#allocation2 + $0x340] sm:$0x3] %vm81, 0.0
  %185 = vst.msk [vmem:[#allocation2 + $0x348] sm:$0xff] %vm78, 0.0
  %186 = vst.msk [vmem:[#allocation2 + $0x350] sm:$0xff] %vm78, 0.0
  %187 = vst.msk [vmem:[#allocation2 + $0x358] sm:$0x3] %vm81, 0.0
  %s188 = scalar_lea.vmem [#allocation2], 24
  %189 = vst.msk [vmem:[%s188 + $0x1] sm:$0xff] %vm78, %v14
  %190 = vst.msk [vmem:[%s188 + $0x9] sm:$0xff] %vm78, %v15
  %191 = vst.msk [vmem:[%s188 + $0x19] sm:$0xff] %vm78, %v16
  %192 = vst.msk [vmem:[%s188 + $0x21] sm:$0xff] %vm78, %v17
  %193 = vst.msk [vmem:[%s188 + $0x31] sm:$0xff] %vm78, %v18
  %194 = vst.msk [vmem:[%s188 + $0x39] sm:$0xff] %vm78, %v19
  %195 = vst.msk [vmem:[%s188 + $0x49] sm:$0xff] %vm78, %v20
  %196 = vst.msk [vmem:[%s188 + $0x51] sm:$0xff] %vm78, %v21
  %197 = vst.msk [vmem:[%s188 + $0x61] sm:$0xff] %vm78, %v22
  %198 = vst.msk [vmem:[%s188 + $0x69] sm:$0xff] %vm78, %v23
  %199 = vst.msk [vmem:[%s188 + $0x79] sm:$0xff] %vm78, %v24
  %200 = vst.msk [vmem:[%s188 + $0x81] sm:$0xff] %vm78, %v25
  %201 = vst.msk [vmem:[%s188 + $0x91] sm:$0xff] %vm78, %v26
  %202 = vst.msk [vmem:[%s188 + $0x99] sm:$0xff] %vm78, %v27
  %203 = vst.msk [vmem:[%s188 + $0xa9] sm:$0xff] %vm78, %v28
  %204 = vst.msk [vmem:[%s188 + $0xb1] sm:$0xff] %vm78, %v29
  %205 = vst.msk [vmem:[%s188 + $0xc1] sm:$0xff] %vm78, %v30
  %206 = vst.msk [vmem:[%s188 + $0xc9] sm:$0xff] %vm78, %v31
  %207 = vst.msk [vmem:[%s188 + $0xd9] sm:$0xff] %vm78, %v32
  %208 = vst.msk [vmem:[%s188 + $0xe1] sm:$0xff] %vm78, %v33
  %209 = vst.msk [vmem:[%s188 + $0xf1] sm:$0xff] %vm78, %v34
  %210 = vst.msk [vmem:[%s188 + $0xf9] sm:$0xff] %vm78, %v35
  %211 = vst.msk [vmem:[%s188 + $0x109] sm:$0xff] %vm78, %v36
  %212 = vst.msk [vmem:[%s188 + $0x111] sm:$0xff] %vm78, %v37
  %213 = vst.msk [vmem:[%s188 + $0x121] sm:$0xff] %vm78, %v38
  %214 = vst.msk [vmem:[%s188 + $0x129] sm:$0xff] %vm78, %v39
  %215 = vst.msk [vmem:[%s188 + $0x139] sm:$0xff] %vm78, %v40
  %216 = vst.msk [vmem:[%s188 + $0x141] sm:$0xff] %vm78, %v41
  %217 = vst.msk [vmem:[%s188 + $0x151] sm:$0xff] %vm78, %v42
  %218 = vst.msk [vmem:[%s188 + $0x159] sm:$0xff] %vm78, %v43
  %219 = vst.msk [vmem:[%s188 + $0x169] sm:$0xff] %vm78, %v44
  %220 = vst.msk [vmem:[%s188 + $0x171] sm:$0xff] %vm78, %v45
  %221 = vst.msk [vmem:[%s188 + $0x1b1] sm:$0xff] %vm78, %v46
  %222 = vst.msk [vmem:[%s188 + $0x1b9] sm:$0xff] %vm78, %v47
  %223 = vst.msk [vmem:[%s188 + $0x1c9] sm:$0xff] %vm78, %v48
  %224 = vst.msk [vmem:[%s188 + $0x1d1] sm:$0xff] %vm78, %v49
  %225 = vst.msk [vmem:[%s188 + $0x1e1] sm:$0xff] %vm78, %v50
  %226 = vst.msk [vmem:[%s188 + $0x1e9] sm:$0xff] %vm78, %v51
  %227 = vst.msk [vmem:[%s188 + $0x1f9] sm:$0xff] %vm78, %v52
  %228 = vst.msk [vmem:[%s188 + $0x201] sm:$0xff] %vm78, %v53
  %229 = vst.msk [vmem:[%s188 + $0x211] sm:$0xff] %vm78, %v54
  %230 = vst.msk [vmem:[%s188 + $0x219] sm:$0xff] %vm78, %v55
  %231 = vst.msk [vmem:[%s188 + $0x229] sm:$0xff] %vm78, %v56
  %232 = vst.msk [vmem:[%s188 + $0x231] sm:$0xff] %vm78, %v57
  %233 = vst.msk [vmem:[%s188 + $0x241] sm:$0xff] %vm78, %v58
  %234 = vst.msk [vmem:[%s188 + $0x249] sm:$0xff] %vm78, %v59
  %235 = vst.msk [vmem:[%s188 + $0x259] sm:$0xff] %vm78, %v60
  %236 = vst.msk [vmem:[%s188 + $0x261] sm:$0xff] %vm78, %v61
  %237 = vst.msk [vmem:[%s188 + $0x271] sm:$0xff] %vm78, %v62
  %238 = vst.msk [vmem:[%s188 + $0x279] sm:$0xff] %vm78, %v63
  %239 = vst.msk [vmem:[%s188 + $0x289] sm:$0xff] %vm78, %v64
  %240 = vst.msk [vmem:[%s188 + $0x291] sm:$0xff] %vm78, %v65
  %241 = vst.msk [vmem:[%s188 + $0x2a1] sm:$0xff] %vm78, %v66
  %242 = vst.msk [vmem:[%s188 + $0x2a9] sm:$0xff] %vm78, %v67
  %243 = vst.msk [vmem:[%s188 + $0x2b9] sm:$0xff] %vm78, %v68
  %244 = vst.msk [vmem:[%s188 + $0x2c1] sm:$0xff] %vm78, %v69
  %245 = vst.msk [vmem:[%s188 + $0x2d1] sm:$0xff] %vm78, %v70
  %246 = vst.msk [vmem:[%s188 + $0x2d9] sm:$0xff] %vm78, %v71
  %247 = vst.msk [vmem:[%s188 + $0x2e9] sm:$0xff] %vm78, %v72
  %248 = vst.msk [vmem:[%s188 + $0x2f1] sm:$0xff] %vm78, %v73
  %249 = vst.msk [vmem:[%s188 + $0x301] sm:$0xff] %vm78, %v74
  %250 = vst.msk [vmem:[%s188 + $0x309] sm:$0xff] %vm78, %v75
  %251 = vst.msk [vmem:[%s188 + $0x319] sm:$0xff] %vm78, %v76
  %252 = vst.msk [vmem:[%s188 + $0x321] sm:$0xff] %vm78, %v77
  %v253 = vld [vmem:[#allocation2] sm:$0xff]
  %v254 = vld [vmem:[#allocation2 + $0x8] sm:$0xff]
  %v255 = vld [vmem:[#allocation2 + $0x18] sm:$0xff]
  %v256 = vld [vmem:[#allocation2 + $0x20] sm:$0xff]
  %v257 = vld [vmem:[#allocation2 + $0x30] sm:$0xff]
  %v258 = vld [vmem:[#allocation2 + $0x38] sm:$0xff]
  %v259 = vld [vmem:[#allocation2 + $0x48] sm:$0xff]
  %v260 = vld [vmem:[#allocation2 + $0x50] sm:$0xff]
  %v261 = vld [vmem:[#allocation2 + $0x60] sm:$0xff]
  %v262 = vld [vmem:[#allocation2 + $0x68] sm:$0xff]
  %v263 = vld [vmem:[#allocation2 + $0x78] sm:$0xff]
  %v264 = vld [vmem:[#allocation2 + $0x80] sm:$0xff]
  %v265 = vld [vmem:[#allocation2 + $0x90] sm:$0xff]
  %v266 = vld [vmem:[#allocation2 + $0x98] sm:$0xff]
  %v267 = vld [vmem:[#allocation2 + $0xa8] sm:$0xff]
  %v268 = vld [vmem:[#allocation2 + $0xb0] sm:$0xff]
  %v269 = vld [vmem:[#allocation2 + $0xc0] sm:$0xff]
  %v270 = vld [vmem:[#allocation2 + $0xc8] sm:$0xff]
  %v271 = vld [vmem:[#allocation2 + $0xd8] sm:$0xff]
  %v272 = vld [vmem:[#allocation2 + $0xe0] sm:$0xff]
  %v273 = vld [vmem:[#allocation2 + $0xf0] sm:$0xff]
  %v274 = vld [vmem:[#allocation2 + $0xf8] sm:$0xff]
  %v275 = vld [vmem:[#allocation2 + $0x108] sm:$0xff]
  %v276 = vld [vmem:[#allocation2 + $0x110] sm:$0xff]
  %v277 = vld [vmem:[#allocation2 + $0x120] sm:$0xff]
  %v278 = vld [vmem:[#allocation2 + $0x128] sm:$0xff]
  %v279 = vld [vmem:[#allocation2 + $0x138] sm:$0xff]
  %v280 = vld [vmem:[#allocation2 + $0x140] sm:$0xff]
  %v281 = vld [vmem:[#allocation2 + $0x150] sm:$0xff]
  %v282 = vld [vmem:[#allocation2 + $0x158] sm:$0xff]
  %v283 = vld [vmem:[#allocation2 + $0x168] sm:$0xff]
  %v284 = vld [vmem:[#allocation2 + $0x170] sm:$0xff]
  %v285 = vld [vmem:[#allocation2 + $0x1b0] sm:$0xff]
  %v286 = vld [vmem:[#allocation2 + $0x1b8] sm:$0xff]
  %v287 = vld [vmem:[#allocation2 + $0x1c8] sm:$0xff]
  %v288 = vld [vmem:[#allocation2 + $0x1d0] sm:$0xff]
  %v289 = vld [vmem:[#allocation2 + $0x1e0] sm:$0xff]
  %v290 = vld [vmem:[#allocation2 + $0x1e8] sm:$0xff]
  %v291 = vld [vmem:[#allocation2 + $0x1f8] sm:$0xff]
  %v292 = vld [vmem:[#allocation2 + $0x200] sm:$0xff]
  %v293 = vld [vmem:[#allocation2 + $0x210] sm:$0xff]
  %v294 = vld [vmem:[#allocation2 + $0x218] sm:$0xff]
  %v295 = vld [vmem:[#allocation2 + $0x228] sm:$0xff]
  %v296 = vld [vmem:[#allocation2 + $0x230] sm:$0xff]
  %v297 = vld [vmem:[#allocation2 + $0x240] sm:$0xff]
  %v298 = vld [vmem:[#allocation2 + $0x248] sm:$0xff]
  %v299 = vld [vmem:[#allocation2 + $0x258] sm:$0xff]
  %v300 = vld [vmem:[#allocation2 + $0x260] sm:$0xff]
  %v301 = vld [vmem:[#allocation2 + $0x270] sm:$0xff]
  %v302 = vld [vmem:[#allocation2 + $0x278] sm:$0xff]
  %v303 = vld [vmem:[#allocation2 + $0x288] sm:$0xff]
  %v304 = vld [vmem:[#allocation2 + $0x290] sm:$0xff]
  %v305 = vld [vmem:[#allocation2 + $0x2a0] sm:$0xff]
  %v306 = vld [vmem:[#allocation2 + $0x2a8] sm:$0xff]
  %v307 = vld [vmem:[#allocation2 + $0x2b8] sm:$0xff]
  %v308 = vld [vmem:[#allocation2 + $0x2c0] sm:$0xff]
  %v309 = vld [vmem:[#allocation2 + $0x2d0] sm:$0xff]
  %v310 = vld [vmem:[#allocation2 + $0x2d8] sm:$0xff]
  %v311 = vld [vmem:[#allocation2 + $0x2e8] sm:$0xff]
  %v312 = vld [vmem:[#allocation2 + $0x2f0] sm:$0xff]
  %v313 = vld [vmem:[#allocation2 + $0x300] sm:$0xff]
  %v314 = vld [vmem:[#allocation2 + $0x308] sm:$0xff]
  %v315 = vld [vmem:[#allocation2 + $0x318] sm:$0xff]
  %v316 = vld [vmem:[#allocation2 + $0x320] sm:$0xff]
  %v317 = vld [vmem:[#allocation2 + $0x1] sm:$0xff]
  %v318 = vld [vmem:[#allocation2 + $0x9] sm:$0xff]
  %v319 = vld [vmem:[#allocation2 + $0x19] sm:$0xff]
  %v320 = vld [vmem:[#allocation2 + $0x21] sm:$0xff]
  %v321 = vld [vmem:[#allocation2 + $0x31] sm:$0xff]
  %v322 = vld [vmem:[#allocation2 + $0x39] sm:$0xff]
  %v323 = vld [vmem:[#allocation2 + $0x49] sm:$0xff]
  %v324 = vld [vmem:[#allocation2 + $0x51] sm:$0xff]
  %v325 = vld [vmem:[#allocation2 + $0x61] sm:$0xff]
  %v326 = vld [vmem:[#allocation2 + $0x69] sm:$0xff]
  %v327 = vld [vmem:[#allocation2 + $0x79] sm:$0xff]
  %v328 = vld [vmem:[#allocation2 + $0x81] sm:$0xff]
  %v329 = vld [vmem:[#allocation2 + $0x91] sm:$0xff]
  %v330 = vld [vmem:[#allocation2 + $0x99] sm:$0xff]
  %v331 = vld [vmem:[#allocation2 + $0xa9] sm:$0xff]
  %v332 = vld [vmem:[#allocation2 + $0xb1] sm:$0xff]
  %v333 = vld [vmem:[#allocation2 + $0xc1] sm:$0xff]
  %v334 = vld [vmem:[#allocation2 + $0xc9] sm:$0xff]
  %v335 = vld [vmem:[#allocation2 + $0xd9] sm:$0xff]
  %v336 = vld [vmem:[#allocation2 + $0xe1] sm:$0xff]
  %v337 = vld [vmem:[#allocation2 + $0xf1] sm:$0xff]
  %v338 = vld [vmem:[#allocation2 + $0xf9] sm:$0xff]
  %v339 = vld [vmem:[#allocation2 + $0x109] sm:$0xff]
  %v340 = vld [vmem:[#allocation2 + $0x111] sm:$0xff]
  %v341 = vld [vmem:[#allocation2 + $0x121] sm:$0xff]
  %v342 = vld [vmem:[#allocation2 + $0x129] sm:$0xff]
  %v343 = vld [vmem:[#allocation2 + $0x139] sm:$0xff]
  %v344 = vld [vmem:[#allocation2 + $0x141] sm:$0xff]
  %v345 = vld [vmem:[#allocation2 + $0x151] sm:$0xff]
  %v346 = vld [vmem:[#allocation2 + $0x159] sm:$0xff]
  %v347 = vld [vmem:[#allocation2 + $0x169] sm:$0xff]
  %v348 = vld [vmem:[#allocation2 + $0x171] sm:$0xff]
  %v349 = vld [vmem:[#allocation2 + $0x1b1] sm:$0xff]
  %v350 = vld [vmem:[#allocation2 + $0x1b9] sm:$0xff]
  %v351 = vld [vmem:[#allocation2 + $0x1c9] sm:$0xff]
  %v352 = vld [vmem:[#allocation2 + $0x1d1] sm:$0xff]
  %v353 = vld [vmem:[#allocation2 + $0x1e1] sm:$0xff]
  %v354 = vld [vmem:[#allocation2 + $0x1e9] sm:$0xff]
  %v355 = vld [vmem:[#allocation2 + $0x1f9] sm:$0xff]
  %v356 = vld [vmem:[#allocation2 + $0x201] sm:$0xff]
  %v357 = vld [vmem:[#allocation2 + $0x211] sm:$0xff]
  %v358 = vld [vmem:[#allocation2 + $0x219] sm:$0xff]
  %v359 = vld [vmem:[#allocation2 + $0x229] sm:$0xff]
  %v360 = vld [vmem:[#allocation2 + $0x231] sm:$0xff]
  %v361 = vld [vmem:[#allocation2 + $0x241] sm:$0xff]
  %v362 = vld [vmem:[#allocation2 + $0x249] sm:$0xff]
  %v363 = vld [vmem:[#allocation2 + $0x259] sm:$0xff]
  %v364 = vld [vmem:[#allocation2 + $0x261] sm:$0xff]
  %v365 = vld [vmem:[#allocation2 + $0x271] sm:$0xff]
  %v366 = vld [vmem:[#allocation2 + $0x279] sm:$0xff]
  %v367 = vld [vmem:[#allocation2 + $0x289] sm:$0xff]
  %v368 = vld [vmem:[#allocation2 + $0x291] sm:$0xff]
  %v369 = vld [vmem:[#allocation2 + $0x2a1] sm:$0xff]
  %v370 = vld [vmem:[#allocation2 + $0x2a9] sm:$0xff]
  %v371 = vld [vmem:[#allocation2 + $0x2b9] sm:$0xff]
  %v372 = vld [vmem:[#allocation2 + $0x2c1] sm:$0xff]
  %v373 = vld [vmem:[#allocation2 + $0x2d1] sm:$0xff]
  %v374 = vld [vmem:[#allocation2 + $0x2d9] sm:$0xff]
  %v375 = vld [vmem:[#allocation2 + $0x2e9] sm:$0xff]
  %v376 = vld [vmem:[#allocation2 + $0x2f1] sm:$0xff]
  %v377 = vld [vmem:[#allocation2 + $0x301] sm:$0xff]
  %v378 = vld [vmem:[#allocation2 + $0x309] sm:$0xff]
  %v379 = vld [vmem:[#allocation2 + $0x319] sm:$0xff]
  %v380 = vld [vmem:[#allocation2 + $0x321] sm:$0xff]
  %v381 = vld [vmem:[#allocation2 + $0x2] sm:$0xff]
  %v382 = vld [vmem:[#allocation2 + $0xa] sm:$0xff]
  %v383 = vld [vmem:[#allocation2 + $0x1a] sm:$0xff]
  %v384 = vld [vmem:[#allocation2 + $0x22] sm:$0xff]
  %v385 = vld [vmem:[#allocation2 + $0x32] sm:$0xff]
  %v386 = vld [vmem:[#allocation2 + $0x3a] sm:$0xff]
  %v387 = vld [vmem:[#allocation2 + $0x4a] sm:$0xff]
  %v388 = vld [vmem:[#allocation2 + $0x52] sm:$0xff]
  %v389 = vld [vmem:[#allocation2 + $0x62] sm:$0xff]
  %v390 = vld [vmem:[#allocation2 + $0x6a] sm:$0xff]
  %v391 = vld [vmem:[#allocation2 + $0x7a] sm:$0xff]
  %v392 = vld [vmem:[#allocation2 + $0x82] sm:$0xff]
  %v393 = vld [vmem:[#allocation2 + $0x92] sm:$0xff]
  %v394 = vld [vmem:[#allocation2 + $0x9a] sm:$0xff]
  %v395 = vld [vmem:[#allocation2 + $0xaa] sm:$0xff]
  %v396 = vld [vmem:[#allocation2 + $0xb2] sm:$0xff]
  %v397 = vld [vmem:[#allocation2 + $0xc2] sm:$0xff]
  %v398 = vld [vmem:[#allocation2 + $0xca] sm:$0xff]
  %v399 = vld [vmem:[#allocation2 + $0xda] sm:$0xff]
  %v400 = vld [vmem:[#allocation2 + $0xe2] sm:$0xff]
  %v401 = vld [vmem:[#allocation2 + $0xf2] sm:$0xff]
  %v402 = vld [vmem:[#allocation2 + $0xfa] sm:$0xff]
  %v403 = vld [vmem:[#allocation2 + $0x10a] sm:$0xff]
  %v404 = vld [vmem:[#allocation2 + $0x112] sm:$0xff]
  %v405 = vld [vmem:[#allocation2 + $0x122] sm:$0xff]
  %v406 = vld [vmem:[#allocation2 + $0x12a] sm:$0xff]
  %v407 = vld [vmem:[#allocation2 + $0x13a] sm:$0xff]
  %v408 = vld [vmem:[#allocation2 + $0x142] sm:$0xff]
  %v409 = vld [vmem:[#allocation2 + $0x152] sm:$0xff]
  %v410 = vld [vmem:[#allocation2 + $0x15a] sm:$0xff]
  %v411 = vld [vmem:[#allocation2 + $0x16a] sm:$0xff]
  %v412 = vld [vmem:[#allocation2 + $0x172] sm:$0xff]
  %v413 = vld [vmem:[#allocation2 + $0x1b2] sm:$0xff]
  %v414 = vld [vmem:[#allocation2 + $0x1ba] sm:$0xff]
  %v415 = vld [vmem:[#allocation2 + $0x1ca] sm:$0xff]
  %v416 = vld [vmem:[#allocation2 + $0x1d2] sm:$0xff]
  %v417 = vld [vmem:[#allocation2 + $0x1e2] sm:$0xff]
  %v418 = vld [vmem:[#allocation2 + $0x1ea] sm:$0xff]
  %v419 = vld [vmem:[#allocation2 + $0x1fa] sm:$0xff]
  %v420 = vld [vmem:[#allocation2 + $0x202] sm:$0xff]
  %v421 = vld [vmem:[#allocation2 + $0x212] sm:$0xff]
  %v422 = vld [vmem:[#allocation2 + $0x21a] sm:$0xff]
  %v423 = vld [vmem:[#allocation2 + $0x22a] sm:$0xff]
  %v424 = vld [vmem:[#allocation2 + $0x232] sm:$0xff]
  %v425 = vld [vmem:[#allocation2 + $0x242] sm:$0xff]
  %v426 = vld [vmem:[#allocation2 + $0x24a] sm:$0xff]
  %v427 = vld [vmem:[#allocation2 + $0x25a] sm:$0xff]
  %v428 = vld [vmem:[#allocation2 + $0x262] sm:$0xff]
  %v429 = vld [vmem:[#allocation2 + $0x272] sm:$0xff]
  %v430 = vld [vmem:[#allocation2 + $0x27a] sm:$0xff]
  %v431 = vld [vmem:[#allocation2 + $0x28a] sm:$0xff]
  %v432 = vld [vmem:[#allocation2 + $0x292] sm:$0xff]
  %v433 = vld [vmem:[#allocation2 + $0x2a2] sm:$0xff]
  %v434 = vld [vmem:[#allocation2 + $0x2aa] sm:$0xff]
  %v435 = vld [vmem:[#allocation2 + $0x2ba] sm:$0xff]
  %v436 = vld [vmem:[#allocation2 + $0x2c2] sm:$0xff]
  %v437 = vld [vmem:[#allocation2 + $0x2d2] sm:$0xff]
  %v438 = vld [vmem:[#allocation2 + $0x2da] sm:$0xff]
  %v439 = vld [vmem:[#allocation2 + $0x2ea] sm:$0xff]
  %v440 = vld [vmem:[#allocation2 + $0x2f2] sm:$0xff]
  %v441 = vld [vmem:[#allocation2 + $0x302] sm:$0xff]
  %v442 = vld [vmem:[#allocation2 + $0x30a] sm:$0xff]
  %v443 = vld [vmem:[#allocation2 + $0x31a] sm:$0xff]
  %v444 = vld [vmem:[#allocation2 + $0x322] sm:$0xff]
  %v445 = vld [vmem:[%s188] sm:$0xff]
  %v446 = vld [vmem:[%s188 + $0x8] sm:$0xff]
  %v447 = vld [vmem:[%s188 + $0x18] sm:$0xff]
  %v448 = vld [vmem:[%s188 + $0x20] sm:$0xff]
  %v449 = vld [vmem:[%s188 + $0x30] sm:$0xff]
  %v450 = vld [vmem:[%s188 + $0x38] sm:$0xff]
  %v451 = vld [vmem:[%s188 + $0x48] sm:$0xff]
  %v452 = vld [vmem:[%s188 + $0x50] sm:$0xff]
  %v453 = vld [vmem:[%s188 + $0x60] sm:$0xff]
  %v454 = vld [vmem:[%s188 + $0x68] sm:$0xff]
  %v455 = vld [vmem:[%s188 + $0x78] sm:$0xff]
  %v456 = vld [vmem:[%s188 + $0x80] sm:$0xff]
  %v457 = vld [vmem:[%s188 + $0x90] sm:$0xff]
  %v458 = vld [vmem:[%s188 + $0x98] sm:$0xff]
  %v459 = vld [vmem:[%s188 + $0xa8] sm:$0xff]
  %v460 = vld [vmem:[%s188 + $0xb0] sm:$0xff]
  %v461 = vld [vmem:[%s188 + $0xc0] sm:$0xff]
  %v462 = vld [vmem:[%s188 + $0xc8] sm:$0xff]
  %v463 = vld [vmem:[%s188 + $0xd8] sm:$0xff]
  %v464 = vld [vmem:[%s188 + $0xe0] sm:$0xff]
  %v465 = vld [vmem:[%s188 + $0xf0] sm:$0xff]
  %v466 = vld [vmem:[%s188 + $0xf8] sm:$0xff]
  %v467 = vld [vmem:[%s188 + $0x108] sm:$0xff]
  %v468 = vld [vmem:[%s188 + $0x110] sm:$0xff]
  %v469 = vld [vmem:[%s188 + $0x120] sm:$0xff]
  %v470 = vld [vmem:[%s188 + $0x128] sm:$0xff]
  %v471 = vld [vmem:[%s188 + $0x138] sm:$0xff]
  %v472 = vld [vmem:[%s188 + $0x140] sm:$0xff]
  %v473 = vld [vmem:[%s188 + $0x150] sm:$0xff]
  %v474 = vld [vmem:[%s188 + $0x158] sm:$0xff]
  %v475 = vld [vmem:[%s188 + $0x168] sm:$0xff]
  %v476 = vld [vmem:[%s188 + $0x170] sm:$0xff]
  %v477 = vld [vmem:[%s188 + $0x1b0] sm:$0xff]
  %v478 = vld [vmem:[%s188 + $0x1b8] sm:$0xff]
  %v479 = vld [vmem:[%s188 + $0x1c8] sm:$0xff]
  %v480 = vld [vmem:[%s188 + $0x1d0] sm:$0xff]
  %v481 = vld [vmem:[%s188 + $0x1e0] sm:$0xff]
  %v482 = vld [vmem:[%s188 + $0x1e8] sm:$0xff]
  %v483 = vld [vmem:[%s188 + $0x1f8] sm:$0xff]
  %v484 = vld [vmem:[%s188 + $0x200] sm:$0xff]
  %v485 = vld [vmem:[%s188 + $0x210] sm:$0xff]
  %v486 = vld [vmem:[%s188 + $0x218] sm:$0xff]
  %v487 = vld [vmem:[%s188 + $0x228] sm:$0xff]
  %v488 = vld [vmem:[%s188 + $0x230] sm:$0xff]
  %v489 = vld [vmem:[%s188 + $0x240] sm:$0xff]
  %v490 = vld [vmem:[%s188 + $0x248] sm:$0xff]
  %v491 = vld [vmem:[%s188 + $0x258] sm:$0xff]
  %v492 = vld [vmem:[%s188 + $0x260] sm:$0xff]
  %v493 = vld [vmem:[%s188 + $0x270] sm:$0xff]
  %v494 = vld [vmem:[%s188 + $0x278] sm:$0xff]
  %v495 = vld [vmem:[%s188 + $0x288] sm:$0xff]
  %v496 = vld [vmem:[%s188 + $0x290] sm:$0xff]
  %v497 = vld [vmem:[%s188 + $0x2a0] sm:$0xff]
  %v498 = vld [vmem:[%s188 + $0x2a8] sm:$0xff]
  %v499 = vld [vmem:[%s188 + $0x2b8] sm:$0xff]
  %v500 = vld [vmem:[%s188 + $0x2c0] sm:$0xff]
  %v501 = vld [vmem:[%s188 + $0x2d0] sm:$0xff]
  %v502 = vld [vmem:[%s188 + $0x2d8] sm:$0xff]
  %v503 = vld [vmem:[%s188 + $0x2e8] sm:$0xff]
  %v504 = vld [vmem:[%s188 + $0x2f0] sm:$0xff]
  %v505 = vld [vmem:[%s188 + $0x300] sm:$0xff]
  %v506 = vld [vmem:[%s188 + $0x308] sm:$0xff]
  %v507 = vld [vmem:[%s188 + $0x318] sm:$0xff]
  %v508 = vld [vmem:[%s188 + $0x320] sm:$0xff]
  %v509 = vld [vmem:[%s188 + $0x1] sm:$0xff]
  %v510 = vld [vmem:[%s188 + $0x9] sm:$0xff]
  %v511 = vld [vmem:[%s188 + $0x19] sm:$0xff]
  %v512 = vld [vmem:[%s188 + $0x21] sm:$0xff]
  %v513 = vld [vmem:[%s188 + $0x31] sm:$0xff]
  %v514 = vld [vmem:[%s188 + $0x39] sm:$0xff]
  %v515 = vld [vmem:[%s188 + $0x49] sm:$0xff]
  %v516 = vld [vmem:[%s188 + $0x51] sm:$0xff]
  %v517 = vld [vmem:[%s188 + $0x61] sm:$0xff]
  %v518 = vld [vmem:[%s188 + $0x69] sm:$0xff]
  %v519 = vld [vmem:[%s188 + $0x79] sm:$0xff]
  %v520 = vld [vmem:[%s188 + $0x81] sm:$0xff]
  %v521 = vld [vmem:[%s188 + $0x91] sm:$0xff]
  %v522 = vld [vmem:[%s188 + $0x99] sm:$0xff]
  %v523 = vld [vmem:[%s188 + $0xa9] sm:$0xff]
  %v524 = vld [vmem:[%s188 + $0xb1] sm:$0xff]
  %v525 = vld [vmem:[%s188 + $0xc1] sm:$0xff]
  %v526 = vld [vmem:[%s188 + $0xc9] sm:$0xff]
  %v527 = vld [vmem:[%s188 + $0xd9] sm:$0xff]
  %v528 = vld [vmem:[%s188 + $0xe1] sm:$0xff]
  %v529 = vld [vmem:[%s188 + $0xf1] sm:$0xff]
  %v530 = vld [vmem:[%s188 + $0xf9] sm:$0xff]
  %v531 = vld [vmem:[%s188 + $0x109] sm:$0xff]
  %v532 = vld [vmem:[%s188 + $0x111] sm:$0xff]
  %v533 = vld [vmem:[%s188 + $0x121] sm:$0xff]
  %v534 = vld [vmem:[%s188 + $0x129] sm:$0xff]
  %v535 = vld [vmem:[%s188 + $0x139] sm:$0xff]
  %v536 = vld [vmem:[%s188 + $0x141] sm:$0xff]
  %v537 = vld [vmem:[%s188 + $0x151] sm:$0xff]
  %v538 = vld [vmem:[%s188 + $0x159] sm:$0xff]
  %v539 = vld [vmem:[%s188 + $0x169] sm:$0xff]
  %v540 = vld [vmem:[%s188 + $0x171] sm:$0xff]
  %v541 = vld [vmem:[%s188 + $0x1b1] sm:$0xff]
  %v542 = vld [vmem:[%s188 + $0x1b9] sm:$0xff]
  %v543 = vld [vmem:[%s188 + $0x1c9] sm:$0xff]
  %v544 = vld [vmem:[%s188 + $0x1d1] sm:$0xff]
  %v545 = vld [vmem:[%s188 + $0x1e1] sm:$0xff]
  %v546 = vld [vmem:[%s188 + $0x1e9] sm:$0xff]
  %v547 = vld [vmem:[%s188 + $0x1f9] sm:$0xff]
  %v548 = vld [vmem:[%s188 + $0x201] sm:$0xff]
  %v549 = vld [vmem:[%s188 + $0x211] sm:$0xff]
  %v550 = vld [vmem:[%s188 + $0x219] sm:$0xff]
  %v551 = vld [vmem:[%s188 + $0x229] sm:$0xff]
  %v552 = vld [vmem:[%s188 + $0x231] sm:$0xff]
  %v553 = vld [vmem:[%s188 + $0x241] sm:$0xff]
  %v554 = vld [vmem:[%s188 + $0x249] sm:$0xff]
  %v555 = vld [vmem:[%s188 + $0x259] sm:$0xff]
  %v556 = vld [vmem:[%s188 + $0x261] sm:$0xff]
  %v557 = vld [vmem:[%s188 + $0x271] sm:$0xff]
  %v558 = vld [vmem:[%s188 + $0x279] sm:$0xff]
  %v559 = vld [vmem:[%s188 + $0x289] sm:$0xff]
  %v560 = vld [vmem:[%s188 + $0x291] sm:$0xff]
  %v561 = vld [vmem:[%s188 + $0x2a1] sm:$0xff]
  %v562 = vld [vmem:[%s188 + $0x2a9] sm:$0xff]
  %v563 = vld [vmem:[%s188 + $0x2b9] sm:$0xff]
  %v564 = vld [vmem:[%s188 + $0x2c1] sm:$0xff]
  %v565 = vld [vmem:[%s188 + $0x2d1] sm:$0xff]
  %v566 = vld [vmem:[%s188 + $0x2d9] sm:$0xff]
  %v567 = vld [vmem:[%s188 + $0x2e9] sm:$0xff]
  %v568 = vld [vmem:[%s188 + $0x2f1] sm:$0xff]
  %v569 = vld [vmem:[%s188 + $0x301] sm:$0xff]
  %v570 = vld [vmem:[%s188 + $0x309] sm:$0xff]
  %v571 = vld [vmem:[%s188 + $0x319] sm:$0xff]
  %v572 = vld [vmem:[%s188 + $0x321] sm:$0xff]
  %v573 = vld [vmem:[%s188 + $0x2] sm:$0xff]
  %v574 = vld [vmem:[%s188 + $0xa] sm:$0xff]
  %v575 = vld [vmem:[%s188 + $0x1a] sm:$0xff]
  %v576 = vld [vmem:[%s188 + $0x22] sm:$0xff]
  %v577 = vld [vmem:[%s188 + $0x32] sm:$0xff]
  %v578 = vld [vmem:[%s188 + $0x3a] sm:$0xff]
  %v579 = vld [vmem:[%s188 + $0x4a] sm:$0xff]
  %v580 = vld [vmem:[%s188 + $0x52] sm:$0xff]
  %v581 = vld [vmem:[%s188 + $0x62] sm:$0xff]
  %v582 = vld [vmem:[%s188 + $0x6a] sm:$0xff]
  %v583 = vld [vmem:[%s188 + $0x7a] sm:$0xff]
  %v584 = vld [vmem:[%s188 + $0x82] sm:$0xff]
  %v585 = vld [vmem:[%s188 + $0x92] sm:$0xff]
  %v586 = vld [vmem:[%s188 + $0x9a] sm:$0xff]
  %v587 = vld [vmem:[%s188 + $0xaa] sm:$0xff]
  %v588 = vld [vmem:[%s188 + $0xb2] sm:$0xff]
  %v589 = vld [vmem:[%s188 + $0xc2] sm:$0xff]
  %v590 = vld [vmem:[%s188 + $0xca] sm:$0xff]
  %v591 = vld [vmem:[%s188 + $0xda] sm:$0xff]
  %v592 = vld [vmem:[%s188 + $0xe2] sm:$0xff]
  %v593 = vld [vmem:[%s188 + $0xf2] sm:$0xff]
  %v594 = vld [vmem:[%s188 + $0xfa] sm:$0xff]
  %v595 = vld [vmem:[%s188 + $0x10a] sm:$0xff]
  %v596 = vld [vmem:[%s188 + $0x112] sm:$0xff]
  %v597 = vld [vmem:[%s188 + $0x122] sm:$0xff]
  %v598 = vld [vmem:[%s188 + $0x12a] sm:$0xff]
  %v599 = vld [vmem:[%s188 + $0x13a] sm:$0xff]
  %v600 = vld [vmem:[%s188 + $0x142] sm:$0xff]
  %v601 = vld [vmem:[%s188 + $0x152] sm:$0xff]
  %v602 = vld [vmem:[%s188 + $0x15a] sm:$0xff]
  %v603 = vld [vmem:[%s188 + $0x16a] sm:$0xff]
  %v604 = vld [vmem:[%s188 + $0x172] sm:$0xff]
  %v605 = vld [vmem:[%s188 + $0x1b2] sm:$0xff]
  %v606 = vld [vmem:[%s188 + $0x1ba] sm:$0xff]
  %v607 = vld [vmem:[%s188 + $0x1ca] sm:$0xff]
  %v608 = vld [vmem:[%s188 + $0x1d2] sm:$0xff]
  %v609 = vld [vmem:[%s188 + $0x1e2] sm:$0xff]
  %v610 = vld [vmem:[%s188 + $0x1ea] sm:$0xff]
  %v611 = vld [vmem:[%s188 + $0x1fa] sm:$0xff]
  %v612 = vld [vmem:[%s188 + $0x202] sm:$0xff]
  %v613 = vld [vmem:[%s188 + $0x212] sm:$0xff]
  %v614 = vld [vmem:[%s188 + $0x21a] sm:$0xff]
  %v615 = vld [vmem:[%s188 + $0x22a] sm:$0xff]
  %v616 = vld [vmem:[%s188 + $0x232] sm:$0xff]
  %v617 = vld [vmem:[%s188 + $0x242] sm:$0xff]
  %v618 = vld [vmem:[%s188 + $0x24a] sm:$0xff]
  %v619 = vld [vmem:[%s188 + $0x25a] sm:$0xff]
  %v620 = vld [vmem:[%s188 + $0x262] sm:$0xff]
  %v621 = vld [vmem:[%s188 + $0x272] sm:$0xff]
  %v622 = vld [vmem:[%s188 + $0x27a] sm:$0xff]
  %v623 = vld [vmem:[%s188 + $0x28a] sm:$0xff]
  %v624 = vld [vmem:[%s188 + $0x292] sm:$0xff]
  %v625 = vld [vmem:[%s188 + $0x2a2] sm:$0xff]
  %v626 = vld [vmem:[%s188 + $0x2aa] sm:$0xff]
  %v627 = vld [vmem:[%s188 + $0x2ba] sm:$0xff]
  %v628 = vld [vmem:[%s188 + $0x2c2] sm:$0xff]
  %v629 = vld [vmem:[%s188 + $0x2d2] sm:$0xff]
  %v630 = vld [vmem:[%s188 + $0x2da] sm:$0xff]
  %v631 = vld [vmem:[%s188 + $0x2ea] sm:$0xff]
  %v632 = vld [vmem:[%s188 + $0x2f2] sm:$0xff]
  %v633 = vld [vmem:[%s188 + $0x302] sm:$0xff]
  %v634 = vld [vmem:[%s188 + $0x30a] sm:$0xff]
  %v635 = vld [vmem:[%s188 + $0x31a] sm:$0xff]
  %v636 = vld [vmem:[%s188 + $0x322] sm:$0xff]
  %s637 = scalar_lea.vmem [#allocation2], 48
  %v638 = vld [vmem:[%s637] sm:$0xff]
  %v639 = vld [vmem:[%s637 + $0x8] sm:$0xff]
  %v640 = vld [vmem:[%s637 + $0x18] sm:$0xff]
  %v641 = vld [vmem:[%s637 + $0x20] sm:$0xff]
  %v642 = vld [vmem:[%s637 + $0x30] sm:$0xff]
  %v643 = vld [vmem:[%s637 + $0x38] sm:$0xff]
  %v644 = vld [vmem:[%s637 + $0x48] sm:$0xff]
  %v645 = vld [vmem:[%s637 + $0x50] sm:$0xff]
  %v646 = vld [vmem:[%s637 + $0x60] sm:$0xff]
  %v647 = vld [vmem:[%s637 + $0x68] sm:$0xff]
  %v648 = vld [vmem:[%s637 + $0x78] sm:$0xff]
  %v649 = vld [vmem:[%s637 + $0x80] sm:$0xff]
  %v650 = vld [vmem:[%s637 + $0x90] sm:$0xff]
  %v651 = vld [vmem:[%s637 + $0x98] sm:$0xff]
  %v652 = vld [vmem:[%s637 + $0xa8] sm:$0xff]
  %v653 = vld [vmem:[%s637 + $0xb0] sm:$0xff]
  %v654 = vld [vmem:[%s637 + $0xc0] sm:$0xff]
  %v655 = vld [vmem:[%s637 + $0xc8] sm:$0xff]
  %v656 = vld [vmem:[%s637 + $0xd8] sm:$0xff]
  %v657 = vld [vmem:[%s637 + $0xe0] sm:$0xff]
  %v658 = vld [vmem:[%s637 + $0xf0] sm:$0xff]
  %v659 = vld [vmem:[%s637 + $0xf8] sm:$0xff]
  %v660 = vld [vmem:[%s637 + $0x108] sm:$0xff]
  %v661 = vld [vmem:[%s637 + $0x110] sm:$0xff]
  %v662 = vld [vmem:[%s637 + $0x120] sm:$0xff]
  %v663 = vld [vmem:[%s637 + $0x128] sm:$0xff]
  %v664 = vld [vmem:[%s637 + $0x138] sm:$0xff]
  %v665 = vld [vmem:[%s637 + $0x140] sm:$0xff]
  %v666 = vld [vmem:[%s637 + $0x150] sm:$0xff]
  %v667 = vld [vmem:[%s637 + $0x158] sm:$0xff]
  %v668 = vld [vmem:[%s637 + $0x168] sm:$0xff]
  %v669 = vld [vmem:[%s637 + $0x170] sm:$0xff]
  %v670 = vld [vmem:[%s637 + $0x1b0] sm:$0xff]
  %v671 = vld [vmem:[%s637 + $0x1b8] sm:$0xff]
  %v672 = vld [vmem:[%s637 + $0x1c8] sm:$0xff]
  %v673 = vld [vmem:[%s637 + $0x1d0] sm:$0xff]
  %v674 = vld [vmem:[%s637 + $0x1e0] sm:$0xff]
  %v675 = vld [vmem:[%s637 + $0x1e8] sm:$0xff]
  %v676 = vld [vmem:[%s637 + $0x1f8] sm:$0xff]
  %v677 = vld [vmem:[%s637 + $0x200] sm:$0xff]
  %v678 = vld [vmem:[%s637 + $0x210] sm:$0xff]
  %v679 = vld [vmem:[%s637 + $0x218] sm:$0xff]
  %v680 = vld [vmem:[%s637 + $0x228] sm:$0xff]
  %v681 = vld [vmem:[%s637 + $0x230] sm:$0xff]
  %v682 = vld [vmem:[%s637 + $0x240] sm:$0xff]
  %v683 = vld [vmem:[%s637 + $0x248] sm:$0xff]
  %v684 = vld [vmem:[%s637 + $0x258] sm:$0xff]
  %v685 = vld [vmem:[%s637 + $0x260] sm:$0xff]
  %v686 = vld [vmem:[%s637 + $0x270] sm:$0xff]
  %v687 = vld [vmem:[%s637 + $0x278] sm:$0xff]
  %v688 = vld [vmem:[%s637 + $0x288] sm:$0xff]
  %v689 = vld [vmem:[%s637 + $0x290] sm:$0xff]
  %v690 = vld [vmem:[%s637 + $0x2a0] sm:$0xff]
  %v691 = vld [vmem:[%s637 + $0x2a8] sm:$0xff]
  %v692 = vld [vmem:[%s637 + $0x2b8] sm:$0xff]
  %v693 = vld [vmem:[%s637 + $0x2c0] sm:$0xff]
  %v694 = vld [vmem:[%s637 + $0x2d0] sm:$0xff]
  %v695 = vld [vmem:[%s637 + $0x2d8] sm:$0xff]
  %v696 = vld [vmem:[%s637 + $0x2e8] sm:$0xff]
  %v697 = vld [vmem:[%s637 + $0x2f0] sm:$0xff]
  %v698 = vld [vmem:[%s637 + $0x300] sm:$0xff]
  %v699 = vld [vmem:[%s637 + $0x308] sm:$0xff]
  %v700 = vld [vmem:[%s637 + $0x318] sm:$0xff]
  %v701 = vld [vmem:[%s637 + $0x320] sm:$0xff]
  %v702 = vld [vmem:[%s637 + $0x1] sm:$0xff]
  %v703 = vld [vmem:[%s637 + $0x9] sm:$0xff]
  %v704 = vld [vmem:[%s637 + $0x19] sm:$0xff]
  %v705 = vld [vmem:[%s637 + $0x21] sm:$0xff]
  %v706 = vld [vmem:[%s637 + $0x31] sm:$0xff]
  %v707 = vld [vmem:[%s637 + $0x39] sm:$0xff]
  %v708 = vld [vmem:[%s637 + $0x49] sm:$0xff]
  %v709 = vld [vmem:[%s637 + $0x51] sm:$0xff]
  %v710 = vld [vmem:[%s637 + $0x61] sm:$0xff]
  %v711 = vld [vmem:[%s637 + $0x69] sm:$0xff]
  %v712 = vld [vmem:[%s637 + $0x79] sm:$0xff]
  %v713 = vld [vmem:[%s637 + $0x81] sm:$0xff]
  %v714 = vld [vmem:[%s637 + $0x91] sm:$0xff]
  %v715 = vld [vmem:[%s637 + $0x99] sm:$0xff]
  %v716 = vld [vmem:[%s637 + $0xa9] sm:$0xff]
  %v717 = vld [vmem:[%s637 + $0xb1] sm:$0xff]
  %v718 = vld [vmem:[%s637 + $0xc1] sm:$0xff]
  %v719 = vld [vmem:[%s637 + $0xc9] sm:$0xff]
  %v720 = vld [vmem:[%s637 + $0xd9] sm:$0xff]
  %v721 = vld [vmem:[%s637 + $0xe1] sm:$0xff]
  %v722 = vld [vmem:[%s637 + $0xf1] sm:$0xff]
  %v723 = vld [vmem:[%s637 + $0xf9] sm:$0xff]
  %v724 = vld [vmem:[%s637 + $0x109] sm:$0xff]
  %v725 = vld [vmem:[%s637 + $0x111] sm:$0xff]
  %v726 = vld [vmem:[%s637 + $0x121] sm:$0xff]
  %v727 = vld [vmem:[%s637 + $0x129] sm:$0xff]
  %v728 = vld [vmem:[%s637 + $0x139] sm:$0xff]
  %v729 = vld [vmem:[%s637 + $0x141] sm:$0xff]
  %v730 = vld [vmem:[%s637 + $0x151] sm:$0xff]
  %v731 = vld [vmem:[%s637 + $0x159] sm:$0xff]
  %v732 = vld [vmem:[%s637 + $0x169] sm:$0xff]
  %v733 = vld [vmem:[%s637 + $0x171] sm:$0xff]
  %v734 = vld [vmem:[%s637 + $0x1b1] sm:$0xff]
  %v735 = vld [vmem:[%s637 + $0x1b9] sm:$0xff]
  %v736 = vld [vmem:[%s637 + $0x1c9] sm:$0xff]
  %v737 = vld [vmem:[%s637 + $0x1d1] sm:$0xff]
  %v738 = vld [vmem:[%s637 + $0x1e1] sm:$0xff]
  %v739 = vld [vmem:[%s637 + $0x1e9] sm:$0xff]
  %v740 = vld [vmem:[%s637 + $0x1f9] sm:$0xff]
  %v741 = vld [vmem:[%s637 + $0x201] sm:$0xff]
  %v742 = vld [vmem:[%s637 + $0x211] sm:$0xff]
  %v743 = vld [vmem:[%s637 + $0x219] sm:$0xff]
  %v744 = vld [vmem:[%s637 + $0x229] sm:$0xff]
  %v745 = vld [vmem:[%s637 + $0x231] sm:$0xff]
  %v746 = vld [vmem:[%s637 + $0x241] sm:$0xff]
  %v747 = vld [vmem:[%s637 + $0x249] sm:$0xff]
  %v748 = vld [vmem:[%s637 + $0x259] sm:$0xff]
  %v749 = vld [vmem:[%s637 + $0x261] sm:$0xff]
  %v750 = vld [vmem:[%s637 + $0x271] sm:$0xff]
  %v751 = vld [vmem:[%s637 + $0x279] sm:$0xff]
  %v752 = vld [vmem:[%s637 + $0x289] sm:$0xff]
  %v753 = vld [vmem:[%s637 + $0x291] sm:$0xff]
  %v754 = vld [vmem:[%s637 + $0x2a1] sm:$0xff]
  %v755 = vld [vmem:[%s637 + $0x2a9] sm:$0xff]
  %v756 = vld [vmem:[%s637 + $0x2b9] sm:$0xff]
  %v757 = vld [vmem:[%s637 + $0x2c1] sm:$0xff]
  %v758 = vld [vmem:[%s637 + $0x2d1] sm:$0xff]
  %v759 = vld [vmem:[%s637 + $0x2d9] sm:$0xff]
  %v760 = vld [vmem:[%s637 + $0x2e9] sm:$0xff]
  %v761 = vld [vmem:[%s637 + $0x2f1] sm:$0xff]
  %v762 = vld [vmem:[%s637 + $0x301] sm:$0xff]
  %v763 = vld [vmem:[%s637 + $0x309] sm:$0xff]
  %v764 = vld [vmem:[%s637 + $0x319] sm:$0xff]
  %v765 = vld [vmem:[%s637 + $0x321] sm:$0xff]
  %v766 = vld [vmem:[%s637 + $0x2] sm:$0xff]
  %v767 = vld [vmem:[%s637 + $0xa] sm:$0xff]
  %v768 = vld [vmem:[%s637 + $0x1a] sm:$0xff]
  %v769 = vld [vmem:[%s637 + $0x22] sm:$0xff]
  %v770 = vld [vmem:[%s637 + $0x32] sm:$0xff]
  %v771 = vld [vmem:[%s637 + $0x3a] sm:$0xff]
  %v772 = vld [vmem:[%s637 + $0x4a] sm:$0xff]
  %v773 = vld [vmem:[%s637 + $0x52] sm:$0xff]
  %v774 = vld [vmem:[%s637 + $0x62] sm:$0xff]
  %v775 = vld [vmem:[%s637 + $0x6a] sm:$0xff]
  %v776 = vld [vmem:[%s637 + $0x7a] sm:$0xff]
  %v777 = vld [vmem:[%s637 + $0x82] sm:$0xff]
  %v778 = vld [vmem:[%s637 + $0x92] sm:$0xff]
  %v779 = vld [vmem:[%s637 + $0x9a] sm:$0xff]
  %v780 = vld [vmem:[%s637 + $0xaa] sm:$0xff]
  %v781 = vld [vmem:[%s637 + $0xb2] sm:$0xff]
  %v782 = vld [vmem:[%s637 + $0xc2] sm:$0xff]
  %v783 = vld [vmem:[%s637 + $0xca] sm:$0xff]
  %v784 = vld [vmem:[%s637 + $0xda] sm:$0xff]
  %v785 = vld [vmem:[%s637 + $0xe2] sm:$0xff]
  %v786 = vld [vmem:[%s637 + $0xf2] sm:$0xff]
  %v787 = vld [vmem:[%s637 + $0xfa] sm:$0xff]
  %v788 = vld [vmem:[%s637 + $0x10a] sm:$0xff]
  %v789 = vld [vmem:[%s637 + $0x112] sm:$0xff]
  %v790 = vld [vmem:[%s637 + $0x122] sm:$0xff]
  %v791 = vld [vmem:[%s637 + $0x12a] sm:$0xff]
  %v792 = vld [vmem:[%s637 + $0x13a] sm:$0xff]
  %v793 = vld [vmem:[%s637 + $0x142] sm:$0xff]
  %v794 = vld [vmem:[%s637 + $0x152] sm:$0xff]
  %v795 = vld [vmem:[%s637 + $0x15a] sm:$0xff]
  %v796 = vld [vmem:[%s637 + $0x16a] sm:$0xff]
  %v797 = vld [vmem:[%s637 + $0x172] sm:$0xff]
  %v798 = vld [vmem:[%s637 + $0x1b2] sm:$0xff]
  %v799 = vld [vmem:[%s637 + $0x1ba] sm:$0xff]
  %v800 = vld [vmem:[%s637 + $0x1ca] sm:$0xff]
  %v801 = vld [vmem:[%s637 + $0x1d2] sm:$0xff]
  %v802 = vld [vmem:[%s637 + $0x1e2] sm:$0xff]
  %v803 = vld [vmem:[%s637 + $0x1ea] sm:$0xff]
  %v804 = vld [vmem:[%s637 + $0x1fa] sm:$0xff]
  %v805 = vld [vmem:[%s637 + $0x202] sm:$0xff]
  %v806 = vld [vmem:[%s637 + $0x212] sm:$0xff]
  %v807 = vld [vmem:[%s637 + $0x21a] sm:$0xff]
  %v808 = vld [vmem:[%s637 + $0x22a] sm:$0xff]
  %v809 = vld [vmem:[%s637 + $0x232] sm:$0xff]
  %v810 = vld [vmem:[%s637 + $0x242] sm:$0xff]
  %v811 = vld [vmem:[%s637 + $0x24a] sm:$0xff]
  %v812 = vld [vmem:[%s637 + $0x25a] sm:$0xff]
  %v813 = vld [vmem:[%s637 + $0x262] sm:$0xff]
  %v814 = vld [vmem:[%s637 + $0x272] sm:$0xff]
  %v815 = vld [vmem:[%s637 + $0x27a] sm:$0xff]
  %v816 = vld [vmem:[%s637 + $0x28a] sm:$0xff]
  %v817 = vld [vmem:[%s637 + $0x292] sm:$0xff]
  %v818 = vld [vmem:[%s637 + $0x2a2] sm:$0xff]
  %v819 = vld [vmem:[%s637 + $0x2aa] sm:$0xff]
  %v820 = vld [vmem:[%s637 + $0x2ba] sm:$0xff]
  %v821 = vld [vmem:[%s637 + $0x2c2] sm:$0xff]
  %v822 = vld [vmem:[%s637 + $0x2d2] sm:$0xff]
  %v823 = vld [vmem:[%s637 + $0x2da] sm:$0xff]
  %v824 = vld [vmem:[%s637 + $0x2ea] sm:$0xff]
  %v825 = vld [vmem:[%s637 + $0x2f2] sm:$0xff]
  %v826 = vld [vmem:[%s637 + $0x302] sm:$0xff]
  %v827 = vld [vmem:[%s637 + $0x30a] sm:$0xff]
  %v828 = vld [vmem:[%s637 + $0x31a] sm:$0xff]
  %v829 = vld [vmem:[%s637 + $0x322] sm:$0xff]
  %894 = vrot.lane.b32.xlu0 %v317, 1
  %v895 = vpop.permute.xlu0 %894
  %896 = vrot.lane.b32.xlu0 %v318, 1
  %v897 = vpop.permute.xlu0 %896
  %898 = vrot.lane.b32.xlu0 %v319, 1
  %v899 = vpop.permute.xlu0 %898
  %900 = vrot.lane.b32.xlu0 %v320, 1
  %v901 = vpop.permute.xlu0 %900
  %902 = vrot.lane.b32.xlu0 %v321, 1
  %v903 = vpop.permute.xlu0 %902
  %904 = vrot.lane.b32.xlu0 %v322, 1
  %v905 = vpop.permute.xlu0 %904
  %906 = vrot.lane.b32.xlu0 %v323, 1
  %v907 = vpop.permute.xlu0 %906
  %908 = vrot.lane.b32.xlu0 %v324, 1
  %v909 = vpop.permute.xlu0 %908
  %910 = vrot.lane.b32.xlu0 %v325, 1
  %v911 = vpop.permute.xlu0 %910
  %912 = vrot.lane.b32.xlu0 %v326, 1
  %v913 = vpop.permute.xlu0 %912
  %914 = vrot.lane.b32.xlu0 %v327, 1
  %v915 = vpop.permute.xlu0 %914
  %916 = vrot.lane.b32.xlu0 %v328, 1
  %v917 = vpop.permute.xlu0 %916
  %918 = vrot.lane.b32.xlu0 %v329, 1
  %v919 = vpop.permute.xlu0 %918
  %920 = vrot.lane.b32.xlu0 %v330, 1
  %v921 = vpop.permute.xlu0 %920
  %922 = vrot.lane.b32.xlu0 %v331, 1
  %v923 = vpop.permute.xlu0 %922
  %924 = vrot.lane.b32.xlu0 %v332, 1
  %v925 = vpop.permute.xlu0 %924
  %926 = vrot.lane.b32.xlu0 %v333, 1
  %v927 = vpop.permute.xlu0 %926
  %928 = vrot.lane.b32.xlu0 %v334, 1
  %v929 = vpop.permute.xlu0 %928
  %930 = vrot.lane.b32.xlu0 %v335, 1
  %v931 = vpop.permute.xlu0 %930
  %932 = vrot.lane.b32.xlu0 %v336, 1
  %v933 = vpop.permute.xlu0 %932
  %934 = vrot.lane.b32.xlu0 %v337, 1
  %v935 = vpop.permute.xlu0 %934
  %936 = vrot.lane.b32.xlu0 %v338, 1
  %v937 = vpop.permute.xlu0 %936
  %938 = vrot.lane.b32.xlu0 %v339, 1
  %v939 = vpop.permute.xlu0 %938
  %940 = vrot.lane.b32.xlu0 %v340, 1
  %v941 = vpop.permute.xlu0 %940
  %942 = vrot.lane.b32.xlu0 %v341, 1
  %v943 = vpop.permute.xlu0 %942
  %944 = vrot.lane.b32.xlu0 %v342, 1
  %v945 = vpop.permute.xlu0 %944
  %946 = vrot.lane.b32.xlu0 %v343, 1
  %v947 = vpop.permute.xlu0 %946
  %948 = vrot.lane.b32.xlu0 %v344, 1
  %v949 = vpop.permute.xlu0 %948
  %950 = vrot.lane.b32.xlu0 %v345, 1
  %v951 = vpop.permute.xlu0 %950
  %952 = vrot.lane.b32.xlu0 %v346, 1
  %v953 = vpop.permute.xlu0 %952
  %954 = vrot.lane.b32.xlu0 %v347, 1
  %v955 = vpop.permute.xlu0 %954
  %956 = vrot.lane.b32.xlu0 %v348, 1
  %v957 = vpop.permute.xlu0 %956
  %958 = vrot.lane.b32.xlu0 %v349, 1
  %v959 = vpop.permute.xlu0 %958
  %960 = vrot.lane.b32.xlu0 %v350, 1
  %v961 = vpop.permute.xlu0 %960
  %962 = vrot.lane.b32.xlu0 %v351, 1
  %v963 = vpop.permute.xlu0 %962
  %964 = vrot.lane.b32.xlu0 %v352, 1
  %v965 = vpop.permute.xlu0 %964
  %966 = vrot.lane.b32.xlu0 %v353, 1
  %v967 = vpop.permute.xlu0 %966
  %968 = vrot.lane.b32.xlu0 %v354, 1
  %v969 = vpop.permute.xlu0 %968
  %970 = vrot.lane.b32.xlu0 %v355, 1
  %v971 = vpop.permute.xlu0 %970
  %972 = vrot.lane.b32.xlu0 %v356, 1
  %v973 = vpop.permute.xlu0 %972
  %974 = vrot.lane.b32.xlu0 %v357, 1
  %v975 = vpop.permute.xlu0 %974
  %976 = vrot.lane.b32.xlu0 %v358, 1
  %v977 = vpop.permute.xlu0 %976
  %978 = vrot.lane.b32.xlu0 %v359, 1
  %v979 = vpop.permute.xlu0 %978
  %980 = vrot.lane.b32.xlu0 %v360, 1
  %v981 = vpop.permute.xlu0 %980
  %982 = vrot.lane.b32.xlu0 %v361, 1
  %v983 = vpop.permute.xlu0 %982
  %984 = vrot.lane.b32.xlu0 %v362, 1
  %v985 = vpop.permute.xlu0 %984
  %986 = vrot.lane.b32.xlu0 %v363, 1
  %v987 = vpop.permute.xlu0 %986
  %988 = vrot.lane.b32.xlu0 %v364, 1
  %v989 = vpop.permute.xlu0 %988
  %990 = vrot.lane.b32.xlu0 %v365, 1
  %v991 = vpop.permute.xlu0 %990
  %992 = vrot.lane.b32.xlu0 %v366, 1
  %v993 = vpop.permute.xlu0 %992
  %994 = vrot.lane.b32.xlu0 %v367, 1
  %v995 = vpop.permute.xlu0 %994
  %996 = vrot.lane.b32.xlu0 %v368, 1
  %v997 = vpop.permute.xlu0 %996
  %998 = vrot.lane.b32.xlu0 %v369, 1
  %v999 = vpop.permute.xlu0 %998
  %1000 = vrot.lane.b32.xlu0 %v370, 1
  %v1001 = vpop.permute.xlu0 %1000
  %1002 = vrot.lane.b32.xlu0 %v371, 1
  %v1003 = vpop.permute.xlu0 %1002
  %1004 = vrot.lane.b32.xlu0 %v372, 1
  %v1005 = vpop.permute.xlu0 %1004
  %1006 = vrot.lane.b32.xlu0 %v373, 1
  %v1007 = vpop.permute.xlu0 %1006
  %1008 = vrot.lane.b32.xlu0 %v374, 1
  %v1009 = vpop.permute.xlu0 %1008
  %1010 = vrot.lane.b32.xlu0 %v375, 1
  %v1011 = vpop.permute.xlu0 %1010
  %1012 = vrot.lane.b32.xlu0 %v376, 1
  %v1013 = vpop.permute.xlu0 %1012
  %1014 = vrot.lane.b32.xlu0 %v377, 1
  %v1015 = vpop.permute.xlu0 %1014
  %1016 = vrot.lane.b32.xlu0 %v378, 1
  %v1017 = vpop.permute.xlu0 %1016
  %1018 = vrot.lane.b32.xlu0 %v379, 1
  %v1019 = vpop.permute.xlu0 %1018
  %1020 = vrot.lane.b32.xlu0 %v380, 1
  %v1021 = vpop.permute.xlu0 %1020
  %1150 = vrot.lane.b32.xlu0 %v381, 2
  %v1151 = vpop.permute.xlu0 %1150
  %1152 = vrot.lane.b32.xlu0 %v382, 2
  %v1153 = vpop.permute.xlu0 %1152
  %1154 = vrot.lane.b32.xlu0 %v383, 2
  %v1155 = vpop.permute.xlu0 %1154
  %1156 = vrot.lane.b32.xlu0 %v384, 2
  %v1157 = vpop.permute.xlu0 %1156
  %1158 = vrot.lane.b32.xlu0 %v385, 2
  %v1159 = vpop.permute.xlu0 %1158
  %1160 = vrot.lane.b32.xlu0 %v386, 2
  %v1161 = vpop.permute.xlu0 %1160
  %1162 = vrot.lane.b32.xlu0 %v387, 2
  %v1163 = vpop.permute.xlu0 %1162
  %1164 = vrot.lane.b32.xlu0 %v388, 2
  %v1165 = vpop.permute.xlu0 %1164
  %1166 = vrot.lane.b32.xlu0 %v389, 2
  %v1167 = vpop.permute.xlu0 %1166
  %1168 = vrot.lane.b32.xlu0 %v390, 2
  %v1169 = vpop.permute.xlu0 %1168
  %1170 = vrot.lane.b32.xlu0 %v391, 2
  %v1171 = vpop.permute.xlu0 %1170
  %1172 = vrot.lane.b32.xlu0 %v392, 2
  %v1173 = vpop.permute.xlu0 %1172
  %1174 = vrot.lane.b32.xlu0 %v393, 2
  %v1175 = vpop.permute.xlu0 %1174
  %1176 = vrot.lane.b32.xlu0 %v394, 2
  %v1177 = vpop.permute.xlu0 %1176
  %1178 = vrot.lane.b32.xlu0 %v395, 2
  %v1179 = vpop.permute.xlu0 %1178
  %1180 = vrot.lane.b32.xlu0 %v396, 2
  %v1181 = vpop.permute.xlu0 %1180
  %1182 = vrot.lane.b32.xlu0 %v397, 2
  %v1183 = vpop.permute.xlu0 %1182
  %1184 = vrot.lane.b32.xlu0 %v398, 2
  %v1185 = vpop.permute.xlu0 %1184
  %1186 = vrot.lane.b32.xlu0 %v399, 2
  %v1187 = vpop.permute.xlu0 %1186
  %1188 = vrot.lane.b32.xlu0 %v400, 2
  %v1189 = vpop.permute.xlu0 %1188
  %1190 = vrot.lane.b32.xlu0 %v401, 2
  %v1191 = vpop.permute.xlu0 %1190
  %1192 = vrot.lane.b32.xlu0 %v402, 2
  %v1193 = vpop.permute.xlu0 %1192
  %1194 = vrot.lane.b32.xlu0 %v403, 2
  %v1195 = vpop.permute.xlu0 %1194
  %1196 = vrot.lane.b32.xlu0 %v404, 2
  %v1197 = vpop.permute.xlu0 %1196
  %1198 = vrot.lane.b32.xlu0 %v405, 2
  %v1199 = vpop.permute.xlu0 %1198
  %1200 = vrot.lane.b32.xlu0 %v406, 2
  %v1201 = vpop.permute.xlu0 %1200
  %1202 = vrot.lane.b32.xlu0 %v407, 2
  %v1203 = vpop.permute.xlu0 %1202
  %1204 = vrot.lane.b32.xlu0 %v408, 2
  %v1205 = vpop.permute.xlu0 %1204
  %1206 = vrot.lane.b32.xlu0 %v409, 2
  %v1207 = vpop.permute.xlu0 %1206
  %1208 = vrot.lane.b32.xlu0 %v410, 2
  %v1209 = vpop.permute.xlu0 %1208
  %1210 = vrot.lane.b32.xlu0 %v411, 2
  %v1211 = vpop.permute.xlu0 %1210
  %1212 = vrot.lane.b32.xlu0 %v412, 2
  %v1213 = vpop.permute.xlu0 %1212
  %1214 = vrot.lane.b32.xlu0 %v413, 2
  %v1215 = vpop.permute.xlu0 %1214
  %1216 = vrot.lane.b32.xlu0 %v414, 2
  %v1217 = vpop.permute.xlu0 %1216
  %1218 = vrot.lane.b32.xlu0 %v415, 2
  %v1219 = vpop.permute.xlu0 %1218
  %1220 = vrot.lane.b32.xlu0 %v416, 2
  %v1221 = vpop.permute.xlu0 %1220
  %1222 = vrot.lane.b32.xlu0 %v417, 2
  %v1223 = vpop.permute.xlu0 %1222
  %1224 = vrot.lane.b32.xlu0 %v418, 2
  %v1225 = vpop.permute.xlu0 %1224
  %1226 = vrot.lane.b32.xlu0 %v419, 2
  %v1227 = vpop.permute.xlu0 %1226
  %1228 = vrot.lane.b32.xlu0 %v420, 2
  %v1229 = vpop.permute.xlu0 %1228
  %1230 = vrot.lane.b32.xlu0 %v421, 2
  %v1231 = vpop.permute.xlu0 %1230
  %1232 = vrot.lane.b32.xlu0 %v422, 2
  %v1233 = vpop.permute.xlu0 %1232
  %1234 = vrot.lane.b32.xlu0 %v423, 2
  %v1235 = vpop.permute.xlu0 %1234
  %1236 = vrot.lane.b32.xlu0 %v424, 2
  %v1237 = vpop.permute.xlu0 %1236
  %1238 = vrot.lane.b32.xlu0 %v425, 2
  %v1239 = vpop.permute.xlu0 %1238
  %1240 = vrot.lane.b32.xlu0 %v426, 2
  %v1241 = vpop.permute.xlu0 %1240
  %1242 = vrot.lane.b32.xlu0 %v427, 2
  %v1243 = vpop.permute.xlu0 %1242
  %1244 = vrot.lane.b32.xlu0 %v428, 2
  %v1245 = vpop.permute.xlu0 %1244
  %1246 = vrot.lane.b32.xlu0 %v429, 2
  %v1247 = vpop.permute.xlu0 %1246
  %1248 = vrot.lane.b32.xlu0 %v430, 2
  %v1249 = vpop.permute.xlu0 %1248
  %1250 = vrot.lane.b32.xlu0 %v431, 2
  %v1251 = vpop.permute.xlu0 %1250
  %1252 = vrot.lane.b32.xlu0 %v432, 2
  %v1253 = vpop.permute.xlu0 %1252
  %1254 = vrot.lane.b32.xlu0 %v433, 2
  %v1255 = vpop.permute.xlu0 %1254
  %1256 = vrot.lane.b32.xlu0 %v434, 2
  %v1257 = vpop.permute.xlu0 %1256
  %1258 = vrot.lane.b32.xlu0 %v435, 2
  %v1259 = vpop.permute.xlu0 %1258
  %1260 = vrot.lane.b32.xlu0 %v436, 2
  %v1261 = vpop.permute.xlu0 %1260
  %1262 = vrot.lane.b32.xlu0 %v437, 2
  %v1263 = vpop.permute.xlu0 %1262
  %1264 = vrot.lane.b32.xlu0 %v438, 2
  %v1265 = vpop.permute.xlu0 %1264
  %1266 = vrot.lane.b32.xlu0 %v439, 2
  %v1267 = vpop.permute.xlu0 %1266
  %1268 = vrot.lane.b32.xlu0 %v440, 2
  %v1269 = vpop.permute.xlu0 %1268
  %1270 = vrot.lane.b32.xlu0 %v441, 2
  %v1271 = vpop.permute.xlu0 %1270
  %1272 = vrot.lane.b32.xlu0 %v442, 2
  %v1273 = vpop.permute.xlu0 %1272
  %1274 = vrot.lane.b32.xlu0 %v443, 2
  %v1275 = vpop.permute.xlu0 %1274
  %1276 = vrot.lane.b32.xlu0 %v444, 2
  %v1277 = vpop.permute.xlu0 %1276
  %1406 = vrot.lane.b32.xlu0 %v445, 3
  %v1407 = vpop.permute.xlu0 %1406
  %1408 = vrot.lane.b32.xlu0 %v446, 3
  %v1409 = vpop.permute.xlu0 %1408
  %1410 = vrot.lane.b32.xlu0 %v447, 3
  %v1411 = vpop.permute.xlu0 %1410
  %1412 = vrot.lane.b32.xlu0 %v448, 3
  %v1413 = vpop.permute.xlu0 %1412
  %1414 = vrot.lane.b32.xlu0 %v449, 3
  %v1415 = vpop.permute.xlu0 %1414
  %1416 = vrot.lane.b32.xlu0 %v450, 3
  %v1417 = vpop.permute.xlu0 %1416
  %1418 = vrot.lane.b32.xlu0 %v451, 3
  %v1419 = vpop.permute.xlu0 %1418
  %1420 = vrot.lane.b32.xlu0 %v452, 3
  %v1421 = vpop.permute.xlu0 %1420
  %1422 = vrot.lane.b32.xlu0 %v453, 3
  %v1423 = vpop.permute.xlu0 %1422
  %1424 = vrot.lane.b32.xlu0 %v454, 3
  %v1425 = vpop.permute.xlu0 %1424
  %1426 = vrot.lane.b32.xlu0 %v455, 3
  %v1427 = vpop.permute.xlu0 %1426
  %1428 = vrot.lane.b32.xlu0 %v456, 3
  %v1429 = vpop.permute.xlu0 %1428
  %1430 = vrot.lane.b32.xlu0 %v457, 3
  %v1431 = vpop.permute.xlu0 %1430
  %1432 = vrot.lane.b32.xlu0 %v458, 3
  %v1433 = vpop.permute.xlu0 %1432
  %1434 = vrot.lane.b32.xlu0 %v459, 3
  %v1435 = vpop.permute.xlu0 %1434
  %1436 = vrot.lane.b32.xlu0 %v460, 3
  %v1437 = vpop.permute.xlu0 %1436
  %1438 = vrot.lane.b32.xlu0 %v461, 3
  %v1439 = vpop.permute.xlu0 %1438
  %1440 = vrot.lane.b32.xlu0 %v462, 3
  %v1441 = vpop.permute.xlu0 %1440
  %1442 = vrot.lane.b32.xlu0 %v463, 3
  %v1443 = vpop.permute.xlu0 %1442
  %1444 = vrot.lane.b32.xlu0 %v464, 3
  %v1445 = vpop.permute.xlu0 %1444
  %1446 = vrot.lane.b32.xlu0 %v465, 3
  %v1447 = vpop.permute.xlu0 %1446
  %1448 = vrot.lane.b32.xlu0 %v466, 3
  %v1449 = vpop.permute.xlu0 %1448
  %1450 = vrot.lane.b32.xlu0 %v467, 3
  %v1451 = vpop.permute.xlu0 %1450
  %1452 = vrot.lane.b32.xlu0 %v468, 3
  %v1453 = vpop.permute.xlu0 %1452
  %1454 = vrot.lane.b32.xlu0 %v469, 3
  %v1455 = vpop.permute.xlu0 %1454
  %1456 = vrot.lane.b32.xlu0 %v470, 3
  %v1457 = vpop.permute.xlu0 %1456
  %1458 = vrot.lane.b32.xlu0 %v471, 3
  %v1459 = vpop.permute.xlu0 %1458
  %1460 = vrot.lane.b32.xlu0 %v472, 3
  %v1461 = vpop.permute.xlu0 %1460
  %1462 = vrot.lane.b32.xlu0 %v473, 3
  %v1463 = vpop.permute.xlu0 %1462
  %1464 = vrot.lane.b32.xlu0 %v474, 3
  %v1465 = vpop.permute.xlu0 %1464
  %1466 = vrot.lane.b32.xlu0 %v475, 3
  %v1467 = vpop.permute.xlu0 %1466
  %1468 = vrot.lane.b32.xlu0 %v476, 3
  %v1469 = vpop.permute.xlu0 %1468
  %1470 = vrot.lane.b32.xlu0 %v477, 3
  %v1471 = vpop.permute.xlu0 %1470
  %1472 = vrot.lane.b32.xlu0 %v478, 3
  %v1473 = vpop.permute.xlu0 %1472
  %1474 = vrot.lane.b32.xlu0 %v479, 3
  %v1475 = vpop.permute.xlu0 %1474
  %1476 = vrot.lane.b32.xlu0 %v480, 3
  %v1477 = vpop.permute.xlu0 %1476
  %1478 = vrot.lane.b32.xlu0 %v481, 3
  %v1479 = vpop.permute.xlu0 %1478
  %1480 = vrot.lane.b32.xlu0 %v482, 3
  %v1481 = vpop.permute.xlu0 %1480
  %1482 = vrot.lane.b32.xlu0 %v483, 3
  %v1483 = vpop.permute.xlu0 %1482
  %1484 = vrot.lane.b32.xlu0 %v484, 3
  %v1485 = vpop.permute.xlu0 %1484
  %1486 = vrot.lane.b32.xlu0 %v485, 3
  %v1487 = vpop.permute.xlu0 %1486
  %1488 = vrot.lane.b32.xlu0 %v486, 3
  %v1489 = vpop.permute.xlu0 %1488
  %1490 = vrot.lane.b32.xlu0 %v487, 3
  %v1491 = vpop.permute.xlu0 %1490
  %1492 = vrot.lane.b32.xlu0 %v488, 3
  %v1493 = vpop.permute.xlu0 %1492
  %1494 = vrot.lane.b32.xlu0 %v489, 3
  %v1495 = vpop.permute.xlu0 %1494
  %1496 = vrot.lane.b32.xlu0 %v490, 3
  %v1497 = vpop.permute.xlu0 %1496
  %1498 = vrot.lane.b32.xlu0 %v491, 3
  %v1499 = vpop.permute.xlu0 %1498
  %1500 = vrot.lane.b32.xlu0 %v492, 3
  %v1501 = vpop.permute.xlu0 %1500
  %1502 = vrot.lane.b32.xlu0 %v493, 3
  %v1503 = vpop.permute.xlu0 %1502
  %1504 = vrot.lane.b32.xlu0 %v494, 3
  %v1505 = vpop.permute.xlu0 %1504
  %1506 = vrot.lane.b32.xlu0 %v495, 3
  %v1507 = vpop.permute.xlu0 %1506
  %1508 = vrot.lane.b32.xlu0 %v496, 3
  %v1509 = vpop.permute.xlu0 %1508
  %1510 = vrot.lane.b32.xlu0 %v497, 3
  %v1511 = vpop.permute.xlu0 %1510
  %1512 = vrot.lane.b32.xlu0 %v498, 3
  %v1513 = vpop.permute.xlu0 %1512
  %1514 = vrot.lane.b32.xlu0 %v499, 3
  %v1515 = vpop.permute.xlu0 %1514
  %1516 = vrot.lane.b32.xlu0 %v500, 3
  %v1517 = vpop.permute.xlu0 %1516
  %1518 = vrot.lane.b32.xlu0 %v501, 3
  %v1519 = vpop.permute.xlu0 %1518
  %1520 = vrot.lane.b32.xlu0 %v502, 3
  %v1521 = vpop.permute.xlu0 %1520
  %1522 = vrot.lane.b32.xlu0 %v503, 3
  %v1523 = vpop.permute.xlu0 %1522
  %1524 = vrot.lane.b32.xlu0 %v504, 3
  %v1525 = vpop.permute.xlu0 %1524
  %1526 = vrot.lane.b32.xlu0 %v505, 3
  %v1527 = vpop.permute.xlu0 %1526
  %1528 = vrot.lane.b32.xlu0 %v506, 3
  %v1529 = vpop.permute.xlu0 %1528
  %1530 = vrot.lane.b32.xlu0 %v507, 3
  %v1531 = vpop.permute.xlu0 %1530
  %1532 = vrot.lane.b32.xlu0 %v508, 3
  %v1533 = vpop.permute.xlu0 %1532
  %1662 = vrot.lane.b32.xlu0 %v509, 4
  %v1663 = vpop.permute.xlu0 %1662
  %1664 = vrot.lane.b32.xlu0 %v510, 4
  %v1665 = vpop.permute.xlu0 %1664
  %1666 = vrot.lane.b32.xlu0 %v511, 4
  %v1667 = vpop.permute.xlu0 %1666
  %1668 = vrot.lane.b32.xlu0 %v512, 4
  %v1669 = vpop.permute.xlu0 %1668
  %1670 = vrot.lane.b32.xlu0 %v513, 4
  %v1671 = vpop.permute.xlu0 %1670
  %1672 = vrot.lane.b32.xlu0 %v514, 4
  %v1673 = vpop.permute.xlu0 %1672
  %1674 = vrot.lane.b32.xlu0 %v515, 4
  %v1675 = vpop.permute.xlu0 %1674
  %1676 = vrot.lane.b32.xlu0 %v516, 4
  %v1677 = vpop.permute.xlu0 %1676
  %1678 = vrot.lane.b32.xlu0 %v517, 4
  %v1679 = vpop.permute.xlu0 %1678
  %1680 = vrot.lane.b32.xlu0 %v518, 4
  %v1681 = vpop.permute.xlu0 %1680
  %1682 = vrot.lane.b32.xlu0 %v519, 4
  %v1683 = vpop.permute.xlu0 %1682
  %1684 = vrot.lane.b32.xlu0 %v520, 4
  %v1685 = vpop.permute.xlu0 %1684
  %1686 = vrot.lane.b32.xlu0 %v521, 4
  %v1687 = vpop.permute.xlu0 %1686
  %1688 = vrot.lane.b32.xlu0 %v522, 4
  %v1689 = vpop.permute.xlu0 %1688
  %1690 = vrot.lane.b32.xlu0 %v523, 4
  %v1691 = vpop.permute.xlu0 %1690
  %1692 = vrot.lane.b32.xlu0 %v524, 4
  %v1693 = vpop.permute.xlu0 %1692
  %1694 = vrot.lane.b32.xlu0 %v525, 4
  %v1695 = vpop.permute.xlu0 %1694
  %1696 = vrot.lane.b32.xlu0 %v526, 4
  %v1697 = vpop.permute.xlu0 %1696
  %1698 = vrot.lane.b32.xlu0 %v527, 4
  %v1699 = vpop.permute.xlu0 %1698
  %1700 = vrot.lane.b32.xlu0 %v528, 4
  %v1701 = vpop.permute.xlu0 %1700
  %1702 = vrot.lane.b32.xlu0 %v529, 4
  %v1703 = vpop.permute.xlu0 %1702
  %1704 = vrot.lane.b32.xlu0 %v530, 4
  %v1705 = vpop.permute.xlu0 %1704
  %1706 = vrot.lane.b32.xlu0 %v531, 4
  %v1707 = vpop.permute.xlu0 %1706
  %1708 = vrot.lane.b32.xlu0 %v532, 4
  %v1709 = vpop.permute.xlu0 %1708
  %1710 = vrot.lane.b32.xlu0 %v533, 4
  %v1711 = vpop.permute.xlu0 %1710
  %1712 = vrot.lane.b32.xlu0 %v534, 4
  %v1713 = vpop.permute.xlu0 %1712
  %1714 = vrot.lane.b32.xlu0 %v535, 4
  %v1715 = vpop.permute.xlu0 %1714
  %1716 = vrot.lane.b32.xlu0 %v536, 4
  %v1717 = vpop.permute.xlu0 %1716
  %1718 = vrot.lane.b32.xlu0 %v537, 4
  %v1719 = vpop.permute.xlu0 %1718
  %1720 = vrot.lane.b32.xlu0 %v538, 4
  %v1721 = vpop.permute.xlu0 %1720
  %1722 = vrot.lane.b32.xlu0 %v539, 4
  %v1723 = vpop.permute.xlu0 %1722
  %1724 = vrot.lane.b32.xlu0 %v540, 4
  %v1725 = vpop.permute.xlu0 %1724
  %1726 = vrot.lane.b32.xlu0 %v541, 4
  %v1727 = vpop.permute.xlu0 %1726
  %1728 = vrot.lane.b32.xlu0 %v542, 4
  %v1729 = vpop.permute.xlu0 %1728
  %1730 = vrot.lane.b32.xlu0 %v543, 4
  %v1731 = vpop.permute.xlu0 %1730
  %1732 = vrot.lane.b32.xlu0 %v544, 4
  %v1733 = vpop.permute.xlu0 %1732
  %1734 = vrot.lane.b32.xlu0 %v545, 4
  %v1735 = vpop.permute.xlu0 %1734
  %1736 = vrot.lane.b32.xlu0 %v546, 4
  %v1737 = vpop.permute.xlu0 %1736
  %1738 = vrot.lane.b32.xlu0 %v547, 4
  %v1739 = vpop.permute.xlu0 %1738
  %1740 = vrot.lane.b32.xlu0 %v548, 4
  %v1741 = vpop.permute.xlu0 %1740
  %1742 = vrot.lane.b32.xlu0 %v549, 4
  %v1743 = vpop.permute.xlu0 %1742
  %1744 = vrot.lane.b32.xlu0 %v550, 4
  %v1745 = vpop.permute.xlu0 %1744
  %1746 = vrot.lane.b32.xlu0 %v551, 4
  %v1747 = vpop.permute.xlu0 %1746
  %1748 = vrot.lane.b32.xlu0 %v552, 4
  %v1749 = vpop.permute.xlu0 %1748
  %1750 = vrot.lane.b32.xlu0 %v553, 4
  %v1751 = vpop.permute.xlu0 %1750
  %1752 = vrot.lane.b32.xlu0 %v554, 4
  %v1753 = vpop.permute.xlu0 %1752
  %1754 = vrot.lane.b32.xlu0 %v555, 4
  %v1755 = vpop.permute.xlu0 %1754
  %1756 = vrot.lane.b32.xlu0 %v556, 4
  %v1757 = vpop.permute.xlu0 %1756
  %1758 = vrot.lane.b32.xlu0 %v557, 4
  %v1759 = vpop.permute.xlu0 %1758
  %1760 = vrot.lane.b32.xlu0 %v558, 4
  %v1761 = vpop.permute.xlu0 %1760
  %1762 = vrot.lane.b32.xlu0 %v559, 4
  %v1763 = vpop.permute.xlu0 %1762
  %1764 = vrot.lane.b32.xlu0 %v560, 4
  %v1765 = vpop.permute.xlu0 %1764
  %1766 = vrot.lane.b32.xlu0 %v561, 4
  %v1767 = vpop.permute.xlu0 %1766
  %1768 = vrot.lane.b32.xlu0 %v562, 4
  %v1769 = vpop.permute.xlu0 %1768
  %1770 = vrot.lane.b32.xlu0 %v563, 4
  %v1771 = vpop.permute.xlu0 %1770
  %1772 = vrot.lane.b32.xlu0 %v564, 4
  %v1773 = vpop.permute.xlu0 %1772
  %1774 = vrot.lane.b32.xlu0 %v565, 4
  %v1775 = vpop.permute.xlu0 %1774
  %1776 = vrot.lane.b32.xlu0 %v566, 4
  %v1777 = vpop.permute.xlu0 %1776
  %1778 = vrot.lane.b32.xlu0 %v567, 4
  %v1779 = vpop.permute.xlu0 %1778
  %1780 = vrot.lane.b32.xlu0 %v568, 4
  %v1781 = vpop.permute.xlu0 %1780
  %1782 = vrot.lane.b32.xlu0 %v569, 4
  %v1783 = vpop.permute.xlu0 %1782
  %1784 = vrot.lane.b32.xlu0 %v570, 4
  %v1785 = vpop.permute.xlu0 %1784
  %1786 = vrot.lane.b32.xlu0 %v571, 4
  %v1787 = vpop.permute.xlu0 %1786
  %1788 = vrot.lane.b32.xlu0 %v572, 4
  %v1789 = vpop.permute.xlu0 %1788
  %1918 = vrot.lane.b32.xlu0 %v573, 5
  %v1919 = vpop.permute.xlu0 %1918
  %1920 = vrot.lane.b32.xlu0 %v574, 5
  %v1921 = vpop.permute.xlu0 %1920
  %1922 = vrot.lane.b32.xlu0 %v575, 5
  %v1923 = vpop.permute.xlu0 %1922
  %1924 = vrot.lane.b32.xlu0 %v576, 5
  %v1925 = vpop.permute.xlu0 %1924
  %1926 = vrot.lane.b32.xlu0 %v577, 5
  %v1927 = vpop.permute.xlu0 %1926
  %1928 = vrot.lane.b32.xlu0 %v578, 5
  %v1929 = vpop.permute.xlu0 %1928
  %1930 = vrot.lane.b32.xlu0 %v579, 5
  %v1931 = vpop.permute.xlu0 %1930
  %1932 = vrot.lane.b32.xlu0 %v580, 5
  %v1933 = vpop.permute.xlu0 %1932
  %1934 = vrot.lane.b32.xlu0 %v581, 5
  %v1935 = vpop.permute.xlu0 %1934
  %1936 = vrot.lane.b32.xlu0 %v582, 5
  %v1937 = vpop.permute.xlu0 %1936
  %1938 = vrot.lane.b32.xlu0 %v583, 5
  %v1939 = vpop.permute.xlu0 %1938
  %1940 = vrot.lane.b32.xlu0 %v584, 5
  %v1941 = vpop.permute.xlu0 %1940
  %1942 = vrot.lane.b32.xlu0 %v585, 5
  %v1943 = vpop.permute.xlu0 %1942
  %1944 = vrot.lane.b32.xlu0 %v586, 5
  %v1945 = vpop.permute.xlu0 %1944
  %1946 = vrot.lane.b32.xlu0 %v587, 5
  %v1947 = vpop.permute.xlu0 %1946
  %1948 = vrot.lane.b32.xlu0 %v588, 5
  %v1949 = vpop.permute.xlu0 %1948
  %1950 = vrot.lane.b32.xlu0 %v589, 5
  %v1951 = vpop.permute.xlu0 %1950
  %1952 = vrot.lane.b32.xlu0 %v590, 5
  %v1953 = vpop.permute.xlu0 %1952
  %1954 = vrot.lane.b32.xlu0 %v591, 5
  %v1955 = vpop.permute.xlu0 %1954
  %1956 = vrot.lane.b32.xlu0 %v592, 5
  %v1957 = vpop.permute.xlu0 %1956
  %1958 = vrot.lane.b32.xlu0 %v593, 5
  %v1959 = vpop.permute.xlu0 %1958
  %1960 = vrot.lane.b32.xlu0 %v594, 5
  %v1961 = vpop.permute.xlu0 %1960
  %1962 = vrot.lane.b32.xlu0 %v595, 5
  %v1963 = vpop.permute.xlu0 %1962
  %1964 = vrot.lane.b32.xlu0 %v596, 5
  %v1965 = vpop.permute.xlu0 %1964
  %1966 = vrot.lane.b32.xlu0 %v597, 5
  %v1967 = vpop.permute.xlu0 %1966
  %1968 = vrot.lane.b32.xlu0 %v598, 5
  %v1969 = vpop.permute.xlu0 %1968
  %1970 = vrot.lane.b32.xlu0 %v599, 5
  %v1971 = vpop.permute.xlu0 %1970
  %1972 = vrot.lane.b32.xlu0 %v600, 5
  %v1973 = vpop.permute.xlu0 %1972
  %1974 = vrot.lane.b32.xlu0 %v601, 5
  %v1975 = vpop.permute.xlu0 %1974
  %1976 = vrot.lane.b32.xlu0 %v602, 5
  %v1977 = vpop.permute.xlu0 %1976
  %1978 = vrot.lane.b32.xlu0 %v603, 5
  %v1979 = vpop.permute.xlu0 %1978
  %1980 = vrot.lane.b32.xlu0 %v604, 5
  %v1981 = vpop.permute.xlu0 %1980
  %1982 = vrot.lane.b32.xlu0 %v605, 5
  %v1983 = vpop.permute.xlu0 %1982
  %1984 = vrot.lane.b32.xlu0 %v606, 5
  %v1985 = vpop.permute.xlu0 %1984
  %1986 = vrot.lane.b32.xlu0 %v607, 5
  %v1987 = vpop.permute.xlu0 %1986
  %1988 = vrot.lane.b32.xlu0 %v608, 5
  %v1989 = vpop.permute.xlu0 %1988
  %1990 = vrot.lane.b32.xlu0 %v609, 5
  %v1991 = vpop.permute.xlu0 %1990
  %1992 = vrot.lane.b32.xlu0 %v610, 5
  %v1993 = vpop.permute.xlu0 %1992
  %1994 = vrot.lane.b32.xlu0 %v611, 5
  %v1995 = vpop.permute.xlu0 %1994
  %1996 = vrot.lane.b32.xlu0 %v612, 5
  %v1997 = vpop.permute.xlu0 %1996
  %1998 = vrot.lane.b32.xlu0 %v613, 5
  %v1999 = vpop.permute.xlu0 %1998
  %2000 = vrot.lane.b32.xlu0 %v614, 5
  %v2001 = vpop.permute.xlu0 %2000
  %2002 = vrot.lane.b32.xlu0 %v615, 5
  %v2003 = vpop.permute.xlu0 %2002
  %2004 = vrot.lane.b32.xlu0 %v616, 5
  %v2005 = vpop.permute.xlu0 %2004
  %2006 = vrot.lane.b32.xlu0 %v617, 5
  %v2007 = vpop.permute.xlu0 %2006
  %2008 = vrot.lane.b32.xlu0 %v618, 5
  %v2009 = vpop.permute.xlu0 %2008
  %2010 = vrot.lane.b32.xlu0 %v619, 5
  %v2011 = vpop.permute.xlu0 %2010
  %2012 = vrot.lane.b32.xlu0 %v620, 5
  %v2013 = vpop.permute.xlu0 %2012
  %2014 = vrot.lane.b32.xlu0 %v621, 5
  %v2015 = vpop.permute.xlu0 %2014
  %2016 = vrot.lane.b32.xlu0 %v622, 5
  %v2017 = vpop.permute.xlu0 %2016
  %2018 = vrot.lane.b32.xlu0 %v623, 5
  %v2019 = vpop.permute.xlu0 %2018
  %2020 = vrot.lane.b32.xlu0 %v624, 5
  %v2021 = vpop.permute.xlu0 %2020
  %2022 = vrot.lane.b32.xlu0 %v625, 5
  %v2023 = vpop.permute.xlu0 %2022
  %2024 = vrot.lane.b32.xlu0 %v626, 5
  %v2025 = vpop.permute.xlu0 %2024
  %2026 = vrot.lane.b32.xlu0 %v627, 5
  %v2027 = vpop.permute.xlu0 %2026
  %2028 = vrot.lane.b32.xlu0 %v628, 5
  %v2029 = vpop.permute.xlu0 %2028
  %2030 = vrot.lane.b32.xlu0 %v629, 5
  %v2031 = vpop.permute.xlu0 %2030
  %2032 = vrot.lane.b32.xlu0 %v630, 5
  %v2033 = vpop.permute.xlu0 %2032
  %2034 = vrot.lane.b32.xlu0 %v631, 5
  %v2035 = vpop.permute.xlu0 %2034
  %2036 = vrot.lane.b32.xlu0 %v632, 5
  %v2037 = vpop.permute.xlu0 %2036
  %2038 = vrot.lane.b32.xlu0 %v633, 5
  %v2039 = vpop.permute.xlu0 %2038
  %2040 = vrot.lane.b32.xlu0 %v634, 5
  %v2041 = vpop.permute.xlu0 %2040
  %2042 = vrot.lane.b32.xlu0 %v635, 5
  %v2043 = vpop.permute.xlu0 %2042
  %2044 = vrot.lane.b32.xlu0 %v636, 5
  %v2045 = vpop.permute.xlu0 %2044
  %2174 = vrot.lane.b32.xlu0 %v638, 6
  %v2175 = vpop.permute.xlu0 %2174
  %2176 = vrot.lane.b32.xlu0 %v639, 6
  %v2177 = vpop.permute.xlu0 %2176
  %2178 = vrot.lane.b32.xlu0 %v640, 6
  %v2179 = vpop.permute.xlu0 %2178
  %2180 = vrot.lane.b32.xlu0 %v641, 6
  %v2181 = vpop.permute.xlu0 %2180
  %2182 = vrot.lane.b32.xlu0 %v642, 6
  %v2183 = vpop.permute.xlu0 %2182
  %2184 = vrot.lane.b32.xlu0 %v643, 6
  %v2185 = vpop.permute.xlu0 %2184
  %2186 = vrot.lane.b32.xlu0 %v644, 6
  %v2187 = vpop.permute.xlu0 %2186
  %2188 = vrot.lane.b32.xlu0 %v645, 6
  %v2189 = vpop.permute.xlu0 %2188
  %2190 = vrot.lane.b32.xlu0 %v646, 6
  %v2191 = vpop.permute.xlu0 %2190
  %2192 = vrot.lane.b32.xlu0 %v647, 6
  %v2193 = vpop.permute.xlu0 %2192
  %2194 = vrot.lane.b32.xlu0 %v648, 6
  %v2195 = vpop.permute.xlu0 %2194
  %2196 = vrot.lane.b32.xlu0 %v649, 6
  %v2197 = vpop.permute.xlu0 %2196
  %2198 = vrot.lane.b32.xlu0 %v650, 6
  %v2199 = vpop.permute.xlu0 %2198
  %2200 = vrot.lane.b32.xlu0 %v651, 6
  %v2201 = vpop.permute.xlu0 %2200
  %2202 = vrot.lane.b32.xlu0 %v652, 6
  %v2203 = vpop.permute.xlu0 %2202
  %2204 = vrot.lane.b32.xlu0 %v653, 6
  %v2205 = vpop.permute.xlu0 %2204
  %2206 = vrot.lane.b32.xlu0 %v654, 6
  %v2207 = vpop.permute.xlu0 %2206
  %2208 = vrot.lane.b32.xlu0 %v655, 6
  %v2209 = vpop.permute.xlu0 %2208
  %2210 = vrot.lane.b32.xlu0 %v656, 6
  %v2211 = vpop.permute.xlu0 %2210
  %2212 = vrot.lane.b32.xlu0 %v657, 6
  %v2213 = vpop.permute.xlu0 %2212
  %2214 = vrot.lane.b32.xlu0 %v658, 6
  %v2215 = vpop.permute.xlu0 %2214
  %2216 = vrot.lane.b32.xlu0 %v659, 6
  %v2217 = vpop.permute.xlu0 %2216
  %2218 = vrot.lane.b32.xlu0 %v660, 6
  %v2219 = vpop.permute.xlu0 %2218
  %2220 = vrot.lane.b32.xlu0 %v661, 6
  %v2221 = vpop.permute.xlu0 %2220
  %2222 = vrot.lane.b32.xlu0 %v662, 6
  %v2223 = vpop.permute.xlu0 %2222
  %2224 = vrot.lane.b32.xlu0 %v663, 6
  %v2225 = vpop.permute.xlu0 %2224
  %2226 = vrot.lane.b32.xlu0 %v664, 6
  %v2227 = vpop.permute.xlu0 %2226
  %2228 = vrot.lane.b32.xlu0 %v665, 6
  %v2229 = vpop.permute.xlu0 %2228
  %2230 = vrot.lane.b32.xlu0 %v666, 6
  %v2231 = vpop.permute.xlu0 %2230
  %2232 = vrot.lane.b32.xlu0 %v667, 6
  %v2233 = vpop.permute.xlu0 %2232
  %2234 = vrot.lane.b32.xlu0 %v668, 6
  %v2235 = vpop.permute.xlu0 %2234
  %2236 = vrot.lane.b32.xlu0 %v669, 6
  %v2237 = vpop.permute.xlu0 %2236
  %2238 = vrot.lane.b32.xlu0 %v670, 6
  %v2239 = vpop.permute.xlu0 %2238
  %2240 = vrot.lane.b32.xlu0 %v671, 6
  %v2241 = vpop.permute.xlu0 %2240
  %2242 = vrot.lane.b32.xlu0 %v672, 6
  %v2243 = vpop.permute.xlu0 %2242
  %2244 = vrot.lane.b32.xlu0 %v673, 6
  %v2245 = vpop.permute.xlu0 %2244
  %2246 = vrot.lane.b32.xlu0 %v674, 6
  %v2247 = vpop.permute.xlu0 %2246
  %2248 = vrot.lane.b32.xlu0 %v675, 6
  %v2249 = vpop.permute.xlu0 %2248
  %2250 = vrot.lane.b32.xlu0 %v676, 6
  %v2251 = vpop.permute.xlu0 %2250
  %2252 = vrot.lane.b32.xlu0 %v677, 6
  %v2253 = vpop.permute.xlu0 %2252
  %2254 = vrot.lane.b32.xlu0 %v678, 6
  %v2255 = vpop.permute.xlu0 %2254
  %2256 = vrot.lane.b32.xlu0 %v679, 6
  %v2257 = vpop.permute.xlu0 %2256
  %2258 = vrot.lane.b32.xlu0 %v680, 6
  %v2259 = vpop.permute.xlu0 %2258
  %2260 = vrot.lane.b32.xlu0 %v681, 6
  %v2261 = vpop.permute.xlu0 %2260
  %2262 = vrot.lane.b32.xlu0 %v682, 6
  %v2263 = vpop.permute.xlu0 %2262
  %2264 = vrot.lane.b32.xlu0 %v683, 6
  %v2265 = vpop.permute.xlu0 %2264
  %2266 = vrot.lane.b32.xlu0 %v684, 6
  %v2267 = vpop.permute.xlu0 %2266
  %2268 = vrot.lane.b32.xlu0 %v685, 6
  %v2269 = vpop.permute.xlu0 %2268
  %2270 = vrot.lane.b32.xlu0 %v686, 6
  %v2271 = vpop.permute.xlu0 %2270
  %2272 = vrot.lane.b32.xlu0 %v687, 6
  %v2273 = vpop.permute.xlu0 %2272
  %2274 = vrot.lane.b32.xlu0 %v688, 6
  %v2275 = vpop.permute.xlu0 %2274
  %2276 = vrot.lane.b32.xlu0 %v689, 6
  %v2277 = vpop.permute.xlu0 %2276
  %2278 = vrot.lane.b32.xlu0 %v690, 6
  %v2279 = vpop.permute.xlu0 %2278
  %2280 = vrot.lane.b32.xlu0 %v691, 6
  %v2281 = vpop.permute.xlu0 %2280
  %2282 = vrot.lane.b32.xlu0 %v692, 6
  %v2283 = vpop.permute.xlu0 %2282
  %2284 = vrot.lane.b32.xlu0 %v693, 6
  %v2285 = vpop.permute.xlu0 %2284
  %2286 = vrot.lane.b32.xlu0 %v694, 6
  %v2287 = vpop.permute.xlu0 %2286
  %2288 = vrot.lane.b32.xlu0 %v695, 6
  %v2289 = vpop.permute.xlu0 %2288
  %2290 = vrot.lane.b32.xlu0 %v696, 6
  %v2291 = vpop.permute.xlu0 %2290
  %2292 = vrot.lane.b32.xlu0 %v697, 6
  %v2293 = vpop.permute.xlu0 %2292
  %2294 = vrot.lane.b32.xlu0 %v698, 6
  %v2295 = vpop.permute.xlu0 %2294
  %2296 = vrot.lane.b32.xlu0 %v699, 6
  %v2297 = vpop.permute.xlu0 %2296
  %2298 = vrot.lane.b32.xlu0 %v700, 6
  %v2299 = vpop.permute.xlu0 %2298
  %2300 = vrot.lane.b32.xlu0 %v701, 6
  %v2301 = vpop.permute.xlu0 %2300
  %2430 = vrot.lane.b32.xlu0 %v702, 7
  %v2431 = vpop.permute.xlu0 %2430
  %2432 = vrot.lane.b32.xlu0 %v703, 7
  %v2433 = vpop.permute.xlu0 %2432
  %2434 = vrot.lane.b32.xlu0 %v704, 7
  %v2435 = vpop.permute.xlu0 %2434
  %2436 = vrot.lane.b32.xlu0 %v705, 7
  %v2437 = vpop.permute.xlu0 %2436
  %2438 = vrot.lane.b32.xlu0 %v706, 7
  %v2439 = vpop.permute.xlu0 %2438
  %2440 = vrot.lane.b32.xlu0 %v707, 7
  %v2441 = vpop.permute.xlu0 %2440
  %2442 = vrot.lane.b32.xlu0 %v708, 7
  %v2443 = vpop.permute.xlu0 %2442
  %2444 = vrot.lane.b32.xlu0 %v709, 7
  %v2445 = vpop.permute.xlu0 %2444
  %2446 = vrot.lane.b32.xlu0 %v710, 7
  %v2447 = vpop.permute.xlu0 %2446
  %2448 = vrot.lane.b32.xlu0 %v711, 7
  %v2449 = vpop.permute.xlu0 %2448
  %2450 = vrot.lane.b32.xlu0 %v712, 7
  %v2451 = vpop.permute.xlu0 %2450
  %2452 = vrot.lane.b32.xlu0 %v713, 7
  %v2453 = vpop.permute.xlu0 %2452
  %2454 = vrot.lane.b32.xlu0 %v714, 7
  %v2455 = vpop.permute.xlu0 %2454
  %2456 = vrot.lane.b32.xlu0 %v715, 7
  %v2457 = vpop.permute.xlu0 %2456
  %2458 = vrot.lane.b32.xlu0 %v716, 7
  %v2459 = vpop.permute.xlu0 %2458
  %2460 = vrot.lane.b32.xlu0 %v717, 7
  %v2461 = vpop.permute.xlu0 %2460
  %2462 = vrot.lane.b32.xlu0 %v718, 7
  %v2463 = vpop.permute.xlu0 %2462
  %2464 = vrot.lane.b32.xlu0 %v719, 7
  %v2465 = vpop.permute.xlu0 %2464
  %2466 = vrot.lane.b32.xlu0 %v720, 7
  %v2467 = vpop.permute.xlu0 %2466
  %2468 = vrot.lane.b32.xlu0 %v721, 7
  %v2469 = vpop.permute.xlu0 %2468
  %2470 = vrot.lane.b32.xlu0 %v722, 7
  %v2471 = vpop.permute.xlu0 %2470
  %2472 = vrot.lane.b32.xlu0 %v723, 7
  %v2473 = vpop.permute.xlu0 %2472
  %2474 = vrot.lane.b32.xlu0 %v724, 7
  %v2475 = vpop.permute.xlu0 %2474
  %2476 = vrot.lane.b32.xlu0 %v725, 7
  %v2477 = vpop.permute.xlu0 %2476
  %2478 = vrot.lane.b32.xlu0 %v726, 7
  %v2479 = vpop.permute.xlu0 %2478
  %2480 = vrot.lane.b32.xlu0 %v727, 7
  %v2481 = vpop.permute.xlu0 %2480
  %2482 = vrot.lane.b32.xlu0 %v728, 7
  %v2483 = vpop.permute.xlu0 %2482
  %2484 = vrot.lane.b32.xlu0 %v729, 7
  %v2485 = vpop.permute.xlu0 %2484
  %2486 = vrot.lane.b32.xlu0 %v730, 7
  %v2487 = vpop.permute.xlu0 %2486
  %2488 = vrot.lane.b32.xlu0 %v731, 7
  %v2489 = vpop.permute.xlu0 %2488
  %2490 = vrot.lane.b32.xlu0 %v732, 7
  %v2491 = vpop.permute.xlu0 %2490
  %2492 = vrot.lane.b32.xlu0 %v733, 7
  %v2493 = vpop.permute.xlu0 %2492
  %2494 = vrot.lane.b32.xlu0 %v734, 7
  %v2495 = vpop.permute.xlu0 %2494
  %2496 = vrot.lane.b32.xlu0 %v735, 7
  %v2497 = vpop.permute.xlu0 %2496
  %2498 = vrot.lane.b32.xlu0 %v736, 7
  %v2499 = vpop.permute.xlu0 %2498
  %2500 = vrot.lane.b32.xlu0 %v737, 7
  %v2501 = vpop.permute.xlu0 %2500
  %2502 = vrot.lane.b32.xlu0 %v738, 7
  %v2503 = vpop.permute.xlu0 %2502
  %2504 = vrot.lane.b32.xlu0 %v739, 7
  %v2505 = vpop.permute.xlu0 %2504
  %2506 = vrot.lane.b32.xlu0 %v740, 7
  %v2507 = vpop.permute.xlu0 %2506
  %2508 = vrot.lane.b32.xlu0 %v741, 7
  %v2509 = vpop.permute.xlu0 %2508
  %2510 = vrot.lane.b32.xlu0 %v742, 7
  %v2511 = vpop.permute.xlu0 %2510
  %2512 = vrot.lane.b32.xlu0 %v743, 7
  %v2513 = vpop.permute.xlu0 %2512
  %2514 = vrot.lane.b32.xlu0 %v744, 7
  %v2515 = vpop.permute.xlu0 %2514
  %2516 = vrot.lane.b32.xlu0 %v745, 7
  %v2517 = vpop.permute.xlu0 %2516
  %2518 = vrot.lane.b32.xlu0 %v746, 7
  %v2519 = vpop.permute.xlu0 %2518
  %2520 = vrot.lane.b32.xlu0 %v747, 7
  %v2521 = vpop.permute.xlu0 %2520
  %2522 = vrot.lane.b32.xlu0 %v748, 7
  %v2523 = vpop.permute.xlu0 %2522
  %2524 = vrot.lane.b32.xlu0 %v749, 7
  %v2525 = vpop.permute.xlu0 %2524
  %2526 = vrot.lane.b32.xlu0 %v750, 7
  %v2527 = vpop.permute.xlu0 %2526
  %2528 = vrot.lane.b32.xlu0 %v751, 7
  %v2529 = vpop.permute.xlu0 %2528
  %2530 = vrot.lane.b32.xlu0 %v752, 7
  %v2531 = vpop.permute.xlu0 %2530
  %2532 = vrot.lane.b32.xlu0 %v753, 7
  %v2533 = vpop.permute.xlu0 %2532
  %2534 = vrot.lane.b32.xlu0 %v754, 7
  %v2535 = vpop.permute.xlu0 %2534
  %2536 = vrot.lane.b32.xlu0 %v755, 7
  %v2537 = vpop.permute.xlu0 %2536
  %2538 = vrot.lane.b32.xlu0 %v756, 7
  %v2539 = vpop.permute.xlu0 %2538
  %2540 = vrot.lane.b32.xlu0 %v757, 7
  %v2541 = vpop.permute.xlu0 %2540
  %2542 = vrot.lane.b32.xlu0 %v758, 7
  %v2543 = vpop.permute.xlu0 %2542
  %2544 = vrot.lane.b32.xlu0 %v759, 7
  %v2545 = vpop.permute.xlu0 %2544
  %2546 = vrot.lane.b32.xlu0 %v760, 7
  %v2547 = vpop.permute.xlu0 %2546
  %2548 = vrot.lane.b32.xlu0 %v761, 7
  %v2549 = vpop.permute.xlu0 %2548
  %2550 = vrot.lane.b32.xlu0 %v762, 7
  %v2551 = vpop.permute.xlu0 %2550
  %2552 = vrot.lane.b32.xlu0 %v763, 7
  %v2553 = vpop.permute.xlu0 %2552
  %2554 = vrot.lane.b32.xlu0 %v764, 7
  %v2555 = vpop.permute.xlu0 %2554
  %2556 = vrot.lane.b32.xlu0 %v765, 7
  %v2557 = vpop.permute.xlu0 %2556
  %2686 = vrot.lane.b32.xlu0 %v766, 8
  %v2687 = vpop.permute.xlu0 %2686
  %2688 = vrot.lane.b32.xlu0 %v767, 8
  %v2689 = vpop.permute.xlu0 %2688
  %2690 = vrot.lane.b32.xlu0 %v768, 8
  %v2691 = vpop.permute.xlu0 %2690
  %2692 = vrot.lane.b32.xlu0 %v769, 8
  %v2693 = vpop.permute.xlu0 %2692
  %2694 = vrot.lane.b32.xlu0 %v770, 8
  %v2695 = vpop.permute.xlu0 %2694
  %2696 = vrot.lane.b32.xlu0 %v771, 8
  %v2697 = vpop.permute.xlu0 %2696
  %2698 = vrot.lane.b32.xlu0 %v772, 8
  %v2699 = vpop.permute.xlu0 %2698
  %2700 = vrot.lane.b32.xlu0 %v773, 8
  %v2701 = vpop.permute.xlu0 %2700
  %2702 = vrot.lane.b32.xlu0 %v774, 8
  %v2703 = vpop.permute.xlu0 %2702
  %2704 = vrot.lane.b32.xlu0 %v775, 8
  %v2705 = vpop.permute.xlu0 %2704
  %2706 = vrot.lane.b32.xlu0 %v776, 8
  %v2707 = vpop.permute.xlu0 %2706
  %2708 = vrot.lane.b32.xlu0 %v777, 8
  %v2709 = vpop.permute.xlu0 %2708
  %2710 = vrot.lane.b32.xlu0 %v778, 8
  %v2711 = vpop.permute.xlu0 %2710
  %2712 = vrot.lane.b32.xlu0 %v779, 8
  %v2713 = vpop.permute.xlu0 %2712
  %2714 = vrot.lane.b32.xlu0 %v780, 8
  %v2715 = vpop.permute.xlu0 %2714
  %2716 = vrot.lane.b32.xlu0 %v781, 8
  %v2717 = vpop.permute.xlu0 %2716
  %2718 = vrot.lane.b32.xlu0 %v782, 8
  %v2719 = vpop.permute.xlu0 %2718
  %2720 = vrot.lane.b32.xlu0 %v783, 8
  %v2721 = vpop.permute.xlu0 %2720
  %2722 = vrot.lane.b32.xlu0 %v784, 8
  %v2723 = vpop.permute.xlu0 %2722
  %2724 = vrot.lane.b32.xlu0 %v785, 8
  %v2725 = vpop.permute.xlu0 %2724
  %2726 = vrot.lane.b32.xlu0 %v786, 8
  %v2727 = vpop.permute.xlu0 %2726
  %2728 = vrot.lane.b32.xlu0 %v787, 8
  %v2729 = vpop.permute.xlu0 %2728
  %2730 = vrot.lane.b32.xlu0 %v788, 8
  %v2731 = vpop.permute.xlu0 %2730
  %2732 = vrot.lane.b32.xlu0 %v789, 8
  %v2733 = vpop.permute.xlu0 %2732
  %2734 = vrot.lane.b32.xlu0 %v790, 8
  %v2735 = vpop.permute.xlu0 %2734
  %2736 = vrot.lane.b32.xlu0 %v791, 8
  %v2737 = vpop.permute.xlu0 %2736
  %2738 = vrot.lane.b32.xlu0 %v792, 8
  %v2739 = vpop.permute.xlu0 %2738
  %2740 = vrot.lane.b32.xlu0 %v793, 8
  %v2741 = vpop.permute.xlu0 %2740
  %2742 = vrot.lane.b32.xlu0 %v794, 8
  %v2743 = vpop.permute.xlu0 %2742
  %2744 = vrot.lane.b32.xlu0 %v795, 8
  %v2745 = vpop.permute.xlu0 %2744
  %2746 = vrot.lane.b32.xlu0 %v796, 8
  %v2747 = vpop.permute.xlu0 %2746
  %2748 = vrot.lane.b32.xlu0 %v797, 8
  %v2749 = vpop.permute.xlu0 %2748
  %2750 = vrot.lane.b32.xlu0 %v798, 8
  %v2751 = vpop.permute.xlu0 %2750
  %2752 = vrot.lane.b32.xlu0 %v799, 8
  %v2753 = vpop.permute.xlu0 %2752
  %2754 = vrot.lane.b32.xlu0 %v800, 8
  %v2755 = vpop.permute.xlu0 %2754
  %2756 = vrot.lane.b32.xlu0 %v801, 8
  %v2757 = vpop.permute.xlu0 %2756
  %2758 = vrot.lane.b32.xlu0 %v802, 8
  %v2759 = vpop.permute.xlu0 %2758
  %2760 = vrot.lane.b32.xlu0 %v803, 8
  %v2761 = vpop.permute.xlu0 %2760
  %2762 = vrot.lane.b32.xlu0 %v804, 8
  %v2763 = vpop.permute.xlu0 %2762
  %2764 = vrot.lane.b32.xlu0 %v805, 8
  %v2765 = vpop.permute.xlu0 %2764
  %2766 = vrot.lane.b32.xlu0 %v806, 8
  %v2767 = vpop.permute.xlu0 %2766
  %2768 = vrot.lane.b32.xlu0 %v807, 8
  %v2769 = vpop.permute.xlu0 %2768
  %2770 = vrot.lane.b32.xlu0 %v808, 8
  %v2771 = vpop.permute.xlu0 %2770
  %2772 = vrot.lane.b32.xlu0 %v809, 8
  %v2773 = vpop.permute.xlu0 %2772
  %2774 = vrot.lane.b32.xlu0 %v810, 8
  %v2775 = vpop.permute.xlu0 %2774
  %2776 = vrot.lane.b32.xlu0 %v811, 8
  %v2777 = vpop.permute.xlu0 %2776
  %2778 = vrot.lane.b32.xlu0 %v812, 8
  %v2779 = vpop.permute.xlu0 %2778
  %2780 = vrot.lane.b32.xlu0 %v813, 8
  %v2781 = vpop.permute.xlu0 %2780
  %2782 = vrot.lane.b32.xlu0 %v814, 8
  %v2783 = vpop.permute.xlu0 %2782
  %2784 = vrot.lane.b32.xlu0 %v815, 8
  %v2785 = vpop.permute.xlu0 %2784
  %2786 = vrot.lane.b32.xlu0 %v816, 8
  %v2787 = vpop.permute.xlu0 %2786
  %2788 = vrot.lane.b32.xlu0 %v817, 8
  %v2789 = vpop.permute.xlu0 %2788
  %2790 = vrot.lane.b32.xlu0 %v818, 8
  %v2791 = vpop.permute.xlu0 %2790
  %2792 = vrot.lane.b32.xlu0 %v819, 8
  %v2793 = vpop.permute.xlu0 %2792
  %2794 = vrot.lane.b32.xlu0 %v820, 8
  %v2795 = vpop.permute.xlu0 %2794
  %2796 = vrot.lane.b32.xlu0 %v821, 8
  %v2797 = vpop.permute.xlu0 %2796
  %2798 = vrot.lane.b32.xlu0 %v822, 8
  %v2799 = vpop.permute.xlu0 %2798
  %2800 = vrot.lane.b32.xlu0 %v823, 8
  %v2801 = vpop.permute.xlu0 %2800
  %2802 = vrot.lane.b32.xlu0 %v824, 8
  %v2803 = vpop.permute.xlu0 %2802
  %2804 = vrot.lane.b32.xlu0 %v825, 8
  %v2805 = vpop.permute.xlu0 %2804
  %2806 = vrot.lane.b32.xlu0 %v826, 8
  %v2807 = vpop.permute.xlu0 %2806
  %2808 = vrot.lane.b32.xlu0 %v827, 8
  %v2809 = vpop.permute.xlu0 %2808
  %2810 = vrot.lane.b32.xlu0 %v828, 8
  %v2811 = vpop.permute.xlu0 %2810
  %2812 = vrot.lane.b32.xlu0 %v829, 8
  %v2813 = vpop.permute.xlu0 %2812
  %v2878 = vsel %vm78, %v253, %v895
  %v2879 = vsel %vm78, %v254, %v897
  %v2880 = vsel %vm78, %v255, %v899
  %v2881 = vsel %vm78, %v256, %v901
  %v2882 = vsel %vm78, %v257, %v903
  %v2883 = vsel %vm78, %v258, %v905
  %v2884 = vsel %vm78, %v259, %v907
  %v2885 = vsel %vm78, %v260, %v909
  %v2886 = vsel %vm78, %v261, %v911
  %v2887 = vsel %vm78, %v262, %v913
  %v2888 = vsel %vm78, %v263, %v915
  %v2889 = vsel %vm78, %v264, %v917
  %v2890 = vsel %vm78, %v265, %v919
  %v2891 = vsel %vm78, %v266, %v921
  %v2892 = vsel %vm78, %v267, %v923
  %v2893 = vsel %vm78, %v268, %v925
  %v2894 = vsel %vm78, %v269, %v927
  %v2895 = vsel %vm78, %v270, %v929
  %v2896 = vsel %vm78, %v271, %v931
  %v2897 = vsel %vm78, %v272, %v933
  %v2898 = vsel %vm78, %v273, %v935
  %v2899 = vsel %vm78, %v274, %v937
  %v2900 = vsel %vm78, %v275, %v939
  %v2901 = vsel %vm78, %v276, %v941
  %v2902 = vsel %vm78, %v277, %v943
  %v2903 = vsel %vm78, %v278, %v945
  %v2904 = vsel %vm78, %v279, %v947
  %v2905 = vsel %vm78, %v280, %v949
  %v2906 = vsel %vm78, %v281, %v951
  %v2907 = vsel %vm78, %v282, %v953
  %v2908 = vsel %vm78, %v283, %v955
  %v2909 = vsel %vm78, %v284, %v957
  %v2910 = vsel %vm78, %v285, %v959
  %v2911 = vsel %vm78, %v286, %v961
  %v2912 = vsel %vm78, %v287, %v963
  %v2913 = vsel %vm78, %v288, %v965
  %v2914 = vsel %vm78, %v289, %v967
  %v2915 = vsel %vm78, %v290, %v969
  %v2916 = vsel %vm78, %v291, %v971
  %v2917 = vsel %vm78, %v292, %v973
  %v2918 = vsel %vm78, %v293, %v975
  %v2919 = vsel %vm78, %v294, %v977
  %v2920 = vsel %vm78, %v295, %v979
  %v2921 = vsel %vm78, %v296, %v981
  %v2922 = vsel %vm78, %v297, %v983
  %v2923 = vsel %vm78, %v298, %v985
  %v2924 = vsel %vm78, %v299, %v987
  %v2925 = vsel %vm78, %v300, %v989
  %v2926 = vsel %vm78, %v301, %v991
  %v2927 = vsel %vm78, %v302, %v993
  %v2928 = vsel %vm78, %v303, %v995
  %v2929 = vsel %vm78, %v304, %v997
  %v2930 = vsel %vm78, %v305, %v999
  %v2931 = vsel %vm78, %v306, %v1001
  %v2932 = vsel %vm78, %v307, %v1003
  %v2933 = vsel %vm78, %v308, %v1005
  %v2934 = vsel %vm78, %v309, %v1007
  %v2935 = vsel %vm78, %v310, %v1009
  %v2936 = vsel %vm78, %v311, %v1011
  %v2937 = vsel %vm78, %v312, %v1013
  %v2938 = vsel %vm78, %v313, %v1015
  %v2939 = vsel %vm78, %v314, %v1017
  %v2940 = vsel %vm78, %v315, %v1019
  %v2941 = vsel %vm78, %v316, %v1021
  %vm2942 = vcmask 15360
  %v2943 = vsel %vm2942, %v2878, %v1151
  %v2944 = vsel %vm2942, %v2879, %v1153
  %v2945 = vsel %vm2942, %v2880, %v1155
  %v2946 = vsel %vm2942, %v2881, %v1157
  %v2947 = vsel %vm2942, %v2882, %v1159
  %v2948 = vsel %vm2942, %v2883, %v1161
  %v2949 = vsel %vm2942, %v2884, %v1163
  %v2950 = vsel %vm2942, %v2885, %v1165
  %v2951 = vsel %vm2942, %v2886, %v1167
  %v2952 = vsel %vm2942, %v2887, %v1169
  %v2953 = vsel %vm2942, %v2888, %v1171
  %v2954 = vsel %vm2942, %v2889, %v1173
  %v2955 = vsel %vm2942, %v2890, %v1175
  %v2956 = vsel %vm2942, %v2891, %v1177
  %v2957 = vsel %vm2942, %v2892, %v1179
  %v2958 = vsel %vm2942, %v2893, %v1181
  %v2959 = vsel %vm2942, %v2894, %v1183
  %v2960 = vsel %vm2942, %v2895, %v1185
  %v2961 = vsel %vm2942, %v2896, %v1187
  %v2962 = vsel %vm2942, %v2897, %v1189
  %v2963 = vsel %vm2942, %v2898, %v1191
  %v2964 = vsel %vm2942, %v2899, %v1193
  %v2965 = vsel %vm2942, %v2900, %v1195
  %v2966 = vsel %vm2942, %v2901, %v1197
  %v2967 = vsel %vm2942, %v2902, %v1199
  %v2968 = vsel %vm2942, %v2903, %v1201
  %v2969 = vsel %vm2942, %v2904, %v1203
  %v2970 = vsel %vm2942, %v2905, %v1205
  %v2971 = vsel %vm2942, %v2906, %v1207
  %v2972 = vsel %vm2942, %v2907, %v1209
  %v2973 = vsel %vm2942, %v2908, %v1211
  %v2974 = vsel %vm2942, %v2909, %v1213
  %v2975 = vsel %vm2942, %v2910, %v1215
  %v2976 = vsel %vm2942, %v2911, %v1217
  %v2977 = vsel %vm2942, %v2912, %v1219
  %v2978 = vsel %vm2942, %v2913, %v1221
  %v2979 = vsel %vm2942, %v2914, %v1223
  %v2980 = vsel %vm2942, %v2915, %v1225
  %v2981 = vsel %vm2942, %v2916, %v1227
  %v2982 = vsel %vm2942, %v2917, %v1229
  %v2983 = vsel %vm2942, %v2918, %v1231
  %v2984 = vsel %vm2942, %v2919, %v1233
  %v2985 = vsel %vm2942, %v2920, %v1235
  %v2986 = vsel %vm2942, %v2921, %v1237
  %v2987 = vsel %vm2942, %v2922, %v1239
  %v2988 = vsel %vm2942, %v2923, %v1241
  %v2989 = vsel %vm2942, %v2924, %v1243
  %v2990 = vsel %vm2942, %v2925, %v1245
  %v2991 = vsel %vm2942, %v2926, %v1247
  %v2992 = vsel %vm2942, %v2927, %v1249
  %v2993 = vsel %vm2942, %v2928, %v1251
  %v2994 = vsel %vm2942, %v2929, %v1253
  %v2995 = vsel %vm2942, %v2930, %v1255
  %v2996 = vsel %vm2942, %v2931, %v1257
  %v2997 = vsel %vm2942, %v2932, %v1259
  %v2998 = vsel %vm2942, %v2933, %v1261
  %v2999 = vsel %vm2942, %v2934, %v1263
  %v3000 = vsel %vm2942, %v2935, %v1265
  %v3001 = vsel %vm2942, %v2936, %v1267
  %v3002 = vsel %vm2942, %v2937, %v1269
  %v3003 = vsel %vm2942, %v2938, %v1271
  %v3004 = vsel %vm2942, %v2939, %v1273
  %v3005 = vsel %vm2942, %v2940, %v1275
  %v3006 = vsel %vm2942, %v2941, %v1277
  %vm3007 = vcmask 23552
  %v3008 = vsel %vm3007, %v2943, %v1407
  %v3009 = vsel %vm3007, %v2944, %v1409
  %v3010 = vsel %vm3007, %v2945, %v1411
  %v3011 = vsel %vm3007, %v2946, %v1413
  %v3012 = vsel %vm3007, %v2947, %v1415
  %v3013 = vsel %vm3007, %v2948, %v1417
  %v3014 = vsel %vm3007, %v2949, %v1419
  %v3015 = vsel %vm3007, %v2950, %v1421
  %v3016 = vsel %vm3007, %v2951, %v1423
  %v3017 = vsel %vm3007, %v2952, %v1425
  %v3018 = vsel %vm3007, %v2953, %v1427
  %v3019 = vsel %vm3007, %v2954, %v1429
  %v3020 = vsel %vm3007, %v2955, %v1431
  %v3021 = vsel %vm3007, %v2956, %v1433
  %v3022 = vsel %vm3007, %v2957, %v1435
  %v3023 = vsel %vm3007, %v2958, %v1437
  %v3024 = vsel %vm3007, %v2959, %v1439
  %v3025 = vsel %vm3007, %v2960, %v1441
  %v3026 = vsel %vm3007, %v2961, %v1443
  %v3027 = vsel %vm3007, %v2962, %v1445
  %v3028 = vsel %vm3007, %v2963, %v1447
  %v3029 = vsel %vm3007, %v2964, %v1449
  %v3030 = vsel %vm3007, %v2965, %v1451
  %v3031 = vsel %vm3007, %v2966, %v1453
  %v3032 = vsel %vm3007, %v2967, %v1455
  %v3033 = vsel %vm3007, %v2968, %v1457
  %v3034 = vsel %vm3007, %v2969, %v1459
  %v3035 = vsel %vm3007, %v2970, %v1461
  %v3036 = vsel %vm3007, %v2971, %v1463
  %v3037 = vsel %vm3007, %v2972, %v1465
  %v3038 = vsel %vm3007, %v2973, %v1467
  %v3039 = vsel %vm3007, %v2974, %v1469
  %v3040 = vsel %vm3007, %v2975, %v1471
  %v3041 = vsel %vm3007, %v2976, %v1473
  %v3042 = vsel %vm3007, %v2977, %v1475
  %v3043 = vsel %vm3007, %v2978, %v1477
  %v3044 = vsel %vm3007, %v2979, %v1479
  %v3045 = vsel %vm3007, %v2980, %v1481
  %v3046 = vsel %vm3007, %v2981, %v1483
  %v3047 = vsel %vm3007, %v2982, %v1485
  %v3048 = vsel %vm3007, %v2983, %v1487
  %v3049 = vsel %vm3007, %v2984, %v1489
  %v3050 = vsel %vm3007, %v2985, %v1491
  %v3051 = vsel %vm3007, %v2986, %v1493
  %v3052 = vsel %vm3007, %v2987, %v1495
  %v3053 = vsel %vm3007, %v2988, %v1497
  %v3054 = vsel %vm3007, %v2989, %v1499
  %v3055 = vsel %vm3007, %v2990, %v1501
  %v3056 = vsel %vm3007, %v2991, %v1503
  %v3057 = vsel %vm3007, %v2992, %v1505
  %v3058 = vsel %vm3007, %v2993, %v1507
  %v3059 = vsel %vm3007, %v2994, %v1509
  %v3060 = vsel %vm3007, %v2995, %v1511
  %v3061 = vsel %vm3007, %v2996, %v1513
  %v3062 = vsel %vm3007, %v2997, %v1515
  %v3063 = vsel %vm3007, %v2998, %v1517
  %v3064 = vsel %vm3007, %v2999, %v1519
  %v3065 = vsel %vm3007, %v3000, %v1521
  %v3066 = vsel %vm3007, %v3001, %v1523
  %v3067 = vsel %vm3007, %v3002, %v1525
  %v3068 = vsel %vm3007, %v3003, %v1527
  %v3069 = vsel %vm3007, %v3004, %v1529
  %v3070 = vsel %vm3007, %v3005, %v1531
  %v3071 = vsel %vm3007, %v3006, %v1533
  %vm3072 = vcmask 31744
  %v3073 = vsel %vm3072, %v3008, %v1663
  %v3074 = vsel %vm3072, %v3009, %v1665
  %v3075 = vsel %vm3072, %v3010, %v1667
  %v3076 = vsel %vm3072, %v3011, %v1669
  %v3077 = vsel %vm3072, %v3012, %v1671
  %v3078 = vsel %vm3072, %v3013, %v1673
  %v3079 = vsel %vm3072, %v3014, %v1675
  %v3080 = vsel %vm3072, %v3015, %v1677
  %v3081 = vsel %vm3072, %v3016, %v1679
  %v3082 = vsel %vm3072, %v3017, %v1681
  %v3083 = vsel %vm3072, %v3018, %v1683
  %v3084 = vsel %vm3072, %v3019, %v1685
  %v3085 = vsel %vm3072, %v3020, %v1687
  %v3086 = vsel %vm3072, %v3021, %v1689
  %v3087 = vsel %vm3072, %v3022, %v1691
  %v3088 = vsel %vm3072, %v3023, %v1693
  %v3089 = vsel %vm3072, %v3024, %v1695
  %v3090 = vsel %vm3072, %v3025, %v1697
  %v3091 = vsel %vm3072, %v3026, %v1699
  %v3092 = vsel %vm3072, %v3027, %v1701
  %v3093 = vsel %vm3072, %v3028, %v1703
  %v3094 = vsel %vm3072, %v3029, %v1705
  %v3095 = vsel %vm3072, %v3030, %v1707
  %v3096 = vsel %vm3072, %v3031, %v1709
  %v3097 = vsel %vm3072, %v3032, %v1711
  %v3098 = vsel %vm3072, %v3033, %v1713
  %v3099 = vsel %vm3072, %v3034, %v1715
  %v3100 = vsel %vm3072, %v3035, %v1717
  %v3101 = vsel %vm3072, %v3036, %v1719
  %v3102 = vsel %vm3072, %v3037, %v1721
  %v3103 = vsel %vm3072, %v3038, %v1723
  %v3104 = vsel %vm3072, %v3039, %v1725
  %v3105 = vsel %vm3072, %v3040, %v1727
  %v3106 = vsel %vm3072, %v3041, %v1729
  %v3107 = vsel %vm3072, %v3042, %v1731
  %v3108 = vsel %vm3072, %v3043, %v1733
  %v3109 = vsel %vm3072, %v3044, %v1735
  %v3110 = vsel %vm3072, %v3045, %v1737
  %v3111 = vsel %vm3072, %v3046, %v1739
  %v3112 = vsel %vm3072, %v3047, %v1741
  %v3113 = vsel %vm3072, %v3048, %v1743
  %v3114 = vsel %vm3072, %v3049, %v1745
  %v3115 = vsel %vm3072, %v3050, %v1747
  %v3116 = vsel %vm3072, %v3051, %v1749
  %v3117 = vsel %vm3072, %v3052, %v1751
  %v3118 = vsel %vm3072, %v3053, %v1753
  %v3119 = vsel %vm3072, %v3054, %v1755
  %v3120 = vsel %vm3072, %v3055, %v1757
  %v3121 = vsel %vm3072, %v3056, %v1759
  %v3122 = vsel %vm3072, %v3057, %v1761
  %v3123 = vsel %vm3072, %v3058, %v1763
  %v3124 = vsel %vm3072, %v3059, %v1765
  %v3125 = vsel %vm3072, %v3060, %v1767
  %v3126 = vsel %vm3072, %v3061, %v1769
  %v3127 = vsel %vm3072, %v3062, %v1771
  %v3128 = vsel %vm3072, %v3063, %v1773
  %v3129 = vsel %vm3072, %v3064, %v1775
  %v3130 = vsel %vm3072, %v3065, %v1777
  %v3131 = vsel %vm3072, %v3066, %v1779
  %v3132 = vsel %vm3072, %v3067, %v1781
  %v3133 = vsel %vm3072, %v3068, %v1783
  %v3134 = vsel %vm3072, %v3069, %v1785
  %v3135 = vsel %vm3072, %v3070, %v1787
  %v3136 = vsel %vm3072, %v3071, %v1789
  %vm3137 = vcmask 39936
  %v3138 = vsel %vm3137, %v3073, %v1919
  %v3139 = vsel %vm3137, %v3074, %v1921
  %v3140 = vsel %vm3137, %v3075, %v1923
  %v3141 = vsel %vm3137, %v3076, %v1925
  %v3142 = vsel %vm3137, %v3077, %v1927
  %v3143 = vsel %vm3137, %v3078, %v1929
  %v3144 = vsel %vm3137, %v3079, %v1931
  %v3145 = vsel %vm3137, %v3080, %v1933
  %v3146 = vsel %vm3137, %v3081, %v1935
  %v3147 = vsel %vm3137, %v3082, %v1937
  %v3148 = vsel %vm3137, %v3083, %v1939
  %v3149 = vsel %vm3137, %v3084, %v1941
  %v3150 = vsel %vm3137, %v3085, %v1943
  %v3151 = vsel %vm3137, %v3086, %v1945
  %v3152 = vsel %vm3137, %v3087, %v1947
  %v3153 = vsel %vm3137, %v3088, %v1949
  %v3154 = vsel %vm3137, %v3089, %v1951
  %v3155 = vsel %vm3137, %v3090, %v1953
  %v3156 = vsel %vm3137, %v3091, %v1955
  %v3157 = vsel %vm3137, %v3092, %v1957
  %v3158 = vsel %vm3137, %v3093, %v1959
  %v3159 = vsel %vm3137, %v3094, %v1961
  %v3160 = vsel %vm3137, %v3095, %v1963
  %v3161 = vsel %vm3137, %v3096, %v1965
  %v3162 = vsel %vm3137, %v3097, %v1967
  %v3163 = vsel %vm3137, %v3098, %v1969
  %v3164 = vsel %vm3137, %v3099, %v1971
  %v3165 = vsel %vm3137, %v3100, %v1973
  %v3166 = vsel %vm3137, %v3101, %v1975
  %v3167 = vsel %vm3137, %v3102, %v1977
  %v3168 = vsel %vm3137, %v3103, %v1979
  %v3169 = vsel %vm3137, %v3104, %v1981
  %v3170 = vsel %vm3137, %v3105, %v1983
  %v3171 = vsel %vm3137, %v3106, %v1985
  %v3172 = vsel %vm3137, %v3107, %v1987
  %v3173 = vsel %vm3137, %v3108, %v1989
  %v3174 = vsel %vm3137, %v3109, %v1991
  %v3175 = vsel %vm3137, %v3110, %v1993
  %v3176 = vsel %vm3137, %v3111, %v1995
  %v3177 = vsel %vm3137, %v3112, %v1997
  %v3178 = vsel %vm3137, %v3113, %v1999
  %v3179 = vsel %vm3137, %v3114, %v2001
  %v3180 = vsel %vm3137, %v3115, %v2003
  %v3181 = vsel %vm3137, %v3116, %v2005
  %v3182 = vsel %vm3137, %v3117, %v2007
  %v3183 = vsel %vm3137, %v3118, %v2009
  %v3184 = vsel %vm3137, %v3119, %v2011
  %v3185 = vsel %vm3137, %v3120, %v2013
  %v3186 = vsel %vm3137, %v3121, %v2015
  %v3187 = vsel %vm3137, %v3122, %v2017
  %v3188 = vsel %vm3137, %v3123, %v2019
  %v3189 = vsel %vm3137, %v3124, %v2021
  %v3190 = vsel %vm3137, %v3125, %v2023
  %v3191 = vsel %vm3137, %v3126, %v2025
  %v3192 = vsel %vm3137, %v3127, %v2027
  %v3193 = vsel %vm3137, %v3128, %v2029
  %v3194 = vsel %vm3137, %v3129, %v2031
  %v3195 = vsel %vm3137, %v3130, %v2033
  %v3196 = vsel %vm3137, %v3131, %v2035
  %v3197 = vsel %vm3137, %v3132, %v2037
  %v3198 = vsel %vm3137, %v3133, %v2039
  %v3199 = vsel %vm3137, %v3134, %v2041
  %v3200 = vsel %vm3137, %v3135, %v2043
  %v3201 = vsel %vm3137, %v3136, %v2045
  %vm3202 = vcmask 48128
  %v3203 = vsel %vm3202, %v3138, %v2175
  %v3204 = vsel %vm3202, %v3139, %v2177
  %v3205 = vsel %vm3202, %v3140, %v2179
  %v3206 = vsel %vm3202, %v3141, %v2181
  %v3207 = vsel %vm3202, %v3142, %v2183
  %v3208 = vsel %vm3202, %v3143, %v2185
  %v3209 = vsel %vm3202, %v3144, %v2187
  %v3210 = vsel %vm3202, %v3145, %v2189
  %v3211 = vsel %vm3202, %v3146, %v2191
  %v3212 = vsel %vm3202, %v3147, %v2193
  %v3213 = vsel %vm3202, %v3148, %v2195
  %v3214 = vsel %vm3202, %v3149, %v2197
  %v3215 = vsel %vm3202, %v3150, %v2199
  %v3216 = vsel %vm3202, %v3151, %v2201
  %v3217 = vsel %vm3202, %v3152, %v2203
  %v3218 = vsel %vm3202, %v3153, %v2205
  %v3219 = vsel %vm3202, %v3154, %v2207
  %v3220 = vsel %vm3202, %v3155, %v2209
  %v3221 = vsel %vm3202, %v3156, %v2211
  %v3222 = vsel %vm3202, %v3157, %v2213
  %v3223 = vsel %vm3202, %v3158, %v2215
  %v3224 = vsel %vm3202, %v3159, %v2217
  %v3225 = vsel %vm3202, %v3160, %v2219
  %v3226 = vsel %vm3202, %v3161, %v2221
  %v3227 = vsel %vm3202, %v3162, %v2223
  %v3228 = vsel %vm3202, %v3163, %v2225
  %v3229 = vsel %vm3202, %v3164, %v2227
  %v3230 = vsel %vm3202, %v3165, %v2229
  %v3231 = vsel %vm3202, %v3166, %v2231
  %v3232 = vsel %vm3202, %v3167, %v2233
  %v3233 = vsel %vm3202, %v3168, %v2235
  %v3234 = vsel %vm3202, %v3169, %v2237
  %v3235 = vsel %vm3202, %v3170, %v2239
  %v3236 = vsel %vm3202, %v3171, %v2241
  %v3237 = vsel %vm3202, %v3172, %v2243
  %v3238 = vsel %vm3202, %v3173, %v2245
  %v3239 = vsel %vm3202, %v3174, %v2247
  %v3240 = vsel %vm3202, %v3175, %v2249
  %v3241 = vsel %vm3202, %v3176, %v2251
  %v3242 = vsel %vm3202, %v3177, %v2253
  %v3243 = vsel %vm3202, %v3178, %v2255
  %v3244 = vsel %vm3202, %v3179, %v2257
  %v3245 = vsel %vm3202, %v3180, %v2259
  %v3246 = vsel %vm3202, %v3181, %v2261
  %v3247 = vsel %vm3202, %v3182, %v2263
  %v3248 = vsel %vm3202, %v3183, %v2265
  %v3249 = vsel %vm3202, %v3184, %v2267
  %v3250 = vsel %vm3202, %v3185, %v2269
  %v3251 = vsel %vm3202, %v3186, %v2271
  %v3252 = vsel %vm3202, %v3187, %v2273
  %v3253 = vsel %vm3202, %v3188, %v2275
  %v3254 = vsel %vm3202, %v3189, %v2277
  %v3255 = vsel %vm3202, %v3190, %v2279
  %v3256 = vsel %vm3202, %v3191, %v2281
  %v3257 = vsel %vm3202, %v3192, %v2283
  %v3258 = vsel %vm3202, %v3193, %v2285
  %v3259 = vsel %vm3202, %v3194, %v2287
  %v3260 = vsel %vm3202, %v3195, %v2289
  %v3261 = vsel %vm3202, %v3196, %v2291
  %v3262 = vsel %vm3202, %v3197, %v2293
  %v3263 = vsel %vm3202, %v3198, %v2295
  %v3264 = vsel %vm3202, %v3199, %v2297
  %v3265 = vsel %vm3202, %v3200, %v2299
  %v3266 = vsel %vm3202, %v3201, %v2301
  %vm3267 = vcmask 56320
  %v3268 = vsel %vm3267, %v3203, %v2431
  %v3269 = vsel %vm3267, %v3204, %v2433
  %v3270 = vsel %vm3267, %v3205, %v2435
  %v3271 = vsel %vm3267, %v3206, %v2437
  %v3272 = vsel %vm3267, %v3207, %v2439
  %v3273 = vsel %vm3267, %v3208, %v2441
  %v3274 = vsel %vm3267, %v3209, %v2443
  %v3275 = vsel %vm3267, %v3210, %v2445
  %v3276 = vsel %vm3267, %v3211, %v2447
  %v3277 = vsel %vm3267, %v3212, %v2449
  %v3278 = vsel %vm3267, %v3213, %v2451
  %v3279 = vsel %vm3267, %v3214, %v2453
  %v3280 = vsel %vm3267, %v3215, %v2455
  %v3281 = vsel %vm3267, %v3216, %v2457
  %v3282 = vsel %vm3267, %v3217, %v2459
  %v3283 = vsel %vm3267, %v3218, %v2461
  %v3284 = vsel %vm3267, %v3219, %v2463
  %v3285 = vsel %vm3267, %v3220, %v2465
  %v3286 = vsel %vm3267, %v3221, %v2467
  %v3287 = vsel %vm3267, %v3222, %v2469
  %v3288 = vsel %vm3267, %v3223, %v2471
  %v3289 = vsel %vm3267, %v3224, %v2473
  %v3290 = vsel %vm3267, %v3225, %v2475
  %v3291 = vsel %vm3267, %v3226, %v2477
  %v3292 = vsel %vm3267, %v3227, %v2479
  %v3293 = vsel %vm3267, %v3228, %v2481
  %v3294 = vsel %vm3267, %v3229, %v2483
  %v3295 = vsel %vm3267, %v3230, %v2485
  %v3296 = vsel %vm3267, %v3231, %v2487
  %v3297 = vsel %vm3267, %v3232, %v2489
  %v3298 = vsel %vm3267, %v3233, %v2491
  %v3299 = vsel %vm3267, %v3234, %v2493
  %v3300 = vsel %vm3267, %v3235, %v2495
  %v3301 = vsel %vm3267, %v3236, %v2497
  %v3302 = vsel %vm3267, %v3237, %v2499
  %v3303 = vsel %vm3267, %v3238, %v2501
  %v3304 = vsel %vm3267, %v3239, %v2503
  %v3305 = vsel %vm3267, %v3240, %v2505
  %v3306 = vsel %vm3267, %v3241, %v2507
  %v3307 = vsel %vm3267, %v3242, %v2509
  %v3308 = vsel %vm3267, %v3243, %v2511
  %v3309 = vsel %vm3267, %v3244, %v2513
  %v3310 = vsel %vm3267, %v3245, %v2515
  %v3311 = vsel %vm3267, %v3246, %v2517
  %v3312 = vsel %vm3267, %v3247, %v2519
  %v3313 = vsel %vm3267, %v3248, %v2521
  %v3314 = vsel %vm3267, %v3249, %v2523
  %v3315 = vsel %vm3267, %v3250, %v2525
  %v3316 = vsel %vm3267, %v3251, %v2527
  %v3317 = vsel %vm3267, %v3252, %v2529
  %v3318 = vsel %vm3267, %v3253, %v2531
  %v3319 = vsel %vm3267, %v3254, %v2533
  %v3320 = vsel %vm3267, %v3255, %v2535
  %v3321 = vsel %vm3267, %v3256, %v2537
  %v3322 = vsel %vm3267, %v3257, %v2539
  %v3323 = vsel %vm3267, %v3258, %v2541
  %v3324 = vsel %vm3267, %v3259, %v2543
  %v3325 = vsel %vm3267, %v3260, %v2545
  %v3326 = vsel %vm3267, %v3261, %v2547
  %v3327 = vsel %vm3267, %v3262, %v2549
  %v3328 = vsel %vm3267, %v3263, %v2551
  %v3329 = vsel %vm3267, %v3264, %v2553
  %v3330 = vsel %vm3267, %v3265, %v2555
  %v3331 = vsel %vm3267, %v3266, %v2557
  %vm3332 = vcmask 64512
  %v3333 = vsel %vm3332, %v3268, %v2687
  %v3334 = vsel %vm3332, %v3269, %v2689
  %v3335 = vsel %vm3332, %v3270, %v2691
  %v3336 = vsel %vm3332, %v3271, %v2693
  %v3337 = vsel %vm3332, %v3272, %v2695
  %v3338 = vsel %vm3332, %v3273, %v2697
  %v3339 = vsel %vm3332, %v3274, %v2699
  %v3340 = vsel %vm3332, %v3275, %v2701
  %v3341 = vsel %vm3332, %v3276, %v2703
  %v3342 = vsel %vm3332, %v3277, %v2705
  %v3343 = vsel %vm3332, %v3278, %v2707
  %v3344 = vsel %vm3332, %v3279, %v2709
  %v3345 = vsel %vm3332, %v3280, %v2711
  %v3346 = vsel %vm3332, %v3281, %v2713
  %v3347 = vsel %vm3332, %v3282, %v2715
  %v3348 = vsel %vm3332, %v3283, %v2717
  %v3349 = vsel %vm3332, %v3284, %v2719
  %v3350 = vsel %vm3332, %v3285, %v2721
  %v3351 = vsel %vm3332, %v3286, %v2723
  %v3352 = vsel %vm3332, %v3287, %v2725
  %v3353 = vsel %vm3332, %v3288, %v2727
  %v3354 = vsel %vm3332, %v3289, %v2729
  %v3355 = vsel %vm3332, %v3290, %v2731
  %v3356 = vsel %vm3332, %v3291, %v2733
  %v3357 = vsel %vm3332, %v3292, %v2735
  %v3358 = vsel %vm3332, %v3293, %v2737
  %v3359 = vsel %vm3332, %v3294, %v2739
  %v3360 = vsel %vm3332, %v3295, %v2741
  %v3361 = vsel %vm3332, %v3296, %v2743
  %v3362 = vsel %vm3332, %v3297, %v2745
  %v3363 = vsel %vm3332, %v3298, %v2747
  %v3364 = vsel %vm3332, %v3299, %v2749
  %v3365 = vsel %vm3332, %v3300, %v2751
  %v3366 = vsel %vm3332, %v3301, %v2753
  %v3367 = vsel %vm3332, %v3302, %v2755
  %v3368 = vsel %vm3332, %v3303, %v2757
  %v3369 = vsel %vm3332, %v3304, %v2759
  %v3370 = vsel %vm3332, %v3305, %v2761
  %v3371 = vsel %vm3332, %v3306, %v2763
  %v3372 = vsel %vm3332, %v3307, %v2765
  %v3373 = vsel %vm3332, %v3308, %v2767
  %v3374 = vsel %vm3332, %v3309, %v2769
  %v3375 = vsel %vm3332, %v3310, %v2771
  %v3376 = vsel %vm3332, %v3311, %v2773
  %v3377 = vsel %vm3332, %v3312, %v2775
  %v3378 = vsel %vm3332, %v3313, %v2777
  %v3379 = vsel %vm3332, %v3314, %v2779
  %v3380 = vsel %vm3332, %v3315, %v2781
  %v3381 = vsel %vm3332, %v3316, %v2783
  %v3382 = vsel %vm3332, %v3317, %v2785
  %v3383 = vsel %vm3332, %v3318, %v2787
  %v3384 = vsel %vm3332, %v3319, %v2789
  %v3385 = vsel %vm3332, %v3320, %v2791
  %v3386 = vsel %vm3332, %v3321, %v2793
  %v3387 = vsel %vm3332, %v3322, %v2795
  %v3388 = vsel %vm3332, %v3323, %v2797
  %v3389 = vsel %vm3332, %v3324, %v2799
  %v3390 = vsel %vm3332, %v3325, %v2801
  %v3391 = vsel %vm3332, %v3326, %v2803
  %v3392 = vsel %vm3332, %v3327, %v2805
  %v3393 = vsel %vm3332, %v3328, %v2807
  %v3394 = vsel %vm3332, %v3329, %v2809
  %v3395 = vsel %vm3332, %v3330, %v2811
  %v3396 = vsel %vm3332, %v3331, %v2813
  %v3397 = vld [vmem:[%s1] sm:$0xff]
  %v3398 = vld [vmem:[%s1 + $0x8] sm:$0x1]
  %v3399 = vld [vmem:[%s2] sm:$0x1]
  %v3401 = vperm.slane %v3399, 0
  %vm3403 = vcmask 72704
  %v3405 = vsel %vm3403, %v3333, 0
  %v3408 = vsel %vm3403, %v3334, 0
  %v3411 = vsel %vm3403, %v3335, 0
  %v3414 = vsel %vm3403, %v3336, 0
  %v3417 = vsel %vm3403, %v3337, 0
  %v3420 = vsel %vm3403, %v3338, 0
  %v3423 = vsel %vm3403, %v3339, 0
  %v3426 = vsel %vm3403, %v3340, 0
  %v3429 = vsel %vm3403, %v3341, 0
  %v3432 = vsel %vm3403, %v3342, 0
  %v3435 = vsel %vm3403, %v3343, 0
  %v3438 = vsel %vm3403, %v3344, 0
  %v3441 = vsel %vm3403, %v3345, 0
  %v3444 = vsel %vm3403, %v3346, 0
  %v3447 = vsel %vm3403, %v3347, 0
  %v3450 = vsel %vm3403, %v3348, 0
  %v3453 = vsel %vm3403, %v3349, 0
  %v3456 = vsel %vm3403, %v3350, 0
  %v3459 = vsel %vm3403, %v3351, 0
  %v3462 = vsel %vm3403, %v3352, 0
  %v3465 = vsel %vm3403, %v3353, 0
  %v3468 = vsel %vm3403, %v3354, 0
  %v3471 = vsel %vm3403, %v3355, 0
  %v3474 = vsel %vm3403, %v3356, 0
  %v3477 = vsel %vm3403, %v3357, 0
  %v3480 = vsel %vm3403, %v3358, 0
  %v3483 = vsel %vm3403, %v3359, 0
  %v3486 = vsel %vm3403, %v3360, 0
  %v3489 = vsel %vm3403, %v3361, 0
  %v3492 = vsel %vm3403, %v3362, 0
  %v3495 = vsel %vm3403, %v3363, 0
  %v3498 = vsel %vm3403, %v3364, 0
  %v3501 = vsel %vm3403, %v3365, 0
  %v3504 = vsel %vm3403, %v3366, 0
  %v3507 = vsel %vm3403, %v3367, 0
  %v3510 = vsel %vm3403, %v3368, 0
  %v3513 = vsel %vm3403, %v3369, 0
  %v3516 = vsel %vm3403, %v3370, 0
  %v3519 = vsel %vm3403, %v3371, 0
  %v3522 = vsel %vm3403, %v3372, 0
  %v3525 = vsel %vm3403, %v3373, 0
  %v3528 = vsel %vm3403, %v3374, 0
  %v3531 = vsel %vm3403, %v3375, 0
  %v3534 = vsel %vm3403, %v3376, 0
  %v3537 = vsel %vm3403, %v3377, 0
  %v3540 = vsel %vm3403, %v3378, 0
  %v3543 = vsel %vm3403, %v3379, 0
  %v3546 = vsel %vm3403, %v3380, 0
  %v3549 = vsel %vm3403, %v3381, 0
  %v3552 = vsel %vm3403, %v3382, 0
  %v3555 = vsel %vm3403, %v3383, 0
  %v3558 = vsel %vm3403, %v3384, 0
  %v3561 = vsel %vm3403, %v3385, 0
  %v3564 = vsel %vm3403, %v3386, 0
  %v3567 = vsel %vm3403, %v3387, 0
  %v3570 = vsel %vm3403, %v3388, 0
  %v3573 = vsel %vm3403, %v3389, 0
  %v3576 = vsel %vm3403, %v3390, 0
  %v3579 = vsel %vm3403, %v3391, 0
  %v3582 = vsel %vm3403, %v3392, 0
  %v3585 = vsel %vm3403, %v3393, 0
  %v3588 = vsel %vm3403, %v3394, 0
  %v3591 = vsel %vm3403, %v3395, 0
  %v3594 = vsel %vm3403, %v3396, 0
  %vm3596 = vcmask 1040384
  %v3598 = vsel %vm3596, %v3398, 0
  %3600 = vmatpush.msra.mxu0 0.0
  %3601 = vmatpush.msra.mxu0 0.0
  %3602 = vmatpush.msra.mxu0 0.0
  %3603 = vmatpush.msra.mxu0 0.0
  %3604 = vmatpush.msra.mxu0 0.0
  %3605 = vmatpush.msra.mxu0 0.0
  %3606 = vmatpush.msra.mxu0 0.0
  %3607 = vmatpush.msra.mxu0 0.0
  %3608 = vmatpush.msra.mxu0 0.0
  %3609 = vmatpush.msra.mxu0 0.0
  %3610 = vmatpush.msra.mxu0 0.0
  %3611 = vmatpush.msra.mxu0 0.0
  %3612 = vmatpush.msra.mxu0 0.0
  %3613 = vmatpush.msra.mxu0 0.0
  %3614 = vmatpush.msra.mxu0 %v3598
  %3615 = vmatpush.msra.mxu0 %v3397
  %3616 = vmatmul.f32.gmra.mxu0 %v3405
  %v3617 = vpop.f32.mrf.mxu0
  %v3618 = vadd.f32 %v3401, %v3617
  %3619 = vmatmul.f32.gmra.mxu0 %v3408
  %v3620 = vpop.f32.mrf.mxu0
  %v3621 = vadd.f32 %v3401, %v3620
  %3622 = vmatmul.f32.gmra.mxu0 %v3411
  %v3623 = vpop.f32.mrf.mxu0
  %v3624 = vadd.f32 %v3401, %v3623
  %3625 = vmatmul.f32.gmra.mxu0 %v3414
  %v3626 = vpop.f32.mrf.mxu0
  %v3627 = vadd.f32 %v3401, %v3626
  %3628 = vmatmul.f32.gmra.mxu0 %v3417
  %v3629 = vpop.f32.mrf.mxu0
  %v3630 = vadd.f32 %v3401, %v3629
  %3631 = vmatmul.f32.gmra.mxu0 %v3420
  %v3632 = vpop.f32.mrf.mxu0
  %v3633 = vadd.f32 %v3401, %v3632
  %3634 = vmatmul.f32.gmra.mxu0 %v3423
  %v3635 = vpop.f32.mrf.mxu0
  %v3636 = vadd.f32 %v3401, %v3635
  %3637 = vmatmul.f32.gmra.mxu0 %v3426
  %v3638 = vpop.f32.mrf.mxu0
  %v3639 = vadd.f32 %v3401, %v3638
  %3640 = vmatmul.f32.gmra.mxu0 %v3429
  %v3641 = vpop.f32.mrf.mxu0
  %v3642 = vadd.f32 %v3401, %v3641
  %3643 = vmatmul.f32.gmra.mxu0 %v3432
  %v3644 = vpop.f32.mrf.mxu0
  %v3645 = vadd.f32 %v3401, %v3644
  %3646 = vmatmul.f32.gmra.mxu0 %v3435
  %v3647 = vpop.f32.mrf.mxu0
  %v3648 = vadd.f32 %v3401, %v3647
  %3649 = vmatmul.f32.gmra.mxu0 %v3438
  %v3650 = vpop.f32.mrf.mxu0
  %v3651 = vadd.f32 %v3401, %v3650
  %3652 = vmatmul.f32.gmra.mxu0 %v3441
  %v3653 = vpop.f32.mrf.mxu0
  %v3654 = vadd.f32 %v3401, %v3653
  %3655 = vmatmul.f32.gmra.mxu0 %v3444
  %v3656 = vpop.f32.mrf.mxu0
  %v3657 = vadd.f32 %v3401, %v3656
  %3658 = vmatmul.f32.gmra.mxu0 %v3447
  %v3659 = vpop.f32.mrf.mxu0
  %v3660 = vadd.f32 %v3401, %v3659
  %3661 = vmatmul.f32.gmra.mxu0 %v3450
  %v3662 = vpop.f32.mrf.mxu0
  %v3663 = vadd.f32 %v3401, %v3662
  %3664 = vmatmul.f32.gmra.mxu0 %v3453
  %v3665 = vpop.f32.mrf.mxu0
  %v3666 = vadd.f32 %v3401, %v3665
  %3667 = vmatmul.f32.gmra.mxu0 %v3456
  %v3668 = vpop.f32.mrf.mxu0
  %v3669 = vadd.f32 %v3401, %v3668
  %3670 = vmatmul.f32.gmra.mxu0 %v3459
  %v3671 = vpop.f32.mrf.mxu0
  %v3672 = vadd.f32 %v3401, %v3671
  %3673 = vmatmul.f32.gmra.mxu0 %v3462
  %v3674 = vpop.f32.mrf.mxu0
  %v3675 = vadd.f32 %v3401, %v3674
  %3676 = vmatmul.f32.gmra.mxu0 %v3465
  %v3677 = vpop.f32.mrf.mxu0
  %v3678 = vadd.f32 %v3401, %v3677
  %3679 = vmatmul.f32.gmra.mxu0 %v3468
  %v3680 = vpop.f32.mrf.mxu0
  %v3681 = vadd.f32 %v3401, %v3680
  %3682 = vmatmul.f32.gmra.mxu0 %v3471
  %v3683 = vpop.f32.mrf.mxu0
  %v3684 = vadd.f32 %v3401, %v3683
  %3685 = vmatmul.f32.gmra.mxu0 %v3474
  %v3686 = vpop.f32.mrf.mxu0
  %v3687 = vadd.f32 %v3401, %v3686
  %3688 = vmatmul.f32.gmra.mxu0 %v3477
  %v3689 = vpop.f32.mrf.mxu0
  %v3690 = vadd.f32 %v3401, %v3689
  %3691 = vmatmul.f32.gmra.mxu0 %v3480
  %v3692 = vpop.f32.mrf.mxu0
  %v3693 = vadd.f32 %v3401, %v3692
  %3694 = vmatmul.f32.gmra.mxu0 %v3483
  %v3695 = vpop.f32.mrf.mxu0
  %v3696 = vadd.f32 %v3401, %v3695
  %3697 = vmatmul.f32.gmra.mxu0 %v3486
  %v3698 = vpop.f32.mrf.mxu0
  %v3699 = vadd.f32 %v3401, %v3698
  %3700 = vmatmul.f32.gmra.mxu0 %v3489
  %v3701 = vpop.f32.mrf.mxu0
  %v3702 = vadd.f32 %v3401, %v3701
  %3703 = vmatmul.f32.gmra.mxu0 %v3492
  %v3704 = vpop.f32.mrf.mxu0
  %v3705 = vadd.f32 %v3401, %v3704
  %3706 = vmatmul.f32.gmra.mxu0 %v3495
  %v3707 = vpop.f32.mrf.mxu0
  %v3708 = vadd.f32 %v3401, %v3707
  %3709 = vmatmul.f32.gmra.mxu0 %v3498
  %v3710 = vpop.f32.mrf.mxu0
  %v3711 = vadd.f32 %v3401, %v3710
  %3712 = vmatmul.f32.gmra.mxu0 %v3501
  %v3713 = vpop.f32.mrf.mxu0
  %v3714 = vadd.f32 %v3401, %v3713
  %3715 = vmatmul.f32.gmra.mxu0 %v3504
  %v3716 = vpop.f32.mrf.mxu0
  %v3717 = vadd.f32 %v3401, %v3716
  %3718 = vmatmul.f32.gmra.mxu0 %v3507
  %v3719 = vpop.f32.mrf.mxu0
  %v3720 = vadd.f32 %v3401, %v3719
  %3721 = vmatmul.f32.gmra.mxu0 %v3510
  %v3722 = vpop.f32.mrf.mxu0
  %v3723 = vadd.f32 %v3401, %v3722
  %3724 = vmatmul.f32.gmra.mxu0 %v3513
  %v3725 = vpop.f32.mrf.mxu0
  %v3726 = vadd.f32 %v3401, %v3725
  %3727 = vmatmul.f32.gmra.mxu0 %v3516
  %v3728 = vpop.f32.mrf.mxu0
  %v3729 = vadd.f32 %v3401, %v3728
  %3730 = vmatmul.f32.gmra.mxu0 %v3519
  %v3731 = vpop.f32.mrf.mxu0
  %v3732 = vadd.f32 %v3401, %v3731
  %3733 = vmatmul.f32.gmra.mxu0 %v3522
  %v3734 = vpop.f32.mrf.mxu0
  %v3735 = vadd.f32 %v3401, %v3734
  %3736 = vmatmul.f32.gmra.mxu0 %v3525
  %v3737 = vpop.f32.mrf.mxu0
  %v3738 = vadd.f32 %v3401, %v3737
  %3739 = vmatmul.f32.gmra.mxu0 %v3528
  %v3740 = vpop.f32.mrf.mxu0
  %v3741 = vadd.f32 %v3401, %v3740
  %3742 = vmatmul.f32.gmra.mxu0 %v3531
  %v3743 = vpop.f32.mrf.mxu0
  %v3744 = vadd.f32 %v3401, %v3743
  %3745 = vmatmul.f32.gmra.mxu0 %v3534
  %v3746 = vpop.f32.mrf.mxu0
  %v3747 = vadd.f32 %v3401, %v3746
  %3748 = vmatmul.f32.gmra.mxu0 %v3537
  %v3749 = vpop.f32.mrf.mxu0
  %v3750 = vadd.f32 %v3401, %v3749
  %3751 = vmatmul.f32.gmra.mxu0 %v3540
  %v3752 = vpop.f32.mrf.mxu0
  %v3753 = vadd.f32 %v3401, %v3752
  %3754 = vmatmul.f32.gmra.mxu0 %v3543
  %v3755 = vpop.f32.mrf.mxu0
  %v3756 = vadd.f32 %v3401, %v3755
  %3757 = vmatmul.f32.gmra.mxu0 %v3546
  %v3758 = vpop.f32.mrf.mxu0
  %v3759 = vadd.f32 %v3401, %v3758
  %3760 = vmatmul.f32.gmra.mxu0 %v3549
  %v3761 = vpop.f32.mrf.mxu0
  %v3762 = vadd.f32 %v3401, %v3761
  %3763 = vmatmul.f32.gmra.mxu0 %v3552
  %v3764 = vpop.f32.mrf.mxu0
  %v3765 = vadd.f32 %v3401, %v3764
  %3766 = vmatmul.f32.gmra.mxu0 %v3555
  %v3767 = vpop.f32.mrf.mxu0
  %v3768 = vadd.f32 %v3401, %v3767
  %3769 = vmatmul.f32.gmra.mxu0 %v3558
  %v3770 = vpop.f32.mrf.mxu0
  %v3771 = vadd.f32 %v3401, %v3770
  %3772 = vmatmul.f32.gmra.mxu0 %v3561
  %v3773 = vpop.f32.mrf.mxu0
  %v3774 = vadd.f32 %v3401, %v3773
  %3775 = vmatmul.f32.gmra.mxu0 %v3564
  %v3776 = vpop.f32.mrf.mxu0
  %v3777 = vadd.f32 %v3401, %v3776
  %3778 = vmatmul.f32.gmra.mxu0 %v3567
  %v3779 = vpop.f32.mrf.mxu0
  %v3780 = vadd.f32 %v3401, %v3779
  %3781 = vmatmul.f32.gmra.mxu0 %v3570
  %v3782 = vpop.f32.mrf.mxu0
  %v3783 = vadd.f32 %v3401, %v3782
  %3784 = vmatmul.f32.gmra.mxu0 %v3573
  %v3785 = vpop.f32.mrf.mxu0
  %v3786 = vadd.f32 %v3401, %v3785
  %3787 = vmatmul.f32.gmra.mxu0 %v3576
  %v3788 = vpop.f32.mrf.mxu0
  %v3789 = vadd.f32 %v3401, %v3788
  %3790 = vmatmul.f32.gmra.mxu0 %v3579
  %v3791 = vpop.f32.mrf.mxu0
  %v3792 = vadd.f32 %v3401, %v3791
  %3793 = vmatmul.f32.gmra.mxu0 %v3582
  %v3794 = vpop.f32.mrf.mxu0
  %v3795 = vadd.f32 %v3401, %v3794
  %3796 = vmatmul.f32.gmra.mxu0 %v3585
  %v3797 = vpop.f32.mrf.mxu0
  %v3798 = vadd.f32 %v3401, %v3797
  %3799 = vmatmul.f32.gmra.mxu0 %v3588
  %v3800 = vpop.f32.mrf.mxu0
  %v3801 = vadd.f32 %v3401, %v3800
  %3802 = vmatmul.f32.gmra.mxu0 %v3591
  %v3803 = vpop.f32.mrf.mxu0
  %v3804 = vadd.f32 %v3401, %v3803
  %3805 = vmatmul.f32.gmra.mxu0 %v3594
  %v3806 = vpop.f32.mrf.mxu0
  %v3807 = vadd.f32 %v3401, %v3806
  %3808 = vdwg.mxu0
  %3809 = vst.msk [vmem:[%s3] sm:$0xff] %vm3332, %v3618
  %3810 = vst.msk [vmem:[%s3 + $0x8] sm:$0xff] %vm3332, %v3621
  %3811 = vst.msk [vmem:[%s3 + $0x10] sm:$0xff] %vm3332, %v3624
  %3812 = vst.msk [vmem:[%s3 + $0x18] sm:$0xff] %vm3332, %v3627
  %3813 = vst.msk [vmem:[%s3 + $0x20] sm:$0xff] %vm3332, %v3630
  %3814 = vst.msk [vmem:[%s3 + $0x28] sm:$0xff] %vm3332, %v3633
  %3815 = vst.msk [vmem:[%s3 + $0x30] sm:$0xff] %vm3332, %v3636
  %3816 = vst.msk [vmem:[%s3 + $0x38] sm:$0xff] %vm3332, %v3639
  %3817 = vst.msk [vmem:[%s3 + $0x40] sm:$0xff] %vm3332, %v3642
  %3818 = vst.msk [vmem:[%s3 + $0x48] sm:$0xff] %vm3332, %v3645
  %3819 = vst.msk [vmem:[%s3 + $0x50] sm:$0xff] %vm3332, %v3648
  %3820 = vst.msk [vmem:[%s3 + $0x58] sm:$0xff] %vm3332, %v3651
  %3821 = vst.msk [vmem:[%s3 + $0x60] sm:$0xff] %vm3332, %v3654
  %3822 = vst.msk [vmem:[%s3 + $0x68] sm:$0xff] %vm3332, %v3657
  %3823 = vst.msk [vmem:[%s3 + $0x70] sm:$0xff] %vm3332, %v3660
  %3824 = vst.msk [vmem:[%s3 + $0x78] sm:$0xff] %vm3332, %v3663
  %3825 = vst.msk [vmem:[%s3 + $0x80] sm:$0xff] %vm3332, %v3666
  %3826 = vst.msk [vmem:[%s3 + $0x88] sm:$0xff] %vm3332, %v3669
  %3827 = vst.msk [vmem:[%s3 + $0x90] sm:$0xff] %vm3332, %v3672
  %3828 = vst.msk [vmem:[%s3 + $0x98] sm:$0xff] %vm3332, %v3675
  %3829 = vst.msk [vmem:[%s3 + $0xa0] sm:$0xff] %vm3332, %v3678
  %3830 = vst.msk [vmem:[%s3 + $0xa8] sm:$0xff] %vm3332, %v3681
  %3831 = vst.msk [vmem:[%s3 + $0xb0] sm:$0xff] %vm3332, %v3684
  %3832 = vst.msk [vmem:[%s3 + $0xb8] sm:$0xff] %vm3332, %v3687
  %3833 = vst.msk [vmem:[%s3 + $0xc0] sm:$0xff] %vm3332, %v3690
  %3834 = vst.msk [vmem:[%s3 + $0xc8] sm:$0xff] %vm3332, %v3693
  %3835 = vst.msk [vmem:[%s3 + $0xd0] sm:$0xff] %vm3332, %v3696
  %3836 = vst.msk [vmem:[%s3 + $0xd8] sm:$0xff] %vm3332, %v3699
  %3837 = vst.msk [vmem:[%s3 + $0xe0] sm:$0xff] %vm3332, %v3702
  %3838 = vst.msk [vmem:[%s3 + $0xe8] sm:$0xff] %vm3332, %v3705
  %3839 = vst.msk [vmem:[%s3 + $0xf0] sm:$0xff] %vm3332, %v3708
  %3840 = vst.msk [vmem:[%s3 + $0xf8] sm:$0xff] %vm3332, %v3711
  %3841 = vst.msk [vmem:[%s3 + $0x100] sm:$0xff] %vm3332, %v3714
  %3842 = vst.msk [vmem:[%s3 + $0x108] sm:$0xff] %vm3332, %v3717
  %3843 = vst.msk [vmem:[%s3 + $0x110] sm:$0xff] %vm3332, %v3720
  %3844 = vst.msk [vmem:[%s3 + $0x118] sm:$0xff] %vm3332, %v3723
  %3845 = vst.msk [vmem:[%s3 + $0x120] sm:$0xff] %vm3332, %v3726
  %3846 = vst.msk [vmem:[%s3 + $0x128] sm:$0xff] %vm3332, %v3729
  %3847 = vst.msk [vmem:[%s3 + $0x130] sm:$0xff] %vm3332, %v3732
  %3848 = vst.msk [vmem:[%s3 + $0x138] sm:$0xff] %vm3332, %v3735
  %3849 = vst.msk [vmem:[%s3 + $0x140] sm:$0xff] %vm3332, %v3738
  %3850 = vst.msk [vmem:[%s3 + $0x148] sm:$0xff] %vm3332, %v3741
  %3851 = vst.msk [vmem:[%s3 + $0x150] sm:$0xff] %vm3332, %v3744
  %3852 = vst.msk [vmem:[%s3 + $0x158] sm:$0xff] %vm3332, %v3747
  %3853 = vst.msk [vmem:[%s3 + $0x160] sm:$0xff] %vm3332, %v3750
  %3854 = vst.msk [vmem:[%s3 + $0x168] sm:$0xff] %vm3332, %v3753
  %3855 = vst.msk [vmem:[%s3 + $0x170] sm:$0xff] %vm3332, %v3756
  %3856 = vst.msk [vmem:[%s3 + $0x178] sm:$0xff] %vm3332, %v3759
  %3857 = vst.msk [vmem:[%s3 + $0x180] sm:$0xff] %vm3332, %v3762
  %3858 = vst.msk [vmem:[%s3 + $0x188] sm:$0xff] %vm3332, %v3765
  %3859 = vst.msk [vmem:[%s3 + $0x190] sm:$0xff] %vm3332, %v3768
  %3860 = vst.msk [vmem:[%s3 + $0x198] sm:$0xff] %vm3332, %v3771
  %3861 = vst.msk [vmem:[%s3 + $0x1a0] sm:$0xff] %vm3332, %v3774
  %3862 = vst.msk [vmem:[%s3 + $0x1a8] sm:$0xff] %vm3332, %v3777
  %3863 = vst.msk [vmem:[%s3 + $0x1b0] sm:$0xff] %vm3332, %v3780
  %3864 = vst.msk [vmem:[%s3 + $0x1b8] sm:$0xff] %vm3332, %v3783
  %3865 = vst.msk [vmem:[%s3 + $0x1c0] sm:$0xff] %vm3332, %v3786
  %3866 = vst.msk [vmem:[%s3 + $0x1c8] sm:$0xff] %vm3332, %v3789
  %3867 = vst.msk [vmem:[%s3 + $0x1d0] sm:$0xff] %vm3332, %v3792
  %3868 = vst.msk [vmem:[%s3 + $0x1d8] sm:$0xff] %vm3332, %v3795
  %3869 = vst.msk [vmem:[%s3 + $0x1e0] sm:$0xff] %vm3332, %v3798
  %3870 = vst.msk [vmem:[%s3 + $0x1e8] sm:$0xff] %vm3332, %v3801
  %3871 = vst.msk [vmem:[%s3 + $0x1f0] sm:$0xff] %vm3332, %v3804
  %3872 = vst.msk [vmem:[%s3 + $0x1f8] sm:$0xff] %vm3332, %v3807
  // Predicated region
  $region14: #{tpu_custom_call.1} parent=0 // pred_check
    _
  $region15: #{tpu_custom_call.1} parent=0 // pred_check_branch
    %3874 = sbr.rel (0) target = $region17
  $region16: #{tpu_custom_call.1} parent=0 // pred_region
    _
  $region17: #{tpu_custom_call.1} parent=0 // pred_fallthru
    _
  // Predicated region
  $region18: #{tpu_custom_call.1} parent=0 // pred_check
    _
  $region19: #{tpu_custom_call.1} parent=0 // pred_check_branch
    %3876 = sbr.rel (0) target = $region21
  $region20: #{tpu_custom_call.1} parent=0 // pred_region
    _
  $region21: #{tpu_custom_call.1} parent=0 // pred_fallthru
    _

</llo_original>
